<compile_context>
chip_gen: v6e
topology: v6e:2x2x1
jax: 0.10.0
libtpu: 0.0.40
codegen_flags: <defaults>
</compile_context>

<pallas_src>
import functools

import jax
import jax.numpy as jnp
from jax.experimental import pallas as pl
from jax.experimental.pallas import tpu as pltpu

HIDDEN = 256   # hard-coded in the PyTorch module
LANE = 128


def _round_up(x, m):
    return ((x + m - 1) // m) * m


# ----------------------------------------------------------------------------
# Kernel: whole actor net (all tasks) in one fused invocation
# ----------------------------------------------------------------------------
def _actor_fused_kernel(s_ref, w1_ref, b1_ref, w2_ref, b2_ref, w3_ref, b3_ref,
                        out_ref, *, n_tasks, n_skills, out_pad):
    B = s_ref.shape[0]
    nts = n_tasks * n_skills

    # ---- Layer 1: (B, s_dim) x (s_dim, T*H) -- all tasks in one matmul ----
    x = s_ref[...].astype(jnp.bfloat16)
    h1 = jnp.dot(x, w1_ref[...], preferred_element_type=jnp.float32) + b1_ref[...]
    h1 = jnp.maximum(h1, 0.0)                                      # (B, T*H) f32

    # ---- Layer 2: block-diagonal (T*H, T*H) -- one wide matmul ----
    h2 = jnp.dot(h1.astype(jnp.bfloat16), w2_ref[...],
                 preferred_element_type=jnp.float32) + b2_ref[...]
    h2 = jnp.maximum(h2, 0.0)                                      # (B, T*H) f32

    # ---- Layer 3: block-diagonal (T*H, T*K) -- lane-packed logits ----
    logits = jnp.dot(h2.astype(jnp.bfloat16), w3_ref[...],
                     preferred_element_type=jnp.float32) + b3_ref[...]   # (B, T*K)

    # ---- Per-task softmax / log-softmax on the packed logits ----
    l3 = logits.reshape(B, n_tasks, n_skills)
    m = jnp.max(l3, axis=-1, keepdims=True)
    z = l3 - m
    e = jnp.exp(z)
    se = jnp.sum(e, axis=-1, keepdims=True)
    pi3 = e * pl.reciprocal(se, approx=True)                       # Softmax(dim=2)
    logpi3 = z - jnp.log(se)                                       # LogSoftmax(dim=2)

    # One lane-dense packed store: [ pi (T*K) | log_pi (T*K) | zero pad ].
    pieces = [pi3.reshape(B, nts), logpi3.reshape(B, nts)]
    pad = out_pad - 2 * nts
    if pad:
        pieces.append(jnp.zeros((B, pad), jnp.float32))
    out_ref[...] = jnp.concatenate(pieces, axis=-1)


# ----------------------------------------------------------------------------
# One-time parameter layout conversion (load time, NOT per forward)
# ----------------------------------------------------------------------------
def _block_diag(blocks):
    """blocks: (T, d_in, d_out) f32 -> block-diagonal (T*d_in, T*d_out)."""
    T, din, dout = blocks.shape
    eye = jnp.eye(T, dtype=blocks.dtype)
    # out[t*din+i, s*dout+o] = blocks[t, i, o] * eye[t, s]
    return jnp.einsum("tio,ts->tiso", blocks, eye).reshape(T * din, T * dout)


def prepare_actor_params(raw):
    """raw PyTorch layout: w (n_tasks, out, in) f32, b (n_tasks, out) f32.

    Returns kernel layout: layer-1 weights concatenated along the output dim,
    layer-2/3 weights block-diagonal, all weights transposed to (in, out) and
    cast to bfloat16 (MXU operands); biases kept f32 (added to f32 accumulators).
    If tighter logit accuracy is ever needed, keep w3 in f32 (it is tiny).
    """
    n_tasks, H, s_dim = raw["w1"].shape
    n_skills = raw["w3"].shape[1]
    w1_cat = jnp.transpose(raw["w1"], (2, 0, 1)).reshape(s_dim, n_tasks * H)
    w2_bd = _block_diag(jnp.transpose(raw["w2"], (0, 2, 1)))          # (T*H, T*H)
    w3_bd = _block_diag(jnp.transpose(raw["w3"], (0, 2, 1)))          # (T*H, T*K)
    return dict(
        w1=w1_cat.astype(jnp.bfloat16),                               # (s_dim, T*H)
        b1=raw["b1"].reshape(1, n_tasks * H).astype(jnp.float32),
        w2=w2_bd.astype(jnp.bfloat16),                                # (T*H, T*H)
        b2=raw["b2"].reshape(1, n_tasks * H).astype(jnp.float32),
        w3=w3_bd.astype(jnp.bfloat16),                                # (T*H, T*K)
        b3=raw["b3"].reshape(1, n_tasks * n_skills).astype(jnp.float32),
    )


# ----------------------------------------------------------------------------
# Forward wrapper (pallas_call setup + output unpacking)
# ----------------------------------------------------------------------------
def softmax_actor_forward(s, p):
    """Pallas implementation of softmax_actorNet.forward(s) -> (PA_sT, log_PA_sT)."""
    B, s_dim = s.shape
    TH = p["w2"].shape[0]
    n_tasks = TH // HIDDEN
    nts = p["w3"].shape[1]
    n_skills = nts // n_tasks
    out_pad = _round_up(2 * nts, LANE)          # lane-dense (unmasked) output slab

    kernel = functools.partial(_actor_fused_kernel, n_tasks=n_tasks,
                               n_skills=n_skills, out_pad=out_pad)
    args = (s, p["w1"], p["b1"], p["w2"], p["b2"], p["w3"], p["b3"])

    def full_spec(shape):
        nd = len(shape)
        return pl.BlockSpec(shape, lambda i, _nd=nd: (0,) * _nd)

    flops = 2 * B * (s_dim * TH + TH * TH + TH * nts)
    transcendentals = B * (nts + 2 * n_tasks)            # exp + log + reciprocal
    bytes_accessed = int(sum(a.size * a.dtype.itemsize for a in args)
                         + B * out_pad * 4)

    out = pl.pallas_call(
        kernel,
        out_shape=jax.ShapeDtypeStruct((B, out_pad), jnp.float32),
        grid=(1,),
        in_specs=[full_spec(a.shape) for a in args],
        out_specs=pl.BlockSpec((B, out_pad), lambda i: (0, 0)),
        compiler_params=pltpu.CompilerParams(dimension_semantics=("arbitrary",)),
        cost_estimate=pl.CostEstimate(flops=flops,
                                      transcendentals=transcendentals,
                                      bytes_accessed=bytes_accessed),
    )(*args)

    pi = out[:, :nts].reshape(B, n_tasks, n_skills)        # row-major, no transpose
    log_pi = out[:, nts:2 * nts].reshape(B, n_tasks, n_skills)
    return pi, log_pi


# ----------------------------------------------------------------------------
# Pure-JAX reference (mirrors the torch.einsum semantics, full f32)
# ----------------------------------------------------------------------------
def _actor_ref(s, raw):
    x = jax.nn.relu(jnp.einsum("ik,jlk->ijl", s, raw["w1"]) + raw["b1"][None])
    x = jax.nn.relu(jnp.einsum("ijk,jlk->ijl", x, raw["w2"]) + raw["b2"][None])
    logits = jnp.einsum("ijk,jlk->ijl", x, raw["w3"]) + raw["b3"][None]
    return jax.nn.softmax(logits, axis=2), jax.nn.log_softmax(logits, axis=2)


# ----------------------------------------------------------------------------
# Deterministic parameter init (shapes match the PyTorch module; values synthetic)
# ----------------------------------------------------------------------------
def init_actor_params(key, n_tasks, s_dim, n_skills):
    ks = jax.random.split(key, 3)
    return dict(
        w1=0.1 * jax.random.normal(ks[0], (n_tasks, HIDDEN, s_dim), jnp.float32),
        b1=jnp.zeros((n_tasks, HIDDEN), jnp.float32),
        w2=0.1 * jax.random.normal(ks[1], (n_tasks, HIDDEN, HIDDEN), jnp.float32),
        b2=jnp.zeros((n_tasks, HIDDEN), jnp.float32),
        w3=0.01 * jax.random.normal(ks[2], (n_tasks, n_skills, HIDDEN), jnp.float32),
        b3=jnp.zeros((n_tasks, n_skills), jnp.float32),
    )


if __name__ == "__main__":
    key = jax.random.PRNGKey(0)
    B, s_dim, n_tasks, n_skills = 2, 16, 4, 8     # small shapes; see batching TODO

    k_p, k_s = jax.random.split(key, 2)
    raw_params = init_actor_params(k_p, n_tasks, s_dim, n_skills)
    params = prepare_actor_params(raw_params)     # one-time layout conversion
    s = jax.random.normal(k_s, (B, s_dim), jnp.float32)

    fwd = jax.jit(softmax_actor_forward)
    pi, log_pi = jax.block_until_ready(fwd(s, params))

    pi_ref, logpi_ref = _actor_ref(s, raw_params)
    assert pi.shape == (B, n_tasks, n_skills), pi.shape
    assert log_pi.shape == (B, n_tasks, n_skills), log_pi.shape
    # Tolerance loosened vs the pure-f32 reference: matmul operands are bf16 and
    # the softmax denominator uses the EUP approximate reciprocal.
    assert jnp.allclose(pi, pi_ref, rtol=1e-2, atol=1e-2), \
        float(jnp.abs(pi - pi_ref).max())
    assert jnp.allclose(log_pi, logpi_ref, rtol=1e-2, atol=1e-2), \
        float(jnp.abs(log_pi - logpi_ref).max())

    print("KERNEL_OK")
</pallas_src>

<mosaic_0001>
module attributes {stable_mosaic.version = 11 : i64} {
  func.func @_actor_fused_kernel(%arg0: i32, %arg1: memref<2x16xf32, #tpu.memory_space<vmem>>, %arg2: memref<16x1024xbf16, #tpu.memory_space<vmem>>, %arg3: memref<1x1024xf32, #tpu.memory_space<vmem>>, %arg4: memref<1024x1024xbf16, #tpu.memory_space<vmem>>, %arg5: memref<1x1024xf32, #tpu.memory_space<vmem>>, %arg6: memref<1024x32xbf16, #tpu.memory_space<vmem>>, %arg7: memref<1x32xf32, #tpu.memory_space<vmem>>, %arg8: memref<2x128xf32, #tpu.memory_space<vmem>>) attributes {dimension_semantics = [#tpu.dimension_semantics<arbitrary>], iteration_bounds = array<i64: 1>, scalar_prefetch = 0 : i64, scratch_operands = 0 : i64, tpu.core_type = #tpu.core_type<tc>, window_params = [{pipeline_mode = #tpu.pipeline_mode<synchronous>, transform_indices = @transform_0, window_bounds = array<i64: 2, 16>}, {pipeline_mode = #tpu.pipeline_mode<synchronous>, transform_indices = @transform_1, window_bounds = array<i64: 16, 1024>}, {pipeline_mode = #tpu.pipeline_mode<synchronous>, transform_indices = @transform_2, window_bounds = array<i64: 1, 1024>}, {pipeline_mode = #tpu.pipeline_mode<synchronous>, transform_indices = @transform_3, window_bounds = array<i64: 1024, 1024>}, {pipeline_mode = #tpu.pipeline_mode<synchronous>, transform_indices = @transform_4, window_bounds = array<i64: 1, 1024>}, {pipeline_mode = #tpu.pipeline_mode<synchronous>, transform_indices = @transform_5, window_bounds = array<i64: 1024, 32>}, {pipeline_mode = #tpu.pipeline_mode<synchronous>, transform_indices = @transform_6, window_bounds = array<i64: 1, 32>}, {pipeline_mode = #tpu.pipeline_mode<synchronous>, transform_indices = @transform_7, window_bounds = array<i64: 2, 128>}]} {
    %c0 = arith.constant 0 : index
    %c0_0 = arith.constant 0 : index
    %0 = vector.load %arg1[%c0, %c0_0] : memref<2x16xf32, #tpu.memory_space<vmem>>, vector<2x16xf32>
    %1 = arith.truncf %0 : vector<2x16xf32> to vector<2x16xbf16>
    %c0_1 = arith.constant 0 : index
    %c0_2 = arith.constant 0 : index
    %2 = vector.load %arg2[%c0_1, %c0_2] : memref<16x1024xbf16, #tpu.memory_space<vmem>>, vector<16x1024xbf16>
    %cst = arith.constant dense<0.000000e+00> : vector<2x1024xf32>
    %3 = tpu.matmul %1, %2, %cst {dimension_numbers = #tpu.dot_dimension_numbers<[1], [0], [0], [1], [0, 0, 1, 1], [], []>} : vector<2x16xbf16>, vector<16x1024xbf16>, vector<2x1024xf32> -> vector<2x1024xf32>
    %c0_3 = arith.constant 0 : index
    %c0_4 = arith.constant 0 : index
    %4 = vector.load %arg3[%c0_3, %c0_4] : memref<1x1024xf32, #tpu.memory_space<vmem>>, vector<1x1024xf32>
    %5 = vector.broadcast %4 : vector<1x1024xf32> to vector<2x1024xf32>
    %6 = arith.addf %3, %5 : vector<2x1024xf32>
    %cst_5 = arith.constant 0.000000e+00 : f32
    %7 = vector.broadcast %cst_5 : f32 to vector<2x1024xf32>
    %8 = arith.maximumf %6, %7 : vector<2x1024xf32>
    %9 = arith.truncf %8 : vector<2x1024xf32> to vector<2x1024xbf16>
    %c0_6 = arith.constant 0 : index
    %c0_7 = arith.constant 0 : index
    %10 = vector.load %arg4[%c0_6, %c0_7] : memref<1024x1024xbf16, #tpu.memory_space<vmem>>, vector<1024x1024xbf16>
    %cst_8 = arith.constant dense<0.000000e+00> : vector<2x1024xf32>
    %11 = tpu.matmul %9, %10, %cst_8 {dimension_numbers = #tpu.dot_dimension_numbers<[1], [0], [0], [1], [0, 0, 1, 1], [], []>} : vector<2x1024xbf16>, vector<1024x1024xbf16>, vector<2x1024xf32> -> vector<2x1024xf32>
    %c0_9 = arith.constant 0 : index
    %c0_10 = arith.constant 0 : index
    %12 = vector.load %arg5[%c0_9, %c0_10] : memref<1x1024xf32, #tpu.memory_space<vmem>>, vector<1x1024xf32>
    %13 = vector.broadcast %12 : vector<1x1024xf32> to vector<2x1024xf32>
    %14 = arith.addf %11, %13 : vector<2x1024xf32>
    %cst_11 = arith.constant 0.000000e+00 : f32
    %15 = vector.broadcast %cst_11 : f32 to vector<2x1024xf32>
    %16 = arith.maximumf %14, %15 : vector<2x1024xf32>
    %17 = arith.truncf %16 : vector<2x1024xf32> to vector<2x1024xbf16>
    %c0_12 = arith.constant 0 : index
    %c0_13 = arith.constant 0 : index
    %18 = vector.load %arg6[%c0_12, %c0_13] : memref<1024x32xbf16, #tpu.memory_space<vmem>>, vector<1024x32xbf16>
    %cst_14 = arith.constant dense<0.000000e+00> : vector<2x32xf32>
    %19 = tpu.matmul %17, %18, %cst_14 {dimension_numbers = #tpu.dot_dimension_numbers<[1], [0], [0], [1], [0, 0, 1, 1], [], []>} : vector<2x1024xbf16>, vector<1024x32xbf16>, vector<2x32xf32> -> vector<2x32xf32>
    %c0_15 = arith.constant 0 : index
    %c0_16 = arith.constant 0 : index
    %20 = vector.load %arg7[%c0_15, %c0_16] : memref<1x32xf32, #tpu.memory_space<vmem>>, vector<1x32xf32>
    %21 = vector.broadcast %20 : vector<1x32xf32> to vector<2x32xf32>
    %22 = arith.addf %19, %21 : vector<2x32xf32>
    %23 = vector.shape_cast %22 : vector<2x32xf32> to vector<2x4x8xf32>
    %cst_17 = arith.constant dense<0xFF800000> : vector<2x4xf32>
    %24 = vector.multi_reduction <maximumf>, %23, %cst_17 [2] : vector<2x4x8xf32> to vector<2x4xf32>
    %25 = vector.shape_cast %24 : vector<2x4xf32> to vector<2x4x1xf32>
    %26 = vector.broadcast %25 : vector<2x4x1xf32> to vector<2x4x8xf32>
    %27 = arith.subf %23, %26 : vector<2x4x8xf32>
    %28 = math.exp %27 : vector<2x4x8xf32>
    %cst_18 = arith.constant dense<0.000000e+00> : vector<2x4xf32>
    %29 = vector.multi_reduction <add>, %28, %cst_18 [2] : vector<2x4x8xf32> to vector<2x4xf32>
    %30 = vector.shape_cast %29 : vector<2x4xf32> to vector<2x4x1xf32>
    %31 = tpu.reciprocal %30 {approx = true} : vector<2x4x1xf32> -> vector<2x4x1xf32>
    %32 = vector.broadcast %31 : vector<2x4x1xf32> to vector<2x4x8xf32>
    %33 = arith.mulf %28, %32 : vector<2x4x8xf32>
    %34 = math.log %30 : vector<2x4x1xf32>
    %35 = vector.broadcast %34 : vector<2x4x1xf32> to vector<2x4x8xf32>
    %36 = arith.subf %27, %35 : vector<2x4x8xf32>
    %37 = vector.shape_cast %33 : vector<2x4x8xf32> to vector<2x32xf32>
    %38 = vector.shape_cast %36 : vector<2x4x8xf32> to vector<2x32xf32>
    %cst_19 = arith.constant 0.000000e+00 : f32
    %39 = vector.broadcast %cst_19 : f32 to vector<2x64xf32>
    %40 = tpu.concatenate %37, %38, %39 in 1 : vector<2x32xf32>, vector<2x32xf32>, vector<2x64xf32> -> vector<2x128xf32>
    %c0_20 = arith.constant 0 : index
    %c0_21 = arith.constant 0 : index
    %41 = vector.load %arg8[%c0_20, %c0_21] : memref<2x128xf32, #tpu.memory_space<vmem>>, vector<2x128xf32>
    tpu.vector_store %arg8[%c0_20, %c0_21], %40 {strides = array<i32>} : memref<2x128xf32, #tpu.memory_space<vmem>>, vector<2x128xf32>,
    return
  }
  func.func @transform_0(%arg0: i32) -> (i32, i32) {
    %c0_i32 = arith.constant 0 : i32
    %c0_i32_0 = arith.constant 0 : i32
    %c0_i32_1 = arith.constant 0 : i32
    return %c0_i32, %c0_i32_0 : i32, i32
  }
  func.func @transform_1(%arg0: i32) -> (i32, i32) {
    %c0_i32 = arith.constant 0 : i32
    %c0_i32_0 = arith.constant 0 : i32
    %c0_i32_1 = arith.constant 0 : i32
    return %c0_i32, %c0_i32_0 : i32, i32
  }
  func.func @transform_2(%arg0: i32) -> (i32, i32) {
    %c0_i32 = arith.constant 0 : i32
    %c0_i32_0 = arith.constant 0 : i32
    %c0_i32_1 = arith.constant 0 : i32
    return %c0_i32, %c0_i32_0 : i32, i32
  }
  func.func @transform_3(%arg0: i32) -> (i32, i32) {
    %c0_i32 = arith.constant 0 : i32
    %c0_i32_0 = arith.constant 0 : i32
    %c0_i32_1 = arith.constant 0 : i32
    return %c0_i32, %c0_i32_0 : i32, i32
  }
  func.func @transform_4(%arg0: i32) -> (i32, i32) {
    %c0_i32 = arith.constant 0 : i32
    %c0_i32_0 = arith.constant 0 : i32
    %c0_i32_1 = arith.constant 0 : i32
    return %c0_i32, %c0_i32_0 : i32, i32
  }
  func.func @transform_5(%arg0: i32) -> (i32, i32) {
    %c0_i32 = arith.constant 0 : i32
    %c0_i32_0 = arith.constant 0 : i32
    %c0_i32_1 = arith.constant 0 : i32
    return %c0_i32, %c0_i32_0 : i32, i32
  }
  func.func @transform_6(%arg0: i32) -> (i32, i32) {
    %c0_i32 = arith.constant 0 : i32
    %c0_i32_0 = arith.constant 0 : i32
    %c0_i32_1 = arith.constant 0 : i32
    return %c0_i32, %c0_i32_0 : i32, i32
  }
  func.func @transform_7(%arg0: i32) -> (i32, i32) {
    %c0_i32 = arith.constant 0 : i32
    %c0_i32_0 = arith.constant 0 : i32
    %c0_i32_1 = arith.constant 0 : i32
    return %c0_i32, %c0_i32_0 : i32, i32
  }
}

</mosaic_0001>

<llo_original>
// kernel: softmax_actor_forward.1
$region0: #{softmax_actor_forward.1}
  #allocation0 [shape = 'u32[]', space=smem, size = 0x4, offset = 0x4, fixed_abs, tag = 'smem constant byte address 0x4 - core index']
  #allocation1 [shape = 'u32[144,128]{1,0:T(1,128)}', space=vmem, size = 0x12000, scoped, tag = 'internal scratch']
  %s0 = inlined_call_operand.hbm [shape: f32[2,16], index: 0, kind: input, shape index: {}]
  %s1 = inlined_call_operand.hbm [shape: bf16[16,1024], index: 1, kind: input, shape index: {}]
  %s2 = inlined_call_operand.hbm [shape: f32[1,1024], index: 2, kind: input, shape index: {}]
  %s3 = inlined_call_operand.hbm [shape: bf16[1024,1024], index: 3, kind: input, shape index: {}]
  %s4 = inlined_call_operand.hbm [shape: f32[1,1024], index: 4, kind: input, shape index: {}]
  %s5 = inlined_call_operand.vmem [shape: bf16[1024,32], index: 5, kind: input, shape index: {}]
  %s6 = inlined_call_operand.hbm [shape: f32[1,32], index: 6, kind: input, shape index: {}]
  %s7 = inlined_call_operand.vmem [shape: f32[2,128], index: 7, kind: output, shape index: {}]
  %s8 = sld [smem:[#allocation0]]
  $region62: #{softmax_actor_forward.1} parent=0
    _
  %s10 = ssub.s32 1, %s8
  %s11 = scalar_select 0, %s10, %s8
  $region1: #{softmax_actor_forward.1} parent=0
    #allocation2 [shape = 'u8[1024]{0}', space=vmem, size = 0x400, scoped, tag = 'input window, operand 0, single buffered']
    #allocation3 [shape = 's32[1]{0}', space=sflag, size = 0x4, scoped, tag = 'scoped memory for softmax_actor_forward.1']
    #allocation4 [shape = 'u8[32768]{0}', space=vmem, size = 0x8000, scoped, tag = 'input window, operand 1, single buffered']
    #allocation5 [shape = 's32[1]{0}', space=sflag, size = 0x4, scoped, tag = 'scoped memory for softmax_actor_forward.1']
    #allocation6 [shape = 'u8[4096]{0}', space=vmem, size = 0x1000, scoped, tag = 'input window, operand 2, single buffered']
    #allocation7 [shape = 'u8[2097152]{0}', space=vmem, size = 0x200000, scoped, tag = 'input window, operand 3, single buffered']
    #allocation8 [shape = 's32[1]{0}', space=sflag, size = 0x4, scoped, tag = 'scoped memory for softmax_actor_forward.1']
    #allocation9 [shape = 'u8[4096]{0}', space=vmem, size = 0x1000, scoped, tag = 'input window, operand 4, single buffered']
    #allocation10 [shape = 'u8[512]{0}', space=vmem, size = 0x400, scoped, tag = 'input window, operand 6, single buffered']
    #allocation11 [shape = 's32[1]{0}', space=sflag, size = 0x4, scoped, tag = 'scoped memory for softmax_actor_forward.1']
    %12 = vsyncpa [#allocation3], 0
    %13 = vsyncpa [#allocation5], 0
    %14 = vsyncpa [#allocation8], 0
    %15 = vsyncpa [#allocation11], 0
    // Predicated region
    $region2: #{softmax_actor_forward.1} parent=1 // pred_check
      _
    $region3: #{softmax_actor_forward.1} parent=1 // pred_check_branch
      %17 = sbr.rel (0) target = $region5
    $region4: #{softmax_actor_forward.1} parent=1 // pred_region
      %s19 = ssub.s32 32, 32
      %20 = vsyncadd [#allocation3], %s19
      %s22 = sshll.u32 [#allocation2], 4
      %s23 = int_to_ptr.vmem [resolvable:$true] %s22
      %25 = dma.hbm_to_vmem [thread:$0]  %s0, 32, %s23, [#allocation3]
    $region5: #{softmax_actor_forward.1} parent=1 // pred_fallthru
      _
    // Predicated region
    $region6: #{softmax_actor_forward.1} parent=1 // pred_check
      _
    $region7: #{softmax_actor_forward.1} parent=1 // pred_check_branch
      %27 = sbr.rel (0) target = $region9
    $region8: #{softmax_actor_forward.1} parent=1 // pred_region
      %s29 = ssub.s32 1024, 1024
      %30 = vsyncadd [#allocation5], %s29
      %s31 = sshll.u32 [#allocation4], 4
      %s32 = int_to_ptr.vmem [resolvable:$true] %s31
      %37 = dma.hbm_to_vmem [thread:$0]  %s1, 1024, %s32, [#allocation5], 512, 512, 32
    $region9: #{softmax_actor_forward.1} parent=1 // pred_fallthru
      _
    // Predicated region
    $region10: #{softmax_actor_forward.1} parent=1 // pred_check
      _
    $region11: #{softmax_actor_forward.1} parent=1 // pred_check_branch
      %39 = sbr.rel (0) target = $region13
    $region12: #{softmax_actor_forward.1} parent=1 // pred_region
      %s41 = ssub.s32 128, 128
      %42 = vsyncadd [#allocation5], %s41
      %s44 = sshll.u32 [#allocation6], 4
      %s45 = int_to_ptr.vmem [resolvable:$true] %s44
      %47 = dma.hbm_to_vmem [thread:$0]  %s2, 128, %s45, [#allocation5]
    $region13: #{softmax_actor_forward.1} parent=1 // pred_fallthru
      _
    // Predicated region
    $region14: #{softmax_actor_forward.1} parent=1 // pred_check
      _
    $region15: #{softmax_actor_forward.1} parent=1 // pred_check_branch
      %49 = sbr.rel (0) target = $region17
    $region16: #{softmax_actor_forward.1} parent=1 // pred_region
      %s51 = ssub.s32 65536, 65536
      %52 = vsyncadd [#allocation8], %s51
      %s53 = sshll.u32 [#allocation7], 4
      %s54 = int_to_ptr.vmem [resolvable:$true] %s53
      %59 = dma.hbm_to_vmem [thread:$0]  %s3, 65536, %s54, [#allocation8], 512, 512, 32
    $region17: #{softmax_actor_forward.1} parent=1 // pred_fallthru
      _
    // Predicated region
    $region18: #{softmax_actor_forward.1} parent=1 // pred_check
      _
    $region19: #{softmax_actor_forward.1} parent=1 // pred_check_branch
      %61 = sbr.rel (0) target = $region21
    $region20: #{softmax_actor_forward.1} parent=1 // pred_region
      %s63 = ssub.s32 128, 128
      %64 = vsyncadd [#allocation8], %s63
      %s66 = sshll.u32 [#allocation9], 4
      %s67 = int_to_ptr.vmem [resolvable:$true] %s66
      %69 = dma.hbm_to_vmem [thread:$0]  %s4, 128, %s67, [#allocation8]
    $region21: #{softmax_actor_forward.1} parent=1 // pred_fallthru
      _
    // Predicated region
    $region22: #{softmax_actor_forward.1} parent=1 // pred_check
      _
    $region23: #{softmax_actor_forward.1} parent=1 // pred_check_branch
      %71 = sbr.rel (0) target = $region25
    $region24: #{softmax_actor_forward.1} parent=1 // pred_region
      _
    $region25: #{softmax_actor_forward.1} parent=1 // pred_fallthru
      _
    // Predicated region
    $region26: #{softmax_actor_forward.1} parent=1 // pred_check
      _
    $region27: #{softmax_actor_forward.1} parent=1 // pred_check_branch
      %73 = sbr.rel (0) target = $region29
    $region28: #{softmax_actor_forward.1} parent=1 // pred_region
      %s75 = ssub.s32 16, 16
      %76 = vsyncadd [#allocation11], %s75
      %s78 = sshll.u32 [#allocation10], 4
      %s79 = int_to_ptr.vmem [resolvable:$true] %s78
      %81 = dma.hbm_to_vmem [thread:$0]  %s6, 16, %s79, [#allocation11]
    $region29: #{softmax_actor_forward.1} parent=1 // pred_fallthru
      _
    // Predicated region
    $region30: #{softmax_actor_forward.1} parent=1 // pred_check
      _
    $region31: #{softmax_actor_forward.1} parent=1 // pred_check_branch
      %83 = sbr.rel (0) target = $region33
    $region32: #{softmax_actor_forward.1} parent=1 // pred_region
      %84 = dma.done [#allocation3], 32
    $region33: #{softmax_actor_forward.1} parent=1 // pred_fallthru
      _
    // Predicated region
    $region34: #{softmax_actor_forward.1} parent=1 // pred_check
      _
    $region35: #{softmax_actor_forward.1} parent=1 // pred_check_branch
      %86 = sbr.rel (0) target = $region37
    $region36: #{softmax_actor_forward.1} parent=1 // pred_region
      %87 = dma.done [#allocation5], 1024
    $region37: #{softmax_actor_forward.1} parent=1 // pred_fallthru
      _
    // Predicated region
    $region38: #{softmax_actor_forward.1} parent=1 // pred_check
      _
    $region39: #{softmax_actor_forward.1} parent=1 // pred_check_branch
      %89 = sbr.rel (0) target = $region41
    $region40: #{softmax_actor_forward.1} parent=1 // pred_region
      %90 = dma.done [#allocation5], 128
    $region41: #{softmax_actor_forward.1} parent=1 // pred_fallthru
      _
    // Predicated region
    $region42: #{softmax_actor_forward.1} parent=1 // pred_check
      _
    $region43: #{softmax_actor_forward.1} parent=1 // pred_check_branch
      %92 = sbr.rel (0) target = $region45
    $region44: #{softmax_actor_forward.1} parent=1 // pred_region
      %93 = dma.done [#allocation8], 65536
    $region45: #{softmax_actor_forward.1} parent=1 // pred_fallthru
      _
    // Predicated region
    $region46: #{softmax_actor_forward.1} parent=1 // pred_check
      _
    $region47: #{softmax_actor_forward.1} parent=1 // pred_check_branch
      %95 = sbr.rel (0) target = $region49
    $region48: #{softmax_actor_forward.1} parent=1 // pred_region
      %96 = dma.done [#allocation8], 128
    $region49: #{softmax_actor_forward.1} parent=1 // pred_fallthru
      _
    // Predicated region
    $region50: #{softmax_actor_forward.1} parent=1 // pred_check
      _
    $region51: #{softmax_actor_forward.1} parent=1 // pred_check_branch
      %98 = sbr.rel (0) target = $region53
    $region52: #{softmax_actor_forward.1} parent=1 // pred_region
      %99 = dma.done [#allocation11], 16
    $region53: #{softmax_actor_forward.1} parent=1 // pred_fallthru
      _
    %v101 = vld [vmem:[#allocation2] sm:$0x3]
    %v102 = vpack.c.bf16 %v101, %v101
    %v103 = vld [vmem:[#allocation4] sm:$0xff]
    %v104 = vld [vmem:[#allocation4 + $0x8] sm:$0xff]
    %v105 = vld [vmem:[#allocation4 + $0x10] sm:$0xff]
    %v106 = vld [vmem:[#allocation4 + $0x18] sm:$0xff]
    %v107 = vld [vmem:[#allocation4 + $0x20] sm:$0xff]
    %v108 = vld [vmem:[#allocation4 + $0x28] sm:$0xff]
    %v109 = vld [vmem:[#allocation4 + $0x30] sm:$0xff]
    %v110 = vld [vmem:[#allocation4 + $0x38] sm:$0xff]
    %v111 = vld [vmem:[#allocation6] sm:$0xff]
    %v113 = vlaneseq
    %v114 = vshrl.u32 %v113, 7
    %v115 = vsub.s32 0, %v114
    %v116 = vrot.slane %v111, %v115
    %v117 = vlaneseq
    %v118 = vshrl.u32 %v117, 7
    %v119 = vsub.s32 1, %v118
    %v120 = vrot.slane %v111, %v119
    %v121 = vlaneseq
    %v122 = vshrl.u32 %v121, 7
    %v123 = vsub.s32 2, %v122
    %v124 = vrot.slane %v111, %v123
    %v125 = vlaneseq
    %v126 = vshrl.u32 %v125, 7
    %v127 = vsub.s32 3, %v126
    %v128 = vrot.slane %v111, %v127
    %v129 = vlaneseq
    %v130 = vshrl.u32 %v129, 7
    %v131 = vsub.s32 4, %v130
    %v132 = vrot.slane %v111, %v131
    %v133 = vlaneseq
    %v134 = vshrl.u32 %v133, 7
    %v135 = vsub.s32 5, %v134
    %v136 = vrot.slane %v111, %v135
    %v137 = vlaneseq
    %v138 = vshrl.u32 %v137, 7
    %v139 = vsub.s32 6, %v138
    %v140 = vrot.slane %v111, %v139
    %v141 = vlaneseq
    %v142 = vshrl.u32 %v141, 7
    %v143 = vsub.s32 7, %v142
    %v144 = vrot.slane %v111, %v143
    %v161 = vunpack.c.l.b16 %v103
    %v162 = vunpack.c.h.b16 %v103
    %v163 = vunpack.c.l.b16 %v104
    %v164 = vunpack.c.h.b16 %v104
    %v165 = vunpack.c.l.b16 %v105
    %v166 = vunpack.c.h.b16 %v105
    %v167 = vunpack.c.l.b16 %v106
    %v168 = vunpack.c.h.b16 %v106
    %v169 = vunpack.c.l.b16 %v107
    %v170 = vunpack.c.h.b16 %v107
    %v171 = vunpack.c.l.b16 %v108
    %v172 = vunpack.c.h.b16 %v108
    %v173 = vunpack.c.l.b16 %v109
    %v174 = vunpack.c.h.b16 %v109
    %v175 = vunpack.c.l.b16 %v110
    %v176 = vunpack.c.h.b16 %v110
    %v177 = vpack.c.b16 %v169, %v161
    %v178 = vpack.c.b16 %v170, %v162
    %v179 = vpack.c.b16 %v171, %v163
    %v180 = vpack.c.b16 %v172, %v164
    %v181 = vpack.c.b16 %v173, %v165
    %v182 = vpack.c.b16 %v174, %v166
    %v183 = vpack.c.b16 %v175, %v167
    %v184 = vpack.c.b16 %v176, %v168
    %vm193 = vcmask 130048
    %v195 = vsel %vm193, %v102, 0
    %197 = vmatprep.subr.bf16.mxu0 0
    %198 = vmatpush1.bf16.msra.mxu0 0
    %199 = vmatprep.subr.bf16.mxu0 0
    %200 = vmatpush1.bf16.msra.mxu0 0
    %201 = vmatprep.subr.bf16.mxu0 0
    %202 = vmatpush1.bf16.msra.mxu0 0
    %203 = vmatprep.subr.bf16.mxu0 0
    %204 = vmatpush1.bf16.msra.mxu0 0
    %205 = vmatprep.subr.bf16.mxu0 0
    %206 = vmatpush1.bf16.msra.mxu0 0
    %207 = vmatprep.subr.bf16.mxu0 0
    %208 = vmatpush1.bf16.msra.mxu0 0
    %209 = vmatprep.subr.bf16.mxu0 0
    %210 = vmatpush1.bf16.msra.mxu0 0
    %211 = vmatprep.subr.bf16.mxu0 %v178
    %212 = vmatpush1.bf16.msra.mxu0 %v177
    %213 = vmatprep.subr.bf16.mxu0 0
    %214 = vmatpush2.bf16.msra.mxu0 0
    %215 = vmatprep.subr.bf16.mxu0 0
    %216 = vmatpush2.bf16.msra.mxu0 0
    %217 = vmatprep.subr.bf16.mxu0 0
    %218 = vmatpush2.bf16.msra.mxu0 0
    %219 = vmatprep.subr.bf16.mxu0 0
    %220 = vmatpush2.bf16.msra.mxu0 0
    %221 = vmatprep.subr.bf16.mxu0 0
    %222 = vmatpush2.bf16.msra.mxu0 0
    %223 = vmatprep.subr.bf16.mxu0 0
    %224 = vmatpush2.bf16.msra.mxu0 0
    %225 = vmatprep.subr.bf16.mxu0 0
    %226 = vmatpush2.bf16.msra.mxu0 0
    %227 = vmatprep.subr.bf16.mxu0 0
    %228 = vmatpush2.bf16.msra.mxu0 0
    %229 = vmatprep.mubr.bf16.mxu0 0
    %230 = vmatmul.mubr.bf16.gmra.mxu0 %v195
    %v231 = vpop.f32.mrf.mxu0
    %v232 = vadd.f32 %v116, %v231
    %v233 = vpop.f32.mrf.mxu0
    %v234 = vadd.f32 %v120, %v233
    %v235 = vpop.f32.mrf.mxu0
    %v236 = vpop.f32.mrf.mxu0
    %237 = vdwg.mxu0
    %238 = vmatprep.subr.bf16.mxu0 0
    %239 = vmatpush1.bf16.msra.mxu0 0
    %240 = vmatprep.subr.bf16.mxu0 0
    %241 = vmatpush1.bf16.msra.mxu0 0
    %242 = vmatprep.subr.bf16.mxu0 0
    %243 = vmatpush1.bf16.msra.mxu0 0
    %244 = vmatprep.subr.bf16.mxu0 0
    %245 = vmatpush1.bf16.msra.mxu0 0
    %246 = vmatprep.subr.bf16.mxu0 0
    %247 = vmatpush1.bf16.msra.mxu0 0
    %248 = vmatprep.subr.bf16.mxu0 0
    %249 = vmatpush1.bf16.msra.mxu0 0
    %250 = vmatprep.subr.bf16.mxu0 0
    %251 = vmatpush1.bf16.msra.mxu0 0
    %252 = vmatprep.subr.bf16.mxu0 %v180
    %253 = vmatpush1.bf16.msra.mxu0 %v179
    %254 = vmatprep.subr.bf16.mxu0 0
    %255 = vmatpush2.bf16.msra.mxu0 0
    %256 = vmatprep.subr.bf16.mxu0 0
    %257 = vmatpush2.bf16.msra.mxu0 0
    %258 = vmatprep.subr.bf16.mxu0 0
    %259 = vmatpush2.bf16.msra.mxu0 0
    %260 = vmatprep.subr.bf16.mxu0 0
    %261 = vmatpush2.bf16.msra.mxu0 0
    %262 = vmatprep.subr.bf16.mxu0 0
    %263 = vmatpush2.bf16.msra.mxu0 0
    %264 = vmatprep.subr.bf16.mxu0 0
    %265 = vmatpush2.bf16.msra.mxu0 0
    %266 = vmatprep.subr.bf16.mxu0 0
    %267 = vmatpush2.bf16.msra.mxu0 0
    %268 = vmatprep.subr.bf16.mxu0 0
    %269 = vmatpush2.bf16.msra.mxu0 0
    %270 = vmatprep.mubr.bf16.mxu0 0
    %271 = vmatmul.mubr.bf16.gmra.mxu0 %v195
    %v272 = vpop.f32.mrf.mxu0
    %v273 = vadd.f32 %v124, %v272
    %v274 = vpop.f32.mrf.mxu0
    %v275 = vadd.f32 %v128, %v274
    %v276 = vpop.f32.mrf.mxu0
    %v277 = vpop.f32.mrf.mxu0
    %278 = vdwg.mxu0
    %279 = vmatprep.subr.bf16.mxu0 0
    %280 = vmatpush1.bf16.msra.mxu0 0
    %281 = vmatprep.subr.bf16.mxu0 0
    %282 = vmatpush1.bf16.msra.mxu0 0
    %283 = vmatprep.subr.bf16.mxu0 0
    %284 = vmatpush1.bf16.msra.mxu0 0
    %285 = vmatprep.subr.bf16.mxu0 0
    %286 = vmatpush1.bf16.msra.mxu0 0
    %287 = vmatprep.subr.bf16.mxu0 0
    %288 = vmatpush1.bf16.msra.mxu0 0
    %289 = vmatprep.subr.bf16.mxu0 0
    %290 = vmatpush1.bf16.msra.mxu0 0
    %291 = vmatprep.subr.bf16.mxu0 0
    %292 = vmatpush1.bf16.msra.mxu0 0
    %293 = vmatprep.subr.bf16.mxu0 %v182
    %294 = vmatpush1.bf16.msra.mxu0 %v181
    %295 = vmatprep.subr.bf16.mxu0 0
    %296 = vmatpush2.bf16.msra.mxu0 0
    %297 = vmatprep.subr.bf16.mxu0 0
    %298 = vmatpush2.bf16.msra.mxu0 0
    %299 = vmatprep.subr.bf16.mxu0 0
    %300 = vmatpush2.bf16.msra.mxu0 0
    %301 = vmatprep.subr.bf16.mxu0 0
    %302 = vmatpush2.bf16.msra.mxu0 0
    %303 = vmatprep.subr.bf16.mxu0 0
    %304 = vmatpush2.bf16.msra.mxu0 0
    %305 = vmatprep.subr.bf16.mxu0 0
    %306 = vmatpush2.bf16.msra.mxu0 0
    %307 = vmatprep.subr.bf16.mxu0 0
    %308 = vmatpush2.bf16.msra.mxu0 0
    %309 = vmatprep.subr.bf16.mxu0 0
    %310 = vmatpush2.bf16.msra.mxu0 0
    %311 = vmatprep.mubr.bf16.mxu0 0
    %312 = vmatmul.mubr.bf16.gmra.mxu0 %v195
    %v313 = vpop.f32.mrf.mxu0
    %v314 = vadd.f32 %v132, %v313
    %v315 = vpop.f32.mrf.mxu0
    %v316 = vadd.f32 %v136, %v315
    %v317 = vpop.f32.mrf.mxu0
    %v318 = vpop.f32.mrf.mxu0
    %319 = vdwg.mxu0
    %320 = vmatprep.subr.bf16.mxu0 0
    %321 = vmatpush1.bf16.msra.mxu0 0
    %322 = vmatprep.subr.bf16.mxu0 0
    %323 = vmatpush1.bf16.msra.mxu0 0
    %324 = vmatprep.subr.bf16.mxu0 0
    %325 = vmatpush1.bf16.msra.mxu0 0
    %326 = vmatprep.subr.bf16.mxu0 0
    %327 = vmatpush1.bf16.msra.mxu0 0
    %328 = vmatprep.subr.bf16.mxu0 0
    %329 = vmatpush1.bf16.msra.mxu0 0
    %330 = vmatprep.subr.bf16.mxu0 0
    %331 = vmatpush1.bf16.msra.mxu0 0
    %332 = vmatprep.subr.bf16.mxu0 0
    %333 = vmatpush1.bf16.msra.mxu0 0
    %334 = vmatprep.subr.bf16.mxu0 %v184
    %335 = vmatpush1.bf16.msra.mxu0 %v183
    %336 = vmatprep.subr.bf16.mxu0 0
    %337 = vmatpush2.bf16.msra.mxu0 0
    %338 = vmatprep.subr.bf16.mxu0 0
    %339 = vmatpush2.bf16.msra.mxu0 0
    %340 = vmatprep.subr.bf16.mxu0 0
    %341 = vmatpush2.bf16.msra.mxu0 0
    %342 = vmatprep.subr.bf16.mxu0 0
    %343 = vmatpush2.bf16.msra.mxu0 0
    %344 = vmatprep.subr.bf16.mxu0 0
    %345 = vmatpush2.bf16.msra.mxu0 0
    %346 = vmatprep.subr.bf16.mxu0 0
    %347 = vmatpush2.bf16.msra.mxu0 0
    %348 = vmatprep.subr.bf16.mxu0 0
    %349 = vmatpush2.bf16.msra.mxu0 0
    %350 = vmatprep.subr.bf16.mxu0 0
    %351 = vmatpush2.bf16.msra.mxu0 0
    %352 = vmatprep.mubr.bf16.mxu0 0
    %353 = vmatmul.mubr.bf16.gmra.mxu0 %v195
    %v354 = vpop.f32.mrf.mxu0
    %v355 = vadd.f32 %v140, %v354
    %v356 = vpop.f32.mrf.mxu0
    %v357 = vadd.f32 %v144, %v356
    %v358 = vpop.f32.mrf.mxu0
    %v359 = vpop.f32.mrf.mxu0
    %360 = vdwg.mxu0
    %v361 = vmax.f32 %v232, 0.0
    %v362 = vmax.f32 %v234, 0.0
    %v363 = vmax.f32 %v273, 0.0
    %v364 = vmax.f32 %v275, 0.0
    %v365 = vmax.f32 %v314, 0.0
    %v366 = vmax.f32 %v316, 0.0
    %v367 = vmax.f32 %v355, 0.0
    %v368 = vmax.f32 %v357, 0.0
    %v369 = vpack.c.bf16 %v361, %v361
    %v370 = vpack.c.bf16 %v362, %v362
    %v371 = vpack.c.bf16 %v363, %v363
    %v372 = vpack.c.bf16 %v364, %v364
    %v373 = vpack.c.bf16 %v365, %v365
    %v374 = vpack.c.bf16 %v366, %v366
    %v375 = vpack.c.bf16 %v367, %v367
    %v376 = vpack.c.bf16 %v368, %v368
    %v377 = vld [vmem:[#allocation7] sm:$0xff]
    %v378 = vld [vmem:[#allocation7 + $0x8] sm:$0xff]
    %v379 = vld [vmem:[#allocation7 + $0x10] sm:$0xff]
    %v380 = vld [vmem:[#allocation7 + $0x18] sm:$0xff]
    %v381 = vld [vmem:[#allocation7 + $0x20] sm:$0xff]
    %v382 = vld [vmem:[#allocation7 + $0x28] sm:$0xff]
    %v383 = vld [vmem:[#allocation7 + $0x30] sm:$0xff]
    %v384 = vld [vmem:[#allocation7 + $0x38] sm:$0xff]
    %v385 = vld [vmem:[#allocation7 + $0x40] sm:$0xff]
    %v386 = vld [vmem:[#allocation7 + $0x48] sm:$0xff]
    %v387 = vld [vmem:[#allocation7 + $0x50] sm:$0xff]
    %v388 = vld [vmem:[#allocation7 + $0x58] sm:$0xff]
    %v389 = vld [vmem:[#allocation7 + $0x60] sm:$0xff]
    %v390 = vld [vmem:[#allocation7 + $0x68] sm:$0xff]
    %v391 = vld [vmem:[#allocation7 + $0x70] sm:$0xff]
    %v392 = vld [vmem:[#allocation7 + $0x78] sm:$0xff]
    %v393 = vld [vmem:[#allocation7 + $0x80] sm:$0xff]
    %v394 = vld [vmem:[#allocation7 + $0x88] sm:$0xff]
    %v395 = vld [vmem:[#allocation7 + $0x90] sm:$0xff]
    %v396 = vld [vmem:[#allocation7 + $0x98] sm:$0xff]
    %v397 = vld [vmem:[#allocation7 + $0xa0] sm:$0xff]
    %v398 = vld [vmem:[#allocation7 + $0xa8] sm:$0xff]
    %v399 = vld [vmem:[#allocation7 + $0xb0] sm:$0xff]
    %v400 = vld [vmem:[#allocation7 + $0xb8] sm:$0xff]
    %v401 = vld [vmem:[#allocation7 + $0xc0] sm:$0xff]
    %v402 = vld [vmem:[#allocation7 + $0xc8] sm:$0xff]
    %v403 = vld [vmem:[#allocation7 + $0xd0] sm:$0xff]
    %v404 = vld [vmem:[#allocation7 + $0xd8] sm:$0xff]
    %v405 = vld [vmem:[#allocation7 + $0xe0] sm:$0xff]
    %v406 = vld [vmem:[#allocation7 + $0xe8] sm:$0xff]
    %v407 = vld [vmem:[#allocation7 + $0xf0] sm:$0xff]
    %v408 = vld [vmem:[#allocation7 + $0xf8] sm:$0xff]
    %v409 = vld [vmem:[#allocation7 + $0x100] sm:$0xff]
    %v410 = vld [vmem:[#allocation7 + $0x108] sm:$0xff]
    %v411 = vld [vmem:[#allocation7 + $0x110] sm:$0xff]
    %v412 = vld [vmem:[#allocation7 + $0x118] sm:$0xff]
    %v413 = vld [vmem:[#allocation7 + $0x120] sm:$0xff]
    %v414 = vld [vmem:[#allocation7 + $0x128] sm:$0xff]
    %v415 = vld [vmem:[#allocation7 + $0x130] sm:$0xff]
    %v416 = vld [vmem:[#allocation7 + $0x138] sm:$0xff]
    %v417 = vld [vmem:[#allocation7 + $0x140] sm:$0xff]
    %v418 = vld [vmem:[#allocation7 + $0x148] sm:$0xff]
    %v419 = vld [vmem:[#allocation7 + $0x150] sm:$0xff]
    %v420 = vld [vmem:[#allocation7 + $0x158] sm:$0xff]
    %v421 = vld [vmem:[#allocation7 + $0x160] sm:$0xff]
    %v422 = vld [vmem:[#allocation7 + $0x168] sm:$0xff]
    %v423 = vld [vmem:[#allocation7 + $0x170] sm:$0xff]
    %v424 = vld [vmem:[#allocation7 + $0x178] sm:$0xff]
    %v425 = vld [vmem:[#allocation7 + $0x180] sm:$0xff]
    %v426 = vld [vmem:[#allocation7 + $0x188] sm:$0xff]
    %v427 = vld [vmem:[#allocation7 + $0x190] sm:$0xff]
    %v428 = vld [vmem:[#allocation7 + $0x198] sm:$0xff]
    %v429 = vld [vmem:[#allocation7 + $0x1a0] sm:$0xff]
    %v430 = vld [vmem:[#allocation7 + $0x1a8] sm:$0xff]
    %v431 = vld [vmem:[#allocation7 + $0x1b0] sm:$0xff]
    %v432 = vld [vmem:[#allocation7 + $0x1b8] sm:$0xff]
    %v433 = vld [vmem:[#allocation7 + $0x1c0] sm:$0xff]
    %v434 = vld [vmem:[#allocation7 + $0x1c8] sm:$0xff]
    %v435 = vld [vmem:[#allocation7 + $0x1d0] sm:$0xff]
    %v436 = vld [vmem:[#allocation7 + $0x1d8] sm:$0xff]
    %v437 = vld [vmem:[#allocation7 + $0x1e0] sm:$0xff]
    %v438 = vld [vmem:[#allocation7 + $0x1e8] sm:$0xff]
    %v439 = vld [vmem:[#allocation7 + $0x1f0] sm:$0xff]
    %v440 = vld [vmem:[#allocation7 + $0x1f8] sm:$0xff]
    %v441 = vld [vmem:[#allocation7 + $0x200] sm:$0xff]
    %v442 = vld [vmem:[#allocation7 + $0x208] sm:$0xff]
    %v443 = vld [vmem:[#allocation7 + $0x210] sm:$0xff]
    %v444 = vld [vmem:[#allocation7 + $0x218] sm:$0xff]
    %v445 = vld [vmem:[#allocation7 + $0x220] sm:$0xff]
    %v446 = vld [vmem:[#allocation7 + $0x228] sm:$0xff]
    %v447 = vld [vmem:[#allocation7 + $0x230] sm:$0xff]
    %v448 = vld [vmem:[#allocation7 + $0x238] sm:$0xff]
    %v449 = vld [vmem:[#allocation7 + $0x240] sm:$0xff]
    %v450 = vld [vmem:[#allocation7 + $0x248] sm:$0xff]
    %v451 = vld [vmem:[#allocation7 + $0x250] sm:$0xff]
    %v452 = vld [vmem:[#allocation7 + $0x258] sm:$0xff]
    %v453 = vld [vmem:[#allocation7 + $0x260] sm:$0xff]
    %v454 = vld [vmem:[#allocation7 + $0x268] sm:$0xff]
    %v455 = vld [vmem:[#allocation7 + $0x270] sm:$0xff]
    %v456 = vld [vmem:[#allocation7 + $0x278] sm:$0xff]
    %v457 = vld [vmem:[#allocation7 + $0x280] sm:$0xff]
    %v458 = vld [vmem:[#allocation7 + $0x288] sm:$0xff]
    %v459 = vld [vmem:[#allocation7 + $0x290] sm:$0xff]
    %v460 = vld [vmem:[#allocation7 + $0x298] sm:$0xff]
    %v461 = vld [vmem:[#allocation7 + $0x2a0] sm:$0xff]
    %v462 = vld [vmem:[#allocation7 + $0x2a8] sm:$0xff]
    %v463 = vld [vmem:[#allocation7 + $0x2b0] sm:$0xff]
    %v464 = vld [vmem:[#allocation7 + $0x2b8] sm:$0xff]
    %v465 = vld [vmem:[#allocation7 + $0x2c0] sm:$0xff]
    %v466 = vld [vmem:[#allocation7 + $0x2c8] sm:$0xff]
    %v467 = vld [vmem:[#allocation7 + $0x2d0] sm:$0xff]
    %v468 = vld [vmem:[#allocation7 + $0x2d8] sm:$0xff]
    %v469 = vld [vmem:[#allocation7 + $0x2e0] sm:$0xff]
    %v470 = vld [vmem:[#allocation7 + $0x2e8] sm:$0xff]
    %v471 = vld [vmem:[#allocation7 + $0x2f0] sm:$0xff]
    %v472 = vld [vmem:[#allocation7 + $0x2f8] sm:$0xff]
    %v473 = vld [vmem:[#allocation7 + $0x300] sm:$0xff]
    %v474 = vld [vmem:[#allocation7 + $0x308] sm:$0xff]
    %v475 = vld [vmem:[#allocation7 + $0x310] sm:$0xff]
    %v476 = vld [vmem:[#allocation7 + $0x318] sm:$0xff]
    %v477 = vld [vmem:[#allocation7 + $0x320] sm:$0xff]
    %v478 = vld [vmem:[#allocation7 + $0x328] sm:$0xff]
    %v479 = vld [vmem:[#allocation7 + $0x330] sm:$0xff]
    %v480 = vld [vmem:[#allocation7 + $0x338] sm:$0xff]
    %v481 = vld [vmem:[#allocation7 + $0x340] sm:$0xff]
    %v482 = vld [vmem:[#allocation7 + $0x348] sm:$0xff]
    %v483 = vld [vmem:[#allocation7 + $0x350] sm:$0xff]
    %v484 = vld [vmem:[#allocation7 + $0x358] sm:$0xff]
    %v485 = vld [vmem:[#allocation7 + $0x360] sm:$0xff]
    %v486 = vld [vmem:[#allocation7 + $0x368] sm:$0xff]
    %v487 = vld [vmem:[#allocation7 + $0x370] sm:$0xff]
    %v488 = vld [vmem:[#allocation7 + $0x378] sm:$0xff]
    %v489 = vld [vmem:[#allocation7 + $0x380] sm:$0xff]
    %v490 = vld [vmem:[#allocation7 + $0x388] sm:$0xff]
    %v491 = vld [vmem:[#allocation7 + $0x390] sm:$0xff]
    %v492 = vld [vmem:[#allocation7 + $0x398] sm:$0xff]
    %v493 = vld [vmem:[#allocation7 + $0x3a0] sm:$0xff]
    %v494 = vld [vmem:[#allocation7 + $0x3a8] sm:$0xff]
    %v495 = vld [vmem:[#allocation7 + $0x3b0] sm:$0xff]
    %v496 = vld [vmem:[#allocation7 + $0x3b8] sm:$0xff]
    %v497 = vld [vmem:[#allocation7 + $0x3c0] sm:$0xff]
    %v498 = vld [vmem:[#allocation7 + $0x3c8] sm:$0xff]
    %v499 = vld [vmem:[#allocation7 + $0x3d0] sm:$0xff]
    %v500 = vld [vmem:[#allocation7 + $0x3d8] sm:$0xff]
    %v501 = vld [vmem:[#allocation7 + $0x3e0] sm:$0xff]
    %v502 = vld [vmem:[#allocation7 + $0x3e8] sm:$0xff]
    %v503 = vld [vmem:[#allocation7 + $0x3f0] sm:$0xff]
    %v504 = vld [vmem:[#allocation7 + $0x3f8] sm:$0xff]
    %v505 = vld [vmem:[#allocation7 + $0x400] sm:$0xff]
    %v506 = vld [vmem:[#allocation7 + $0x408] sm:$0xff]
    %v507 = vld [vmem:[#allocation7 + $0x410] sm:$0xff]
    %v508 = vld [vmem:[#allocation7 + $0x418] sm:$0xff]
    %v509 = vld [vmem:[#allocation7 + $0x420] sm:$0xff]
    %v510 = vld [vmem:[#allocation7 + $0x428] sm:$0xff]
    %v511 = vld [vmem:[#allocation7 + $0x430] sm:$0xff]
    %v512 = vld [vmem:[#allocation7 + $0x438] sm:$0xff]
    %v513 = vld [vmem:[#allocation7 + $0x440] sm:$0xff]
    %v514 = vld [vmem:[#allocation7 + $0x448] sm:$0xff]
    %v515 = vld [vmem:[#allocation7 + $0x450] sm:$0xff]
    %v516 = vld [vmem:[#allocation7 + $0x458] sm:$0xff]
    %v517 = vld [vmem:[#allocation7 + $0x460] sm:$0xff]
    %v518 = vld [vmem:[#allocation7 + $0x468] sm:$0xff]
    %v519 = vld [vmem:[#allocation7 + $0x470] sm:$0xff]
    %v520 = vld [vmem:[#allocation7 + $0x478] sm:$0xff]
    %v521 = vld [vmem:[#allocation7 + $0x480] sm:$0xff]
    %v522 = vld [vmem:[#allocation7 + $0x488] sm:$0xff]
    %v523 = vld [vmem:[#allocation7 + $0x490] sm:$0xff]
    %v524 = vld [vmem:[#allocation7 + $0x498] sm:$0xff]
    %v525 = vld [vmem:[#allocation7 + $0x4a0] sm:$0xff]
    %v526 = vld [vmem:[#allocation7 + $0x4a8] sm:$0xff]
    %v527 = vld [vmem:[#allocation7 + $0x4b0] sm:$0xff]
    %v528 = vld [vmem:[#allocation7 + $0x4b8] sm:$0xff]
    %v529 = vld [vmem:[#allocation7 + $0x4c0] sm:$0xff]
    %v530 = vld [vmem:[#allocation7 + $0x4c8] sm:$0xff]
    %v531 = vld [vmem:[#allocation7 + $0x4d0] sm:$0xff]
    %v532 = vld [vmem:[#allocation7 + $0x4d8] sm:$0xff]
    %v533 = vld [vmem:[#allocation7 + $0x4e0] sm:$0xff]
    %v534 = vld [vmem:[#allocation7 + $0x4e8] sm:$0xff]
    %v535 = vld [vmem:[#allocation7 + $0x4f0] sm:$0xff]
    %v536 = vld [vmem:[#allocation7 + $0x4f8] sm:$0xff]
    %v537 = vld [vmem:[#allocation7 + $0x500] sm:$0xff]
    %v538 = vld [vmem:[#allocation7 + $0x508] sm:$0xff]
    %v539 = vld [vmem:[#allocation7 + $0x510] sm:$0xff]
    %v540 = vld [vmem:[#allocation7 + $0x518] sm:$0xff]
    %v541 = vld [vmem:[#allocation7 + $0x520] sm:$0xff]
    %v542 = vld [vmem:[#allocation7 + $0x528] sm:$0xff]
    %v543 = vld [vmem:[#allocation7 + $0x530] sm:$0xff]
    %v544 = vld [vmem:[#allocation7 + $0x538] sm:$0xff]
    %v545 = vld [vmem:[#allocation7 + $0x540] sm:$0xff]
    %v546 = vld [vmem:[#allocation7 + $0x548] sm:$0xff]
    %v547 = vld [vmem:[#allocation7 + $0x550] sm:$0xff]
    %v548 = vld [vmem:[#allocation7 + $0x558] sm:$0xff]
    %v549 = vld [vmem:[#allocation7 + $0x560] sm:$0xff]
    %v550 = vld [vmem:[#allocation7 + $0x568] sm:$0xff]
    %v551 = vld [vmem:[#allocation7 + $0x570] sm:$0xff]
    %v552 = vld [vmem:[#allocation7 + $0x578] sm:$0xff]
    %v553 = vld [vmem:[#allocation7 + $0x580] sm:$0xff]
    %v554 = vld [vmem:[#allocation7 + $0x588] sm:$0xff]
    %v555 = vld [vmem:[#allocation7 + $0x590] sm:$0xff]
    %v556 = vld [vmem:[#allocation7 + $0x598] sm:$0xff]
    %v557 = vld [vmem:[#allocation7 + $0x5a0] sm:$0xff]
    %v558 = vld [vmem:[#allocation7 + $0x5a8] sm:$0xff]
    %v559 = vld [vmem:[#allocation7 + $0x5b0] sm:$0xff]
    %v560 = vld [vmem:[#allocation7 + $0x5b8] sm:$0xff]
    %v561 = vld [vmem:[#allocation7 + $0x5c0] sm:$0xff]
    %v562 = vld [vmem:[#allocation7 + $0x5c8] sm:$0xff]
    %v563 = vld [vmem:[#allocation7 + $0x5d0] sm:$0xff]
    %v564 = vld [vmem:[#allocation7 + $0x5d8] sm:$0xff]
    %v565 = vld [vmem:[#allocation7 + $0x5e0] sm:$0xff]
    %v566 = vld [vmem:[#allocation7 + $0x5e8] sm:$0xff]
    %v567 = vld [vmem:[#allocation7 + $0x5f0] sm:$0xff]
    %v568 = vld [vmem:[#allocation7 + $0x5f8] sm:$0xff]
    %v569 = vld [vmem:[#allocation7 + $0x600] sm:$0xff]
    %v570 = vld [vmem:[#allocation7 + $0x608] sm:$0xff]
    %v571 = vld [vmem:[#allocation7 + $0x610] sm:$0xff]
    %v572 = vld [vmem:[#allocation7 + $0x618] sm:$0xff]
    %v573 = vld [vmem:[#allocation7 + $0x620] sm:$0xff]
    %v574 = vld [vmem:[#allocation7 + $0x628] sm:$0xff]
    %v575 = vld [vmem:[#allocation7 + $0x630] sm:$0xff]
    %v576 = vld [vmem:[#allocation7 + $0x638] sm:$0xff]
    %v577 = vld [vmem:[#allocation7 + $0x640] sm:$0xff]
    %v578 = vld [vmem:[#allocation7 + $0x648] sm:$0xff]
    %v579 = vld [vmem:[#allocation7 + $0x650] sm:$0xff]
    %v580 = vld [vmem:[#allocation7 + $0x658] sm:$0xff]
    %v581 = vld [vmem:[#allocation7 + $0x660] sm:$0xff]
    %v582 = vld [vmem:[#allocation7 + $0x668] sm:$0xff]
    %v583 = vld [vmem:[#allocation7 + $0x670] sm:$0xff]
    %v584 = vld [vmem:[#allocation7 + $0x678] sm:$0xff]
    %v585 = vld [vmem:[#allocation7 + $0x680] sm:$0xff]
    %v586 = vld [vmem:[#allocation7 + $0x688] sm:$0xff]
    %v587 = vld [vmem:[#allocation7 + $0x690] sm:$0xff]
    %v588 = vld [vmem:[#allocation7 + $0x698] sm:$0xff]
    %v589 = vld [vmem:[#allocation7 + $0x6a0] sm:$0xff]
    %v590 = vld [vmem:[#allocation7 + $0x6a8] sm:$0xff]
    %v591 = vld [vmem:[#allocation7 + $0x6b0] sm:$0xff]
    %v592 = vld [vmem:[#allocation7 + $0x6b8] sm:$0xff]
    %v593 = vld [vmem:[#allocation7 + $0x6c0] sm:$0xff]
    %v594 = vld [vmem:[#allocation7 + $0x6c8] sm:$0xff]
    %v595 = vld [vmem:[#allocation7 + $0x6d0] sm:$0xff]
    %v596 = vld [vmem:[#allocation7 + $0x6d8] sm:$0xff]
    %v597 = vld [vmem:[#allocation7 + $0x6e0] sm:$0xff]
    %v598 = vld [vmem:[#allocation7 + $0x6e8] sm:$0xff]
    %v599 = vld [vmem:[#allocation7 + $0x6f0] sm:$0xff]
    %v600 = vld [vmem:[#allocation7 + $0x6f8] sm:$0xff]
    %v601 = vld [vmem:[#allocation7 + $0x700] sm:$0xff]
    %v602 = vld [vmem:[#allocation7 + $0x708] sm:$0xff]
    %v603 = vld [vmem:[#allocation7 + $0x710] sm:$0xff]
    %v604 = vld [vmem:[#allocation7 + $0x718] sm:$0xff]
    %v605 = vld [vmem:[#allocation7 + $0x720] sm:$0xff]
    %v606 = vld [vmem:[#allocation7 + $0x728] sm:$0xff]
    %v607 = vld [vmem:[#allocation7 + $0x730] sm:$0xff]
    %v608 = vld [vmem:[#allocation7 + $0x738] sm:$0xff]
    %v609 = vld [vmem:[#allocation7 + $0x740] sm:$0xff]
    %v610 = vld [vmem:[#allocation7 + $0x748] sm:$0xff]
    %v611 = vld [vmem:[#allocation7 + $0x750] sm:$0xff]
    %v612 = vld [vmem:[#allocation7 + $0x758] sm:$0xff]
    %v613 = vld [vmem:[#allocation7 + $0x760] sm:$0xff]
    %v614 = vld [vmem:[#allocation7 + $0x768] sm:$0xff]
    %v615 = vld [vmem:[#allocation7 + $0x770] sm:$0xff]
    %v616 = vld [vmem:[#allocation7 + $0x778] sm:$0xff]
    %v617 = vld [vmem:[#allocation7 + $0x780] sm:$0xff]
    %v618 = vld [vmem:[#allocation7 + $0x788] sm:$0xff]
    %v619 = vld [vmem:[#allocation7 + $0x790] sm:$0xff]
    %v620 = vld [vmem:[#allocation7 + $0x798] sm:$0xff]
    %v621 = vld [vmem:[#allocation7 + $0x7a0] sm:$0xff]
    %v622 = vld [vmem:[#allocation7 + $0x7a8] sm:$0xff]
    %v623 = vld [vmem:[#allocation7 + $0x7b0] sm:$0xff]
    %v624 = vld [vmem:[#allocation7 + $0x7b8] sm:$0xff]
    %v625 = vld [vmem:[#allocation7 + $0x7c0] sm:$0xff]
    %v626 = vld [vmem:[#allocation7 + $0x7c8] sm:$0xff]
    %v627 = vld [vmem:[#allocation7 + $0x7d0] sm:$0xff]
    %v628 = vld [vmem:[#allocation7 + $0x7d8] sm:$0xff]
    %v629 = vld [vmem:[#allocation7 + $0x7e0] sm:$0xff]
    %v630 = vld [vmem:[#allocation7 + $0x7e8] sm:$0xff]
    %v631 = vld [vmem:[#allocation7 + $0x7f0] sm:$0xff]
    %v632 = vld [vmem:[#allocation7 + $0x7f8] sm:$0xff]
    %v633 = vld [vmem:[#allocation7 + $0x800] sm:$0xff]
    %v634 = vld [vmem:[#allocation7 + $0x808] sm:$0xff]
    %v635 = vld [vmem:[#allocation7 + $0x810] sm:$0xff]
    %v636 = vld [vmem:[#allocation7 + $0x818] sm:$0xff]
    %v637 = vld [vmem:[#allocation7 + $0x820] sm:$0xff]
    %v638 = vld [vmem:[#allocation7 + $0x828] sm:$0xff]
    %v639 = vld [vmem:[#allocation7 + $0x830] sm:$0xff]
    %v640 = vld [vmem:[#allocation7 + $0x838] sm:$0xff]
    %v641 = vld [vmem:[#allocation7 + $0x840] sm:$0xff]
    %v642 = vld [vmem:[#allocation7 + $0x848] sm:$0xff]
    %v643 = vld [vmem:[#allocation7 + $0x850] sm:$0xff]
    %v644 = vld [vmem:[#allocation7 + $0x858] sm:$0xff]
    %v645 = vld [vmem:[#allocation7 + $0x860] sm:$0xff]
    %v646 = vld [vmem:[#allocation7 + $0x868] sm:$0xff]
    %v647 = vld [vmem:[#allocation7 + $0x870] sm:$0xff]
    %v648 = vld [vmem:[#allocation7 + $0x878] sm:$0xff]
    %v649 = vld [vmem:[#allocation7 + $0x880] sm:$0xff]
    %v650 = vld [vmem:[#allocation7 + $0x888] sm:$0xff]
    %v651 = vld [vmem:[#allocation7 + $0x890] sm:$0xff]
    %v652 = vld [vmem:[#allocation7 + $0x898] sm:$0xff]
    %v653 = vld [vmem:[#allocation7 + $0x8a0] sm:$0xff]
    %v654 = vld [vmem:[#allocation7 + $0x8a8] sm:$0xff]
    %v655 = vld [vmem:[#allocation7 + $0x8b0] sm:$0xff]
    %v656 = vld [vmem:[#allocation7 + $0x8b8] sm:$0xff]
    %v657 = vld [vmem:[#allocation7 + $0x8c0] sm:$0xff]
    %v658 = vld [vmem:[#allocation7 + $0x8c8] sm:$0xff]
    %v659 = vld [vmem:[#allocation7 + $0x8d0] sm:$0xff]
    %v660 = vld [vmem:[#allocation7 + $0x8d8] sm:$0xff]
    %v661 = vld [vmem:[#allocation7 + $0x8e0] sm:$0xff]
    %v662 = vld [vmem:[#allocation7 + $0x8e8] sm:$0xff]
    %v663 = vld [vmem:[#allocation7 + $0x8f0] sm:$0xff]
    %v664 = vld [vmem:[#allocation7 + $0x8f8] sm:$0xff]
    %v665 = vld [vmem:[#allocation7 + $0x900] sm:$0xff]
    %v666 = vld [vmem:[#allocation7 + $0x908] sm:$0xff]
    %v667 = vld [vmem:[#allocation7 + $0x910] sm:$0xff]
    %v668 = vld [vmem:[#allocation7 + $0x918] sm:$0xff]
    %v669 = vld [vmem:[#allocation7 + $0x920] sm:$0xff]
    %v670 = vld [vmem:[#allocation7 + $0x928] sm:$0xff]
    %v671 = vld [vmem:[#allocation7 + $0x930] sm:$0xff]
    %v672 = vld [vmem:[#allocation7 + $0x938] sm:$0xff]
    %v673 = vld [vmem:[#allocation7 + $0x940] sm:$0xff]
    %v674 = vld [vmem:[#allocation7 + $0x948] sm:$0xff]
    %v675 = vld [vmem:[#allocation7 + $0x950] sm:$0xff]
    %v676 = vld [vmem:[#allocation7 + $0x958] sm:$0xff]
    %v677 = vld [vmem:[#allocation7 + $0x960] sm:$0xff]
    %v678 = vld [vmem:[#allocation7 + $0x968] sm:$0xff]
    %v679 = vld [vmem:[#allocation7 + $0x970] sm:$0xff]
    %v680 = vld [vmem:[#allocation7 + $0x978] sm:$0xff]
    %v681 = vld [vmem:[#allocation7 + $0x980] sm:$0xff]
    %v682 = vld [vmem:[#allocation7 + $0x988] sm:$0xff]
    %v683 = vld [vmem:[#allocation7 + $0x990] sm:$0xff]
    %v684 = vld [vmem:[#allocation7 + $0x998] sm:$0xff]
    %v685 = vld [vmem:[#allocation7 + $0x9a0] sm:$0xff]
    %v686 = vld [vmem:[#allocation7 + $0x9a8] sm:$0xff]
    %v687 = vld [vmem:[#allocation7 + $0x9b0] sm:$0xff]
    %v688 = vld [vmem:[#allocation7 + $0x9b8] sm:$0xff]
    %v689 = vld [vmem:[#allocation7 + $0x9c0] sm:$0xff]
    %v690 = vld [vmem:[#allocation7 + $0x9c8] sm:$0xff]
    %v691 = vld [vmem:[#allocation7 + $0x9d0] sm:$0xff]
    %v692 = vld [vmem:[#allocation7 + $0x9d8] sm:$0xff]
    %v693 = vld [vmem:[#allocation7 + $0x9e0] sm:$0xff]
    %v694 = vld [vmem:[#allocation7 + $0x9e8] sm:$0xff]
    %v695 = vld [vmem:[#allocation7 + $0x9f0] sm:$0xff]
    %v696 = vld [vmem:[#allocation7 + $0x9f8] sm:$0xff]
    %v697 = vld [vmem:[#allocation7 + $0xa00] sm:$0xff]
    %v698 = vld [vmem:[#allocation7 + $0xa08] sm:$0xff]
    %v699 = vld [vmem:[#allocation7 + $0xa10] sm:$0xff]
    %v700 = vld [vmem:[#allocation7 + $0xa18] sm:$0xff]
    %v701 = vld [vmem:[#allocation7 + $0xa20] sm:$0xff]
    %v702 = vld [vmem:[#allocation7 + $0xa28] sm:$0xff]
    %v703 = vld [vmem:[#allocation7 + $0xa30] sm:$0xff]
    %v704 = vld [vmem:[#allocation7 + $0xa38] sm:$0xff]
    %v705 = vld [vmem:[#allocation7 + $0xa40] sm:$0xff]
    %v706 = vld [vmem:[#allocation7 + $0xa48] sm:$0xff]
    %v707 = vld [vmem:[#allocation7 + $0xa50] sm:$0xff]
    %v708 = vld [vmem:[#allocation7 + $0xa58] sm:$0xff]
    %v709 = vld [vmem:[#allocation7 + $0xa60] sm:$0xff]
    %v710 = vld [vmem:[#allocation7 + $0xa68] sm:$0xff]
    %v711 = vld [vmem:[#allocation7 + $0xa70] sm:$0xff]
    %v712 = vld [vmem:[#allocation7 + $0xa78] sm:$0xff]
    %v713 = vld [vmem:[#allocation7 + $0xa80] sm:$0xff]
    %v714 = vld [vmem:[#allocation7 + $0xa88] sm:$0xff]
    %v715 = vld [vmem:[#allocation7 + $0xa90] sm:$0xff]
    %v716 = vld [vmem:[#allocation7 + $0xa98] sm:$0xff]
    %v717 = vld [vmem:[#allocation7 + $0xaa0] sm:$0xff]
    %v718 = vld [vmem:[#allocation7 + $0xaa8] sm:$0xff]
    %v719 = vld [vmem:[#allocation7 + $0xab0] sm:$0xff]
    %v720 = vld [vmem:[#allocation7 + $0xab8] sm:$0xff]
    %v721 = vld [vmem:[#allocation7 + $0xac0] sm:$0xff]
    %v722 = vld [vmem:[#allocation7 + $0xac8] sm:$0xff]
    %v723 = vld [vmem:[#allocation7 + $0xad0] sm:$0xff]
    %v724 = vld [vmem:[#allocation7 + $0xad8] sm:$0xff]
    %v725 = vld [vmem:[#allocation7 + $0xae0] sm:$0xff]
    %v726 = vld [vmem:[#allocation7 + $0xae8] sm:$0xff]
    %v727 = vld [vmem:[#allocation7 + $0xaf0] sm:$0xff]
    %v728 = vld [vmem:[#allocation7 + $0xaf8] sm:$0xff]
    %v729 = vld [vmem:[#allocation7 + $0xb00] sm:$0xff]
    %v730 = vld [vmem:[#allocation7 + $0xb08] sm:$0xff]
    %v731 = vld [vmem:[#allocation7 + $0xb10] sm:$0xff]
    %v732 = vld [vmem:[#allocation7 + $0xb18] sm:$0xff]
    %v733 = vld [vmem:[#allocation7 + $0xb20] sm:$0xff]
    %v734 = vld [vmem:[#allocation7 + $0xb28] sm:$0xff]
    %v735 = vld [vmem:[#allocation7 + $0xb30] sm:$0xff]
    %v736 = vld [vmem:[#allocation7 + $0xb38] sm:$0xff]
    %v737 = vld [vmem:[#allocation7 + $0xb40] sm:$0xff]
    %v738 = vld [vmem:[#allocation7 + $0xb48] sm:$0xff]
    %v739 = vld [vmem:[#allocation7 + $0xb50] sm:$0xff]
    %v740 = vld [vmem:[#allocation7 + $0xb58] sm:$0xff]
    %v741 = vld [vmem:[#allocation7 + $0xb60] sm:$0xff]
    %v742 = vld [vmem:[#allocation7 + $0xb68] sm:$0xff]
    %v743 = vld [vmem:[#allocation7 + $0xb70] sm:$0xff]
    %v744 = vld [vmem:[#allocation7 + $0xb78] sm:$0xff]
    %v745 = vld [vmem:[#allocation7 + $0xb80] sm:$0xff]
    %v746 = vld [vmem:[#allocation7 + $0xb88] sm:$0xff]
    %v747 = vld [vmem:[#allocation7 + $0xb90] sm:$0xff]
    %v748 = vld [vmem:[#allocation7 + $0xb98] sm:$0xff]
    %v749 = vld [vmem:[#allocation7 + $0xba0] sm:$0xff]
    %v750 = vld [vmem:[#allocation7 + $0xba8] sm:$0xff]
    %v751 = vld [vmem:[#allocation7 + $0xbb0] sm:$0xff]
    %v752 = vld [vmem:[#allocation7 + $0xbb8] sm:$0xff]
    %v753 = vld [vmem:[#allocation7 + $0xbc0] sm:$0xff]
    %v754 = vld [vmem:[#allocation7 + $0xbc8] sm:$0xff]
    %v755 = vld [vmem:[#allocation7 + $0xbd0] sm:$0xff]
    %v756 = vld [vmem:[#allocation7 + $0xbd8] sm:$0xff]
    %v757 = vld [vmem:[#allocation7 + $0xbe0] sm:$0xff]
    %v758 = vld [vmem:[#allocation7 + $0xbe8] sm:$0xff]
    %v759 = vld [vmem:[#allocation7 + $0xbf0] sm:$0xff]
    %v760 = vld [vmem:[#allocation7 + $0xbf8] sm:$0xff]
    %v761 = vld [vmem:[#allocation7 + $0xc00] sm:$0xff]
    %v762 = vld [vmem:[#allocation7 + $0xc08] sm:$0xff]
    %v763 = vld [vmem:[#allocation7 + $0xc10] sm:$0xff]
    %v764 = vld [vmem:[#allocation7 + $0xc18] sm:$0xff]
    %v765 = vld [vmem:[#allocation7 + $0xc20] sm:$0xff]
    %v766 = vld [vmem:[#allocation7 + $0xc28] sm:$0xff]
    %v767 = vld [vmem:[#allocation7 + $0xc30] sm:$0xff]
    %v768 = vld [vmem:[#allocation7 + $0xc38] sm:$0xff]
    %v769 = vld [vmem:[#allocation7 + $0xc40] sm:$0xff]
    %v770 = vld [vmem:[#allocation7 + $0xc48] sm:$0xff]
    %v771 = vld [vmem:[#allocation7 + $0xc50] sm:$0xff]
    %v772 = vld [vmem:[#allocation7 + $0xc58] sm:$0xff]
    %v773 = vld [vmem:[#allocation7 + $0xc60] sm:$0xff]
    %v774 = vld [vmem:[#allocation7 + $0xc68] sm:$0xff]
    %v775 = vld [vmem:[#allocation7 + $0xc70] sm:$0xff]
    %v776 = vld [vmem:[#allocation7 + $0xc78] sm:$0xff]
    %v777 = vld [vmem:[#allocation7 + $0xc80] sm:$0xff]
    %v778 = vld [vmem:[#allocation7 + $0xc88] sm:$0xff]
    %v779 = vld [vmem:[#allocation7 + $0xc90] sm:$0xff]
    %v780 = vld [vmem:[#allocation7 + $0xc98] sm:$0xff]
    %v781 = vld [vmem:[#allocation7 + $0xca0] sm:$0xff]
    %v782 = vld [vmem:[#allocation7 + $0xca8] sm:$0xff]
    %v783 = vld [vmem:[#allocation7 + $0xcb0] sm:$0xff]
    %v784 = vld [vmem:[#allocation7 + $0xcb8] sm:$0xff]
    %v785 = vld [vmem:[#allocation7 + $0xcc0] sm:$0xff]
    %v786 = vld [vmem:[#allocation7 + $0xcc8] sm:$0xff]
    %v787 = vld [vmem:[#allocation7 + $0xcd0] sm:$0xff]
    %v788 = vld [vmem:[#allocation7 + $0xcd8] sm:$0xff]
    %v789 = vld [vmem:[#allocation7 + $0xce0] sm:$0xff]
    %v790 = vld [vmem:[#allocation7 + $0xce8] sm:$0xff]
    %v791 = vld [vmem:[#allocation7 + $0xcf0] sm:$0xff]
    %v792 = vld [vmem:[#allocation7 + $0xcf8] sm:$0xff]
    %v793 = vld [vmem:[#allocation7 + $0xd00] sm:$0xff]
    %v794 = vld [vmem:[#allocation7 + $0xd08] sm:$0xff]
    %v795 = vld [vmem:[#allocation7 + $0xd10] sm:$0xff]
    %v796 = vld [vmem:[#allocation7 + $0xd18] sm:$0xff]
    %v797 = vld [vmem:[#allocation7 + $0xd20] sm:$0xff]
    %v798 = vld [vmem:[#allocation7 + $0xd28] sm:$0xff]
    %v799 = vld [vmem:[#allocation7 + $0xd30] sm:$0xff]
    %v800 = vld [vmem:[#allocation7 + $0xd38] sm:$0xff]
    %v801 = vld [vmem:[#allocation7 + $0xd40] sm:$0xff]
    %v802 = vld [vmem:[#allocation7 + $0xd48] sm:$0xff]
    %v803 = vld [vmem:[#allocation7 + $0xd50] sm:$0xff]
    %v804 = vld [vmem:[#allocation7 + $0xd58] sm:$0xff]
    %v805 = vld [vmem:[#allocation7 + $0xd60] sm:$0xff]
    %v806 = vld [vmem:[#allocation7 + $0xd68] sm:$0xff]
    %v807 = vld [vmem:[#allocation7 + $0xd70] sm:$0xff]
    %v808 = vld [vmem:[#allocation7 + $0xd78] sm:$0xff]
    %v809 = vld [vmem:[#allocation7 + $0xd80] sm:$0xff]
    %v810 = vld [vmem:[#allocation7 + $0xd88] sm:$0xff]
    %v811 = vld [vmem:[#allocation7 + $0xd90] sm:$0xff]
    %v812 = vld [vmem:[#allocation7 + $0xd98] sm:$0xff]
    %v813 = vld [vmem:[#allocation7 + $0xda0] sm:$0xff]
    %v814 = vld [vmem:[#allocation7 + $0xda8] sm:$0xff]
    %v815 = vld [vmem:[#allocation7 + $0xdb0] sm:$0xff]
    %v816 = vld [vmem:[#allocation7 + $0xdb8] sm:$0xff]
    %v817 = vld [vmem:[#allocation7 + $0xdc0] sm:$0xff]
    %v818 = vld [vmem:[#allocation7 + $0xdc8] sm:$0xff]
    %v819 = vld [vmem:[#allocation7 + $0xdd0] sm:$0xff]
    %v820 = vld [vmem:[#allocation7 + $0xdd8] sm:$0xff]
    %v821 = vld [vmem:[#allocation7 + $0xde0] sm:$0xff]
    %v822 = vld [vmem:[#allocation7 + $0xde8] sm:$0xff]
    %v823 = vld [vmem:[#allocation7 + $0xdf0] sm:$0xff]
    %v824 = vld [vmem:[#allocation7 + $0xdf8] sm:$0xff]
    %v825 = vld [vmem:[#allocation7 + $0xe00] sm:$0xff]
    %v826 = vld [vmem:[#allocation7 + $0xe08] sm:$0xff]
    %v827 = vld [vmem:[#allocation7 + $0xe10] sm:$0xff]
    %v828 = vld [vmem:[#allocation7 + $0xe18] sm:$0xff]
    %v829 = vld [vmem:[#allocation7 + $0xe20] sm:$0xff]
    %v830 = vld [vmem:[#allocation7 + $0xe28] sm:$0xff]
    %v831 = vld [vmem:[#allocation7 + $0xe30] sm:$0xff]
    %v832 = vld [vmem:[#allocation7 + $0xe38] sm:$0xff]
    %v833 = vld [vmem:[#allocation7 + $0xe40] sm:$0xff]
    %v834 = vld [vmem:[#allocation7 + $0xe48] sm:$0xff]
    %v835 = vld [vmem:[#allocation7 + $0xe50] sm:$0xff]
    %v836 = vld [vmem:[#allocation7 + $0xe58] sm:$0xff]
    %v837 = vld [vmem:[#allocation7 + $0xe60] sm:$0xff]
    %v838 = vld [vmem:[#allocation7 + $0xe68] sm:$0xff]
    %v839 = vld [vmem:[#allocation7 + $0xe70] sm:$0xff]
    %v840 = vld [vmem:[#allocation7 + $0xe78] sm:$0xff]
    %v841 = vld [vmem:[#allocation7 + $0xe80] sm:$0xff]
    %v842 = vld [vmem:[#allocation7 + $0xe88] sm:$0xff]
    %v843 = vld [vmem:[#allocation7 + $0xe90] sm:$0xff]
    %v844 = vld [vmem:[#allocation7 + $0xe98] sm:$0xff]
    %v845 = vld [vmem:[#allocation7 + $0xea0] sm:$0xff]
    %v846 = vld [vmem:[#allocation7 + $0xea8] sm:$0xff]
    %v847 = vld [vmem:[#allocation7 + $0xeb0] sm:$0xff]
    %v848 = vld [vmem:[#allocation7 + $0xeb8] sm:$0xff]
    %v849 = vld [vmem:[#allocation7 + $0xec0] sm:$0xff]
    %v850 = vld [vmem:[#allocation7 + $0xec8] sm:$0xff]
    %v851 = vld [vmem:[#allocation7 + $0xed0] sm:$0xff]
    %v852 = vld [vmem:[#allocation7 + $0xed8] sm:$0xff]
    %v853 = vld [vmem:[#allocation7 + $0xee0] sm:$0xff]
    %v854 = vld [vmem:[#allocation7 + $0xee8] sm:$0xff]
    %v855 = vld [vmem:[#allocation7 + $0xef0] sm:$0xff]
    %v856 = vld [vmem:[#allocation7 + $0xef8] sm:$0xff]
    %v857 = vld [vmem:[#allocation7 + $0xf00] sm:$0xff]
    %v858 = vld [vmem:[#allocation7 + $0xf08] sm:$0xff]
    %v859 = vld [vmem:[#allocation7 + $0xf10] sm:$0xff]
    %v860 = vld [vmem:[#allocation7 + $0xf18] sm:$0xff]
    %v861 = vld [vmem:[#allocation7 + $0xf20] sm:$0xff]
    %v862 = vld [vmem:[#allocation7 + $0xf28] sm:$0xff]
    %v863 = vld [vmem:[#allocation7 + $0xf30] sm:$0xff]
    %v864 = vld [vmem:[#allocation7 + $0xf38] sm:$0xff]
    %v865 = vld [vmem:[#allocation7 + $0xf40] sm:$0xff]
    %v866 = vld [vmem:[#allocation7 + $0xf48] sm:$0xff]
    %v867 = vld [vmem:[#allocation7 + $0xf50] sm:$0xff]
    %v868 = vld [vmem:[#allocation7 + $0xf58] sm:$0xff]
    %v869 = vld [vmem:[#allocation7 + $0xf60] sm:$0xff]
    %v870 = vld [vmem:[#allocation7 + $0xf68] sm:$0xff]
    %v871 = vld [vmem:[#allocation7 + $0xf70] sm:$0xff]
    %v872 = vld [vmem:[#allocation7 + $0xf78] sm:$0xff]
    %v873 = vld [vmem:[#allocation7 + $0xf80] sm:$0xff]
    %v874 = vld [vmem:[#allocation7 + $0xf88] sm:$0xff]
    %v875 = vld [vmem:[#allocation7 + $0xf90] sm:$0xff]
    %v876 = vld [vmem:[#allocation7 + $0xf98] sm:$0xff]
    %v877 = vld [vmem:[#allocation7 + $0xfa0] sm:$0xff]
    %v878 = vld [vmem:[#allocation7 + $0xfa8] sm:$0xff]
    %v879 = vld [vmem:[#allocation7 + $0xfb0] sm:$0xff]
    %v880 = vld [vmem:[#allocation7 + $0xfb8] sm:$0xff]
    %v881 = vld [vmem:[#allocation7 + $0xfc0] sm:$0xff]
    %v882 = vld [vmem:[#allocation7 + $0xfc8] sm:$0xff]
    %v883 = vld [vmem:[#allocation7 + $0xfd0] sm:$0xff]
    %v884 = vld [vmem:[#allocation7 + $0xfd8] sm:$0xff]
    %v885 = vld [vmem:[#allocation7 + $0xfe0] sm:$0xff]
    %v886 = vld [vmem:[#allocation7 + $0xfe8] sm:$0xff]
    %v887 = vld [vmem:[#allocation7 + $0xff0] sm:$0xff]
    %v888 = vld [vmem:[#allocation7 + $0xff8] sm:$0xff]
    %v889 = vld [vmem:[#allocation9] sm:$0xff]
    %v891 = vlaneseq
    %v892 = vshrl.u32 %v891, 7
    %v893 = vsub.s32 0, %v892
    %v894 = vrot.slane %v889, %v893
    %v895 = vlaneseq
    %v896 = vshrl.u32 %v895, 7
    %v897 = vsub.s32 1, %v896
    %v898 = vrot.slane %v889, %v897
    %v899 = vlaneseq
    %v900 = vshrl.u32 %v899, 7
    %v901 = vsub.s32 2, %v900
    %v902 = vrot.slane %v889, %v901
    %v903 = vlaneseq
    %v904 = vshrl.u32 %v903, 7
    %v905 = vsub.s32 3, %v904
    %v906 = vrot.slane %v889, %v905
    %v907 = vlaneseq
    %v908 = vshrl.u32 %v907, 7
    %v909 = vsub.s32 4, %v908
    %v910 = vrot.slane %v889, %v909
    %v911 = vlaneseq
    %v912 = vshrl.u32 %v911, 7
    %v913 = vsub.s32 5, %v912
    %v914 = vrot.slane %v889, %v913
    %v915 = vlaneseq
    %v916 = vshrl.u32 %v915, 7
    %v917 = vsub.s32 6, %v916
    %v918 = vrot.slane %v889, %v917
    %v919 = vlaneseq
    %v920 = vshrl.u32 %v919, 7
    %v921 = vsub.s32 7, %v920
    %v922 = vrot.slane %v889, %v921
    %v1443 = vunpack.c.l.b16 %v377
    %v1444 = vunpack.c.h.b16 %v377
    %v1445 = vunpack.c.l.b16 %v378
    %v1446 = vunpack.c.h.b16 %v378
    %v1447 = vunpack.c.l.b16 %v379
    %v1448 = vunpack.c.h.b16 %v379
    %v1449 = vunpack.c.l.b16 %v380
    %v1450 = vunpack.c.h.b16 %v380
    %v1451 = vunpack.c.l.b16 %v381
    %v1452 = vunpack.c.h.b16 %v381
    %v1453 = vunpack.c.l.b16 %v382
    %v1454 = vunpack.c.h.b16 %v382
    %v1455 = vunpack.c.l.b16 %v383
    %v1456 = vunpack.c.h.b16 %v383
    %v1457 = vunpack.c.l.b16 %v384
    %v1458 = vunpack.c.h.b16 %v384
    %v1459 = vunpack.c.l.b16 %v385
    %v1460 = vunpack.c.h.b16 %v385
    %v1461 = vunpack.c.l.b16 %v386
    %v1462 = vunpack.c.h.b16 %v386
    %v1463 = vunpack.c.l.b16 %v387
    %v1464 = vunpack.c.h.b16 %v387
    %v1465 = vunpack.c.l.b16 %v388
    %v1466 = vunpack.c.h.b16 %v388
    %v1467 = vunpack.c.l.b16 %v389
    %v1468 = vunpack.c.h.b16 %v389
    %v1469 = vunpack.c.l.b16 %v390
    %v1470 = vunpack.c.h.b16 %v390
    %v1471 = vunpack.c.l.b16 %v391
    %v1472 = vunpack.c.h.b16 %v391
    %v1473 = vunpack.c.l.b16 %v392
    %v1474 = vunpack.c.h.b16 %v392
    %v1475 = vunpack.c.l.b16 %v393
    %v1476 = vunpack.c.h.b16 %v393
    %v1477 = vunpack.c.l.b16 %v394
    %v1478 = vunpack.c.h.b16 %v394
    %v1479 = vunpack.c.l.b16 %v395
    %v1480 = vunpack.c.h.b16 %v395
    %v1481 = vunpack.c.l.b16 %v396
    %v1482 = vunpack.c.h.b16 %v396
    %v1483 = vunpack.c.l.b16 %v397
    %v1484 = vunpack.c.h.b16 %v397
    %v1485 = vunpack.c.l.b16 %v398
    %v1486 = vunpack.c.h.b16 %v398
    %v1487 = vunpack.c.l.b16 %v399
    %v1488 = vunpack.c.h.b16 %v399
    %v1489 = vunpack.c.l.b16 %v400
    %v1490 = vunpack.c.h.b16 %v400
    %v1491 = vunpack.c.l.b16 %v401
    %v1492 = vunpack.c.h.b16 %v401
    %v1493 = vunpack.c.l.b16 %v402
    %v1494 = vunpack.c.h.b16 %v402
    %v1495 = vunpack.c.l.b16 %v403
    %v1496 = vunpack.c.h.b16 %v403
    %v1497 = vunpack.c.l.b16 %v404
    %v1498 = vunpack.c.h.b16 %v404
    %v1499 = vunpack.c.l.b16 %v405
    %v1500 = vunpack.c.h.b16 %v405
    %v1501 = vunpack.c.l.b16 %v406
    %v1502 = vunpack.c.h.b16 %v406
    %v1503 = vunpack.c.l.b16 %v407
    %v1504 = vunpack.c.h.b16 %v407
    %v1505 = vunpack.c.l.b16 %v408
    %v1506 = vunpack.c.h.b16 %v408
    %v1507 = vunpack.c.l.b16 %v409
    %v1508 = vunpack.c.h.b16 %v409
    %v1509 = vunpack.c.l.b16 %v410
    %v1510 = vunpack.c.h.b16 %v410
    %v1511 = vunpack.c.l.b16 %v411
    %v1512 = vunpack.c.h.b16 %v411
    %v1513 = vunpack.c.l.b16 %v412
    %v1514 = vunpack.c.h.b16 %v412
    %v1515 = vunpack.c.l.b16 %v413
    %v1516 = vunpack.c.h.b16 %v413
    %v1517 = vunpack.c.l.b16 %v414
    %v1518 = vunpack.c.h.b16 %v414
    %v1519 = vunpack.c.l.b16 %v415
    %v1520 = vunpack.c.h.b16 %v415
    %v1521 = vunpack.c.l.b16 %v416
    %v1522 = vunpack.c.h.b16 %v416
    %v1523 = vunpack.c.l.b16 %v417
    %v1524 = vunpack.c.h.b16 %v417
    %v1525 = vunpack.c.l.b16 %v418
    %v1526 = vunpack.c.h.b16 %v418
    %v1527 = vunpack.c.l.b16 %v419
    %v1528 = vunpack.c.h.b16 %v419
    %v1529 = vunpack.c.l.b16 %v420
    %v1530 = vunpack.c.h.b16 %v420
    %v1531 = vunpack.c.l.b16 %v421
    %v1532 = vunpack.c.h.b16 %v421
    %v1533 = vunpack.c.l.b16 %v422
    %v1534 = vunpack.c.h.b16 %v422
    %v1535 = vunpack.c.l.b16 %v423
    %v1536 = vunpack.c.h.b16 %v423
    %v1537 = vunpack.c.l.b16 %v424
    %v1538 = vunpack.c.h.b16 %v424
    %v1539 = vunpack.c.l.b16 %v425
    %v1540 = vunpack.c.h.b16 %v425
    %v1541 = vunpack.c.l.b16 %v426
    %v1542 = vunpack.c.h.b16 %v426
    %v1543 = vunpack.c.l.b16 %v427
    %v1544 = vunpack.c.h.b16 %v427
    %v1545 = vunpack.c.l.b16 %v428
    %v1546 = vunpack.c.h.b16 %v428
    %v1547 = vunpack.c.l.b16 %v429
    %v1548 = vunpack.c.h.b16 %v429
    %v1549 = vunpack.c.l.b16 %v430
    %v1550 = vunpack.c.h.b16 %v430
    %v1551 = vunpack.c.l.b16 %v431
    %v1552 = vunpack.c.h.b16 %v431
    %v1553 = vunpack.c.l.b16 %v432
    %v1554 = vunpack.c.h.b16 %v432
    %v1555 = vunpack.c.l.b16 %v433
    %v1556 = vunpack.c.h.b16 %v433
    %v1557 = vunpack.c.l.b16 %v434
    %v1558 = vunpack.c.h.b16 %v434
    %v1559 = vunpack.c.l.b16 %v435
    %v1560 = vunpack.c.h.b16 %v435
    %v1561 = vunpack.c.l.b16 %v436
    %v1562 = vunpack.c.h.b16 %v436
    %v1563 = vunpack.c.l.b16 %v437
    %v1564 = vunpack.c.h.b16 %v437
    %v1565 = vunpack.c.l.b16 %v438
    %v1566 = vunpack.c.h.b16 %v438
    %v1567 = vunpack.c.l.b16 %v439
    %v1568 = vunpack.c.h.b16 %v439
    %v1569 = vunpack.c.l.b16 %v440
    %v1570 = vunpack.c.h.b16 %v440
    %v1571 = vunpack.c.l.b16 %v441
    %v1572 = vunpack.c.h.b16 %v441
    %v1573 = vunpack.c.l.b16 %v442
    %v1574 = vunpack.c.h.b16 %v442
    %v1575 = vunpack.c.l.b16 %v443
    %v1576 = vunpack.c.h.b16 %v443
    %v1577 = vunpack.c.l.b16 %v444
    %v1578 = vunpack.c.h.b16 %v444
    %v1579 = vunpack.c.l.b16 %v445
    %v1580 = vunpack.c.h.b16 %v445
    %v1581 = vunpack.c.l.b16 %v446
    %v1582 = vunpack.c.h.b16 %v446
    %v1583 = vunpack.c.l.b16 %v447
    %v1584 = vunpack.c.h.b16 %v447
    %v1585 = vunpack.c.l.b16 %v448
    %v1586 = vunpack.c.h.b16 %v448
    %v1587 = vunpack.c.l.b16 %v449
    %v1588 = vunpack.c.h.b16 %v449
    %v1589 = vunpack.c.l.b16 %v450
    %v1590 = vunpack.c.h.b16 %v450
    %v1591 = vunpack.c.l.b16 %v451
    %v1592 = vunpack.c.h.b16 %v451
    %v1593 = vunpack.c.l.b16 %v452
    %v1594 = vunpack.c.h.b16 %v452
    %v1595 = vunpack.c.l.b16 %v453
    %v1596 = vunpack.c.h.b16 %v453
    %v1597 = vunpack.c.l.b16 %v454
    %v1598 = vunpack.c.h.b16 %v454
    %v1599 = vunpack.c.l.b16 %v455
    %v1600 = vunpack.c.h.b16 %v455
    %v1601 = vunpack.c.l.b16 %v456
    %v1602 = vunpack.c.h.b16 %v456
    %v1603 = vunpack.c.l.b16 %v457
    %v1604 = vunpack.c.h.b16 %v457
    %v1605 = vunpack.c.l.b16 %v458
    %v1606 = vunpack.c.h.b16 %v458
    %v1607 = vunpack.c.l.b16 %v459
    %v1608 = vunpack.c.h.b16 %v459
    %v1609 = vunpack.c.l.b16 %v460
    %v1610 = vunpack.c.h.b16 %v460
    %v1611 = vunpack.c.l.b16 %v461
    %v1612 = vunpack.c.h.b16 %v461
    %v1613 = vunpack.c.l.b16 %v462
    %v1614 = vunpack.c.h.b16 %v462
    %v1615 = vunpack.c.l.b16 %v463
    %v1616 = vunpack.c.h.b16 %v463
    %v1617 = vunpack.c.l.b16 %v464
    %v1618 = vunpack.c.h.b16 %v464
    %v1619 = vunpack.c.l.b16 %v465
    %v1620 = vunpack.c.h.b16 %v465
    %v1621 = vunpack.c.l.b16 %v466
    %v1622 = vunpack.c.h.b16 %v466
    %v1623 = vunpack.c.l.b16 %v467
    %v1624 = vunpack.c.h.b16 %v467
    %v1625 = vunpack.c.l.b16 %v468
    %v1626 = vunpack.c.h.b16 %v468
    %v1627 = vunpack.c.l.b16 %v469
    %v1628 = vunpack.c.h.b16 %v469
    %v1629 = vunpack.c.l.b16 %v470
    %v1630 = vunpack.c.h.b16 %v470
    %v1631 = vunpack.c.l.b16 %v471
    %v1632 = vunpack.c.h.b16 %v471
    %v1633 = vunpack.c.l.b16 %v472
    %v1634 = vunpack.c.h.b16 %v472
    %v1635 = vunpack.c.l.b16 %v473
    %v1636 = vunpack.c.h.b16 %v473
    %v1637 = vunpack.c.l.b16 %v474
    %v1638 = vunpack.c.h.b16 %v474
    %v1639 = vunpack.c.l.b16 %v475
    %v1640 = vunpack.c.h.b16 %v475
    %v1641 = vunpack.c.l.b16 %v476
    %v1642 = vunpack.c.h.b16 %v476
    %v1643 = vunpack.c.l.b16 %v477
    %v1644 = vunpack.c.h.b16 %v477
    %v1645 = vunpack.c.l.b16 %v478
    %v1646 = vunpack.c.h.b16 %v478
    %v1647 = vunpack.c.l.b16 %v479
    %v1648 = vunpack.c.h.b16 %v479
    %v1649 = vunpack.c.l.b16 %v480
    %v1650 = vunpack.c.h.b16 %v480
    %v1651 = vunpack.c.l.b16 %v481
    %v1652 = vunpack.c.h.b16 %v481
    %v1653 = vunpack.c.l.b16 %v482
    %v1654 = vunpack.c.h.b16 %v482
    %v1655 = vunpack.c.l.b16 %v483
    %v1656 = vunpack.c.h.b16 %v483
    %v1657 = vunpack.c.l.b16 %v484
    %v1658 = vunpack.c.h.b16 %v484
    %v1659 = vunpack.c.l.b16 %v485
    %v1660 = vunpack.c.h.b16 %v485
    %v1661 = vunpack.c.l.b16 %v486
    %v1662 = vunpack.c.h.b16 %v486
    %v1663 = vunpack.c.l.b16 %v487
    %v1664 = vunpack.c.h.b16 %v487
    %v1665 = vunpack.c.l.b16 %v488
    %v1666 = vunpack.c.h.b16 %v488
    %v1667 = vunpack.c.l.b16 %v489
    %v1668 = vunpack.c.h.b16 %v489
    %v1669 = vunpack.c.l.b16 %v490
    %v1670 = vunpack.c.h.b16 %v490
    %v1671 = vunpack.c.l.b16 %v491
    %v1672 = vunpack.c.h.b16 %v491
    %v1673 = vunpack.c.l.b16 %v492
    %v1674 = vunpack.c.h.b16 %v492
    %v1675 = vunpack.c.l.b16 %v493
    %v1676 = vunpack.c.h.b16 %v493
    %v1677 = vunpack.c.l.b16 %v494
    %v1678 = vunpack.c.h.b16 %v494
    %v1679 = vunpack.c.l.b16 %v495
    %v1680 = vunpack.c.h.b16 %v495
    %v1681 = vunpack.c.l.b16 %v496
    %v1682 = vunpack.c.h.b16 %v496
    %v1683 = vunpack.c.l.b16 %v497
    %v1684 = vunpack.c.h.b16 %v497
    %v1685 = vunpack.c.l.b16 %v498
    %v1686 = vunpack.c.h.b16 %v498
    %v1687 = vunpack.c.l.b16 %v499
    %v1688 = vunpack.c.h.b16 %v499
    %v1689 = vunpack.c.l.b16 %v500
    %v1690 = vunpack.c.h.b16 %v500
    %v1691 = vunpack.c.l.b16 %v501
    %v1692 = vunpack.c.h.b16 %v501
    %v1693 = vunpack.c.l.b16 %v502
    %v1694 = vunpack.c.h.b16 %v502
    %v1695 = vunpack.c.l.b16 %v503
    %v1696 = vunpack.c.h.b16 %v503
    %v1697 = vunpack.c.l.b16 %v504
    %v1698 = vunpack.c.h.b16 %v504
    %v1699 = vunpack.c.l.b16 %v505
    %v1700 = vunpack.c.h.b16 %v505
    %v1701 = vunpack.c.l.b16 %v506
    %v1702 = vunpack.c.h.b16 %v506
    %v1703 = vunpack.c.l.b16 %v507
    %v1704 = vunpack.c.h.b16 %v507
    %v1705 = vunpack.c.l.b16 %v508
    %v1706 = vunpack.c.h.b16 %v508
    %v1707 = vunpack.c.l.b16 %v509
    %v1708 = vunpack.c.h.b16 %v509
    %v1709 = vunpack.c.l.b16 %v510
    %v1710 = vunpack.c.h.b16 %v510
    %v1711 = vunpack.c.l.b16 %v511
    %v1712 = vunpack.c.h.b16 %v511
    %v1713 = vunpack.c.l.b16 %v512
    %v1714 = vunpack.c.h.b16 %v512
    %v1715 = vunpack.c.l.b16 %v513
    %v1716 = vunpack.c.h.b16 %v513
    %v1717 = vunpack.c.l.b16 %v514
    %v1718 = vunpack.c.h.b16 %v514
    %v1719 = vunpack.c.l.b16 %v515
    %v1720 = vunpack.c.h.b16 %v515
    %v1721 = vunpack.c.l.b16 %v516
    %v1722 = vunpack.c.h.b16 %v516
    %v1723 = vunpack.c.l.b16 %v517
    %v1724 = vunpack.c.h.b16 %v517
    %v1725 = vunpack.c.l.b16 %v518
    %v1726 = vunpack.c.h.b16 %v518
    %v1727 = vunpack.c.l.b16 %v519
    %v1728 = vunpack.c.h.b16 %v519
    %v1729 = vunpack.c.l.b16 %v520
    %v1730 = vunpack.c.h.b16 %v520
    %v1731 = vunpack.c.l.b16 %v521
    %v1732 = vunpack.c.h.b16 %v521
    %v1733 = vunpack.c.l.b16 %v522
    %v1734 = vunpack.c.h.b16 %v522
    %v1735 = vunpack.c.l.b16 %v523
    %v1736 = vunpack.c.h.b16 %v523
    %v1737 = vunpack.c.l.b16 %v524
    %v1738 = vunpack.c.h.b16 %v524
    %v1739 = vunpack.c.l.b16 %v525
    %v1740 = vunpack.c.h.b16 %v525
    %v1741 = vunpack.c.l.b16 %v526
    %v1742 = vunpack.c.h.b16 %v526
    %v1743 = vunpack.c.l.b16 %v527
    %v1744 = vunpack.c.h.b16 %v527
    %v1745 = vunpack.c.l.b16 %v528
    %v1746 = vunpack.c.h.b16 %v528
    %v1747 = vunpack.c.l.b16 %v529
    %v1748 = vunpack.c.h.b16 %v529
    %v1749 = vunpack.c.l.b16 %v530
    %v1750 = vunpack.c.h.b16 %v530
    %v1751 = vunpack.c.l.b16 %v531
    %v1752 = vunpack.c.h.b16 %v531
    %v1753 = vunpack.c.l.b16 %v532
    %v1754 = vunpack.c.h.b16 %v532
    %v1755 = vunpack.c.l.b16 %v533
    %v1756 = vunpack.c.h.b16 %v533
    %v1757 = vunpack.c.l.b16 %v534
    %v1758 = vunpack.c.h.b16 %v534
    %v1759 = vunpack.c.l.b16 %v535
    %v1760 = vunpack.c.h.b16 %v535
    %v1761 = vunpack.c.l.b16 %v536
    %v1762 = vunpack.c.h.b16 %v536
    %v1763 = vunpack.c.l.b16 %v537
    %v1764 = vunpack.c.h.b16 %v537
    %v1765 = vunpack.c.l.b16 %v538
    %v1766 = vunpack.c.h.b16 %v538
    %v1767 = vunpack.c.l.b16 %v539
    %v1768 = vunpack.c.h.b16 %v539
    %v1769 = vunpack.c.l.b16 %v540
    %v1770 = vunpack.c.h.b16 %v540
    %v1771 = vunpack.c.l.b16 %v541
    %v1772 = vunpack.c.h.b16 %v541
    %v1773 = vunpack.c.l.b16 %v542
    %v1774 = vunpack.c.h.b16 %v542
    %v1775 = vunpack.c.l.b16 %v543
    %v1776 = vunpack.c.h.b16 %v543
    %v1777 = vunpack.c.l.b16 %v544
    %v1778 = vunpack.c.h.b16 %v544
    %v1779 = vunpack.c.l.b16 %v545
    %v1780 = vunpack.c.h.b16 %v545
    %v1781 = vunpack.c.l.b16 %v546
    %v1782 = vunpack.c.h.b16 %v546
    %v1783 = vunpack.c.l.b16 %v547
    %v1784 = vunpack.c.h.b16 %v547
    %v1785 = vunpack.c.l.b16 %v548
    %v1786 = vunpack.c.h.b16 %v548
    %v1787 = vunpack.c.l.b16 %v549
    %v1788 = vunpack.c.h.b16 %v549
    %v1789 = vunpack.c.l.b16 %v550
    %v1790 = vunpack.c.h.b16 %v550
    %v1791 = vunpack.c.l.b16 %v551
    %v1792 = vunpack.c.h.b16 %v551
    %v1793 = vunpack.c.l.b16 %v552
    %v1794 = vunpack.c.h.b16 %v552
    %v1795 = vunpack.c.l.b16 %v553
    %v1796 = vunpack.c.h.b16 %v553
    %v1797 = vunpack.c.l.b16 %v554
    %v1798 = vunpack.c.h.b16 %v554
    %v1799 = vunpack.c.l.b16 %v555
    %v1800 = vunpack.c.h.b16 %v555
    %v1801 = vunpack.c.l.b16 %v556
    %v1802 = vunpack.c.h.b16 %v556
    %v1803 = vunpack.c.l.b16 %v557
    %v1804 = vunpack.c.h.b16 %v557
    %v1805 = vunpack.c.l.b16 %v558
    %v1806 = vunpack.c.h.b16 %v558
    %v1807 = vunpack.c.l.b16 %v559
    %v1808 = vunpack.c.h.b16 %v559
    %v1809 = vunpack.c.l.b16 %v560
    %v1810 = vunpack.c.h.b16 %v560
    %v1811 = vunpack.c.l.b16 %v561
    %v1812 = vunpack.c.h.b16 %v561
    %v1813 = vunpack.c.l.b16 %v562
    %v1814 = vunpack.c.h.b16 %v562
    %v1815 = vunpack.c.l.b16 %v563
    %v1816 = vunpack.c.h.b16 %v563
    %v1817 = vunpack.c.l.b16 %v564
    %v1818 = vunpack.c.h.b16 %v564
    %v1819 = vunpack.c.l.b16 %v565
    %v1820 = vunpack.c.h.b16 %v565
    %v1821 = vunpack.c.l.b16 %v566
    %v1822 = vunpack.c.h.b16 %v566
    %v1823 = vunpack.c.l.b16 %v567
    %v1824 = vunpack.c.h.b16 %v567
    %v1825 = vunpack.c.l.b16 %v568
    %v1826 = vunpack.c.h.b16 %v568
    %v1827 = vunpack.c.l.b16 %v569
    %v1828 = vunpack.c.h.b16 %v569
    %v1829 = vunpack.c.l.b16 %v570
    %v1830 = vunpack.c.h.b16 %v570
    %v1831 = vunpack.c.l.b16 %v571
    %v1832 = vunpack.c.h.b16 %v571
    %v1833 = vunpack.c.l.b16 %v572
    %v1834 = vunpack.c.h.b16 %v572
    %v1835 = vunpack.c.l.b16 %v573
    %v1836 = vunpack.c.h.b16 %v573
    %v1837 = vunpack.c.l.b16 %v574
    %v1838 = vunpack.c.h.b16 %v574
    %v1839 = vunpack.c.l.b16 %v575
    %v1840 = vunpack.c.h.b16 %v575
    %v1841 = vunpack.c.l.b16 %v576
    %v1842 = vunpack.c.h.b16 %v576
    %v1843 = vunpack.c.l.b16 %v577
    %v1844 = vunpack.c.h.b16 %v577
    %v1845 = vunpack.c.l.b16 %v578
    %v1846 = vunpack.c.h.b16 %v578
    %v1847 = vunpack.c.l.b16 %v579
    %v1848 = vunpack.c.h.b16 %v579
    %v1849 = vunpack.c.l.b16 %v580
    %v1850 = vunpack.c.h.b16 %v580
    %v1851 = vunpack.c.l.b16 %v581
    %v1852 = vunpack.c.h.b16 %v581
    %v1853 = vunpack.c.l.b16 %v582
    %v1854 = vunpack.c.h.b16 %v582
    %v1855 = vunpack.c.l.b16 %v583
    %v1856 = vunpack.c.h.b16 %v583
    %v1857 = vunpack.c.l.b16 %v584
    %v1858 = vunpack.c.h.b16 %v584
    %v1859 = vunpack.c.l.b16 %v585
    %v1860 = vunpack.c.h.b16 %v585
    %v1861 = vunpack.c.l.b16 %v586
    %v1862 = vunpack.c.h.b16 %v586
    %v1863 = vunpack.c.l.b16 %v587
    %v1864 = vunpack.c.h.b16 %v587
    %v1865 = vunpack.c.l.b16 %v588
    %v1866 = vunpack.c.h.b16 %v588
    %v1867 = vunpack.c.l.b16 %v589
    %v1868 = vunpack.c.h.b16 %v589
    %v1869 = vunpack.c.l.b16 %v590
    %v1870 = vunpack.c.h.b16 %v590
    %v1871 = vunpack.c.l.b16 %v591
    %v1872 = vunpack.c.h.b16 %v591
    %v1873 = vunpack.c.l.b16 %v592
    %v1874 = vunpack.c.h.b16 %v592
    %v1875 = vunpack.c.l.b16 %v593
    %v1876 = vunpack.c.h.b16 %v593
    %v1877 = vunpack.c.l.b16 %v594
    %v1878 = vunpack.c.h.b16 %v594
    %v1879 = vunpack.c.l.b16 %v595
    %v1880 = vunpack.c.h.b16 %v595
    %v1881 = vunpack.c.l.b16 %v596
    %v1882 = vunpack.c.h.b16 %v596
    %v1883 = vunpack.c.l.b16 %v597
    %v1884 = vunpack.c.h.b16 %v597
    %v1885 = vunpack.c.l.b16 %v598
    %v1886 = vunpack.c.h.b16 %v598
    %v1887 = vunpack.c.l.b16 %v599
    %v1888 = vunpack.c.h.b16 %v599
    %v1889 = vunpack.c.l.b16 %v600
    %v1890 = vunpack.c.h.b16 %v600
    %v1891 = vunpack.c.l.b16 %v601
    %v1892 = vunpack.c.h.b16 %v601
    %v1893 = vunpack.c.l.b16 %v602
    %v1894 = vunpack.c.h.b16 %v602
    %v1895 = vunpack.c.l.b16 %v603
    %v1896 = vunpack.c.h.b16 %v603
    %v1897 = vunpack.c.l.b16 %v604
    %v1898 = vunpack.c.h.b16 %v604
    %v1899 = vunpack.c.l.b16 %v605
    %v1900 = vunpack.c.h.b16 %v605
    %v1901 = vunpack.c.l.b16 %v606
    %v1902 = vunpack.c.h.b16 %v606
    %v1903 = vunpack.c.l.b16 %v607
    %v1904 = vunpack.c.h.b16 %v607
    %v1905 = vunpack.c.l.b16 %v608
    %v1906 = vunpack.c.h.b16 %v608
    %v1907 = vunpack.c.l.b16 %v609
    %v1908 = vunpack.c.h.b16 %v609
    %v1909 = vunpack.c.l.b16 %v610
    %v1910 = vunpack.c.h.b16 %v610
    %v1911 = vunpack.c.l.b16 %v611
    %v1912 = vunpack.c.h.b16 %v611
    %v1913 = vunpack.c.l.b16 %v612
    %v1914 = vunpack.c.h.b16 %v612
    %v1915 = vunpack.c.l.b16 %v613
    %v1916 = vunpack.c.h.b16 %v613
    %v1917 = vunpack.c.l.b16 %v614
    %v1918 = vunpack.c.h.b16 %v614
    %v1919 = vunpack.c.l.b16 %v615
    %v1920 = vunpack.c.h.b16 %v615
    %v1921 = vunpack.c.l.b16 %v616
    %v1922 = vunpack.c.h.b16 %v616
    %v1923 = vunpack.c.l.b16 %v617
    %v1924 = vunpack.c.h.b16 %v617
    %v1925 = vunpack.c.l.b16 %v618
    %v1926 = vunpack.c.h.b16 %v618
    %v1927 = vunpack.c.l.b16 %v619
    %v1928 = vunpack.c.h.b16 %v619
    %v1929 = vunpack.c.l.b16 %v620
    %v1930 = vunpack.c.h.b16 %v620
    %v1931 = vunpack.c.l.b16 %v621
    %v1932 = vunpack.c.h.b16 %v621
    %v1933 = vunpack.c.l.b16 %v622
    %v1934 = vunpack.c.h.b16 %v622
    %v1935 = vunpack.c.l.b16 %v623
    %v1936 = vunpack.c.h.b16 %v623
    %v1937 = vunpack.c.l.b16 %v624
    %v1938 = vunpack.c.h.b16 %v624
    %v1939 = vunpack.c.l.b16 %v625
    %v1940 = vunpack.c.h.b16 %v625
    %v1941 = vunpack.c.l.b16 %v626
    %v1942 = vunpack.c.h.b16 %v626
    %v1943 = vunpack.c.l.b16 %v627
    %v1944 = vunpack.c.h.b16 %v627
    %v1945 = vunpack.c.l.b16 %v628
    %v1946 = vunpack.c.h.b16 %v628
    %v1947 = vunpack.c.l.b16 %v629
    %v1948 = vunpack.c.h.b16 %v629
    %v1949 = vunpack.c.l.b16 %v630
    %v1950 = vunpack.c.h.b16 %v630
    %v1951 = vunpack.c.l.b16 %v631
    %v1952 = vunpack.c.h.b16 %v631
    %v1953 = vunpack.c.l.b16 %v632
    %v1954 = vunpack.c.h.b16 %v632
    %v1955 = vunpack.c.l.b16 %v633
    %v1956 = vunpack.c.h.b16 %v633
    %v1957 = vunpack.c.l.b16 %v634
    %v1958 = vunpack.c.h.b16 %v634
    %v1959 = vunpack.c.l.b16 %v635
    %v1960 = vunpack.c.h.b16 %v635
    %v1961 = vunpack.c.l.b16 %v636
    %v1962 = vunpack.c.h.b16 %v636
    %v1963 = vunpack.c.l.b16 %v637
    %v1964 = vunpack.c.h.b16 %v637
    %v1965 = vunpack.c.l.b16 %v638
    %v1966 = vunpack.c.h.b16 %v638
    %v1967 = vunpack.c.l.b16 %v639
    %v1968 = vunpack.c.h.b16 %v639
    %v1969 = vunpack.c.l.b16 %v640
    %v1970 = vunpack.c.h.b16 %v640
    %v1971 = vunpack.c.l.b16 %v641
    %v1972 = vunpack.c.h.b16 %v641
    %v1973 = vunpack.c.l.b16 %v642
    %v1974 = vunpack.c.h.b16 %v642
    %v1975 = vunpack.c.l.b16 %v643
    %v1976 = vunpack.c.h.b16 %v643
    %v1977 = vunpack.c.l.b16 %v644
    %v1978 = vunpack.c.h.b16 %v644
    %v1979 = vunpack.c.l.b16 %v645
    %v1980 = vunpack.c.h.b16 %v645
    %v1981 = vunpack.c.l.b16 %v646
    %v1982 = vunpack.c.h.b16 %v646
    %v1983 = vunpack.c.l.b16 %v647
    %v1984 = vunpack.c.h.b16 %v647
    %v1985 = vunpack.c.l.b16 %v648
    %v1986 = vunpack.c.h.b16 %v648
    %v1987 = vunpack.c.l.b16 %v649
    %v1988 = vunpack.c.h.b16 %v649
    %v1989 = vunpack.c.l.b16 %v650
    %v1990 = vunpack.c.h.b16 %v650
    %v1991 = vunpack.c.l.b16 %v651
    %v1992 = vunpack.c.h.b16 %v651
    %v1993 = vunpack.c.l.b16 %v652
    %v1994 = vunpack.c.h.b16 %v652
    %v1995 = vunpack.c.l.b16 %v653
    %v1996 = vunpack.c.h.b16 %v653
    %v1997 = vunpack.c.l.b16 %v654
    %v1998 = vunpack.c.h.b16 %v654
    %v1999 = vunpack.c.l.b16 %v655
    %v2000 = vunpack.c.h.b16 %v655
    %v2001 = vunpack.c.l.b16 %v656
    %v2002 = vunpack.c.h.b16 %v656
    %v2003 = vunpack.c.l.b16 %v657
    %v2004 = vunpack.c.h.b16 %v657
    %v2005 = vunpack.c.l.b16 %v658
    %v2006 = vunpack.c.h.b16 %v658
    %v2007 = vunpack.c.l.b16 %v659
    %v2008 = vunpack.c.h.b16 %v659
    %v2009 = vunpack.c.l.b16 %v660
    %v2010 = vunpack.c.h.b16 %v660
    %v2011 = vunpack.c.l.b16 %v661
    %v2012 = vunpack.c.h.b16 %v661
    %v2013 = vunpack.c.l.b16 %v662
    %v2014 = vunpack.c.h.b16 %v662
    %v2015 = vunpack.c.l.b16 %v663
    %v2016 = vunpack.c.h.b16 %v663
    %v2017 = vunpack.c.l.b16 %v664
    %v2018 = vunpack.c.h.b16 %v664
    %v2019 = vunpack.c.l.b16 %v665
    %v2020 = vunpack.c.h.b16 %v665
    %v2021 = vunpack.c.l.b16 %v666
    %v2022 = vunpack.c.h.b16 %v666
    %v2023 = vunpack.c.l.b16 %v667
    %v2024 = vunpack.c.h.b16 %v667
    %v2025 = vunpack.c.l.b16 %v668
    %v2026 = vunpack.c.h.b16 %v668
    %v2027 = vunpack.c.l.b16 %v669
    %v2028 = vunpack.c.h.b16 %v669
    %v2029 = vunpack.c.l.b16 %v670
    %v2030 = vunpack.c.h.b16 %v670
    %v2031 = vunpack.c.l.b16 %v671
    %v2032 = vunpack.c.h.b16 %v671
    %v2033 = vunpack.c.l.b16 %v672
    %v2034 = vunpack.c.h.b16 %v672
    %v2035 = vunpack.c.l.b16 %v673
    %v2036 = vunpack.c.h.b16 %v673
    %v2037 = vunpack.c.l.b16 %v674
    %v2038 = vunpack.c.h.b16 %v674
    %v2039 = vunpack.c.l.b16 %v675
    %v2040 = vunpack.c.h.b16 %v675
    %v2041 = vunpack.c.l.b16 %v676
    %v2042 = vunpack.c.h.b16 %v676
    %v2043 = vunpack.c.l.b16 %v677
    %v2044 = vunpack.c.h.b16 %v677
    %v2045 = vunpack.c.l.b16 %v678
    %v2046 = vunpack.c.h.b16 %v678
    %v2047 = vunpack.c.l.b16 %v679
    %v2048 = vunpack.c.h.b16 %v679
    %v2049 = vunpack.c.l.b16 %v680
    %v2050 = vunpack.c.h.b16 %v680
    %v2051 = vunpack.c.l.b16 %v681
    %v2052 = vunpack.c.h.b16 %v681
    %v2053 = vunpack.c.l.b16 %v682
    %v2054 = vunpack.c.h.b16 %v682
    %v2055 = vunpack.c.l.b16 %v683
    %v2056 = vunpack.c.h.b16 %v683
    %v2057 = vunpack.c.l.b16 %v684
    %v2058 = vunpack.c.h.b16 %v684
    %v2059 = vunpack.c.l.b16 %v685
    %v2060 = vunpack.c.h.b16 %v685
    %v2061 = vunpack.c.l.b16 %v686
    %v2062 = vunpack.c.h.b16 %v686
    %v2063 = vunpack.c.l.b16 %v687
    %v2064 = vunpack.c.h.b16 %v687
    %v2065 = vunpack.c.l.b16 %v688
    %v2066 = vunpack.c.h.b16 %v688
    %v2067 = vunpack.c.l.b16 %v689
    %v2068 = vunpack.c.h.b16 %v689
    %v2069 = vunpack.c.l.b16 %v690
    %v2070 = vunpack.c.h.b16 %v690
    %v2071 = vunpack.c.l.b16 %v691
    %v2072 = vunpack.c.h.b16 %v691
    %v2073 = vunpack.c.l.b16 %v692
    %v2074 = vunpack.c.h.b16 %v692
    %v2075 = vunpack.c.l.b16 %v693
    %v2076 = vunpack.c.h.b16 %v693
    %v2077 = vunpack.c.l.b16 %v694
    %v2078 = vunpack.c.h.b16 %v694
    %v2079 = vunpack.c.l.b16 %v695
    %v2080 = vunpack.c.h.b16 %v695
    %v2081 = vunpack.c.l.b16 %v696
    %v2082 = vunpack.c.h.b16 %v696
    %v2083 = vunpack.c.l.b16 %v697
    %v2084 = vunpack.c.h.b16 %v697
    %v2085 = vunpack.c.l.b16 %v698
    %v2086 = vunpack.c.h.b16 %v698
    %v2087 = vunpack.c.l.b16 %v699
    %v2088 = vunpack.c.h.b16 %v699
    %v2089 = vunpack.c.l.b16 %v700
    %v2090 = vunpack.c.h.b16 %v700
    %v2091 = vunpack.c.l.b16 %v701
    %v2092 = vunpack.c.h.b16 %v701
    %v2093 = vunpack.c.l.b16 %v702
    %v2094 = vunpack.c.h.b16 %v702
    %v2095 = vunpack.c.l.b16 %v703
    %v2096 = vunpack.c.h.b16 %v703
    %v2097 = vunpack.c.l.b16 %v704
    %v2098 = vunpack.c.h.b16 %v704
    %v2099 = vunpack.c.l.b16 %v705
    %v2100 = vunpack.c.h.b16 %v705
    %v2101 = vunpack.c.l.b16 %v706
    %v2102 = vunpack.c.h.b16 %v706
    %v2103 = vunpack.c.l.b16 %v707
    %v2104 = vunpack.c.h.b16 %v707
    %v2105 = vunpack.c.l.b16 %v708
    %v2106 = vunpack.c.h.b16 %v708
    %v2107 = vunpack.c.l.b16 %v709
    %v2108 = vunpack.c.h.b16 %v709
    %v2109 = vunpack.c.l.b16 %v710
    %v2110 = vunpack.c.h.b16 %v710
    %v2111 = vunpack.c.l.b16 %v711
    %v2112 = vunpack.c.h.b16 %v711
    %v2113 = vunpack.c.l.b16 %v712
    %v2114 = vunpack.c.h.b16 %v712
    %v2115 = vunpack.c.l.b16 %v713
    %v2116 = vunpack.c.h.b16 %v713
    %v2117 = vunpack.c.l.b16 %v714
    %v2118 = vunpack.c.h.b16 %v714
    %v2119 = vunpack.c.l.b16 %v715
    %v2120 = vunpack.c.h.b16 %v715
    %v2121 = vunpack.c.l.b16 %v716
    %v2122 = vunpack.c.h.b16 %v716
    %v2123 = vunpack.c.l.b16 %v717
    %v2124 = vunpack.c.h.b16 %v717
    %v2125 = vunpack.c.l.b16 %v718
    %v2126 = vunpack.c.h.b16 %v718
    %v2127 = vunpack.c.l.b16 %v719
    %v2128 = vunpack.c.h.b16 %v719
    %v2129 = vunpack.c.l.b16 %v720
    %v2130 = vunpack.c.h.b16 %v720
    %v2131 = vunpack.c.l.b16 %v721
    %v2132 = vunpack.c.h.b16 %v721
    %v2133 = vunpack.c.l.b16 %v722
    %v2134 = vunpack.c.h.b16 %v722
    %v2135 = vunpack.c.l.b16 %v723
    %v2136 = vunpack.c.h.b16 %v723
    %v2137 = vunpack.c.l.b16 %v724
    %v2138 = vunpack.c.h.b16 %v724
    %v2139 = vunpack.c.l.b16 %v725
    %v2140 = vunpack.c.h.b16 %v725
    %v2141 = vunpack.c.l.b16 %v726
    %v2142 = vunpack.c.h.b16 %v726
    %v2143 = vunpack.c.l.b16 %v727
    %v2144 = vunpack.c.h.b16 %v727
    %v2145 = vunpack.c.l.b16 %v728
    %v2146 = vunpack.c.h.b16 %v728
    %v2147 = vunpack.c.l.b16 %v729
    %v2148 = vunpack.c.h.b16 %v729
    %v2149 = vunpack.c.l.b16 %v730
    %v2150 = vunpack.c.h.b16 %v730
    %v2151 = vunpack.c.l.b16 %v731
    %v2152 = vunpack.c.h.b16 %v731
    %v2153 = vunpack.c.l.b16 %v732
    %v2154 = vunpack.c.h.b16 %v732
    %v2155 = vunpack.c.l.b16 %v733
    %v2156 = vunpack.c.h.b16 %v733
    %v2157 = vunpack.c.l.b16 %v734
    %v2158 = vunpack.c.h.b16 %v734
    %v2159 = vunpack.c.l.b16 %v735
    %v2160 = vunpack.c.h.b16 %v735
    %v2161 = vunpack.c.l.b16 %v736
    %v2162 = vunpack.c.h.b16 %v736
    %v2163 = vunpack.c.l.b16 %v737
    %v2164 = vunpack.c.h.b16 %v737
    %v2165 = vunpack.c.l.b16 %v738
    %v2166 = vunpack.c.h.b16 %v738
    %v2167 = vunpack.c.l.b16 %v739
    %v2168 = vunpack.c.h.b16 %v739
    %v2169 = vunpack.c.l.b16 %v740
    %v2170 = vunpack.c.h.b16 %v740
    %v2171 = vunpack.c.l.b16 %v741
    %v2172 = vunpack.c.h.b16 %v741
    %v2173 = vunpack.c.l.b16 %v742
    %v2174 = vunpack.c.h.b16 %v742
    %v2175 = vunpack.c.l.b16 %v743
    %v2176 = vunpack.c.h.b16 %v743
    %v2177 = vunpack.c.l.b16 %v744
    %v2178 = vunpack.c.h.b16 %v744
    %v2179 = vunpack.c.l.b16 %v745
    %v2180 = vunpack.c.h.b16 %v745
    %v2181 = vunpack.c.l.b16 %v746
    %v2182 = vunpack.c.h.b16 %v746
    %v2183 = vunpack.c.l.b16 %v747
    %v2184 = vunpack.c.h.b16 %v747
    %v2185 = vunpack.c.l.b16 %v748
    %v2186 = vunpack.c.h.b16 %v748
    %v2187 = vunpack.c.l.b16 %v749
    %v2188 = vunpack.c.h.b16 %v749
    %v2189 = vunpack.c.l.b16 %v750
    %v2190 = vunpack.c.h.b16 %v750
    %v2191 = vunpack.c.l.b16 %v751
    %v2192 = vunpack.c.h.b16 %v751
    %v2193 = vunpack.c.l.b16 %v752
    %v2194 = vunpack.c.h.b16 %v752
    %v2195 = vunpack.c.l.b16 %v753
    %v2196 = vunpack.c.h.b16 %v753
    %v2197 = vunpack.c.l.b16 %v754
    %v2198 = vunpack.c.h.b16 %v754
    %v2199 = vunpack.c.l.b16 %v755
    %v2200 = vunpack.c.h.b16 %v755
    %v2201 = vunpack.c.l.b16 %v756
    %v2202 = vunpack.c.h.b16 %v756
    %v2203 = vunpack.c.l.b16 %v757
    %v2204 = vunpack.c.h.b16 %v757
    %v2205 = vunpack.c.l.b16 %v758
    %v2206 = vunpack.c.h.b16 %v758
    %v2207 = vunpack.c.l.b16 %v759
    %v2208 = vunpack.c.h.b16 %v759
    %v2209 = vunpack.c.l.b16 %v760
    %v2210 = vunpack.c.h.b16 %v760
    %v2211 = vunpack.c.l.b16 %v761
    %v2212 = vunpack.c.h.b16 %v761
    %v2213 = vunpack.c.l.b16 %v762
    %v2214 = vunpack.c.h.b16 %v762
    %v2215 = vunpack.c.l.b16 %v763
    %v2216 = vunpack.c.h.b16 %v763
    %v2217 = vunpack.c.l.b16 %v764
    %v2218 = vunpack.c.h.b16 %v764
    %v2219 = vunpack.c.l.b16 %v765
    %v2220 = vunpack.c.h.b16 %v765
    %v2221 = vunpack.c.l.b16 %v766
    %v2222 = vunpack.c.h.b16 %v766
    %v2223 = vunpack.c.l.b16 %v767
    %v2224 = vunpack.c.h.b16 %v767
    %v2225 = vunpack.c.l.b16 %v768
    %v2226 = vunpack.c.h.b16 %v768
    %v2227 = vunpack.c.l.b16 %v769
    %v2228 = vunpack.c.h.b16 %v769
    %v2229 = vunpack.c.l.b16 %v770
    %v2230 = vunpack.c.h.b16 %v770
    %v2231 = vunpack.c.l.b16 %v771
    %v2232 = vunpack.c.h.b16 %v771
    %v2233 = vunpack.c.l.b16 %v772
    %v2234 = vunpack.c.h.b16 %v772
    %v2235 = vunpack.c.l.b16 %v773
    %v2236 = vunpack.c.h.b16 %v773
    %v2237 = vunpack.c.l.b16 %v774
    %v2238 = vunpack.c.h.b16 %v774
    %v2239 = vunpack.c.l.b16 %v775
    %v2240 = vunpack.c.h.b16 %v775
    %v2241 = vunpack.c.l.b16 %v776
    %v2242 = vunpack.c.h.b16 %v776
    %v2243 = vunpack.c.l.b16 %v777
    %v2244 = vunpack.c.h.b16 %v777
    %v2245 = vunpack.c.l.b16 %v778
    %v2246 = vunpack.c.h.b16 %v778
    %v2247 = vunpack.c.l.b16 %v779
    %v2248 = vunpack.c.h.b16 %v779
    %v2249 = vunpack.c.l.b16 %v780
    %v2250 = vunpack.c.h.b16 %v780
    %v2251 = vunpack.c.l.b16 %v781
    %v2252 = vunpack.c.h.b16 %v781
    %v2253 = vunpack.c.l.b16 %v782
    %v2254 = vunpack.c.h.b16 %v782
    %v2255 = vunpack.c.l.b16 %v783
    %v2256 = vunpack.c.h.b16 %v783
    %v2257 = vunpack.c.l.b16 %v784
    %v2258 = vunpack.c.h.b16 %v784
    %v2259 = vunpack.c.l.b16 %v785
    %v2260 = vunpack.c.h.b16 %v785
    %v2261 = vunpack.c.l.b16 %v786
    %v2262 = vunpack.c.h.b16 %v786
    %v2263 = vunpack.c.l.b16 %v787
    %v2264 = vunpack.c.h.b16 %v787
    %v2265 = vunpack.c.l.b16 %v788
    %v2266 = vunpack.c.h.b16 %v788
    %v2267 = vunpack.c.l.b16 %v789
    %v2268 = vunpack.c.h.b16 %v789
    %v2269 = vunpack.c.l.b16 %v790
    %v2270 = vunpack.c.h.b16 %v790
    %v2271 = vunpack.c.l.b16 %v791
    %v2272 = vunpack.c.h.b16 %v791
    %v2273 = vunpack.c.l.b16 %v792
    %v2274 = vunpack.c.h.b16 %v792
    %v2275 = vunpack.c.l.b16 %v793
    %v2276 = vunpack.c.h.b16 %v793
    %v2277 = vunpack.c.l.b16 %v794
    %v2278 = vunpack.c.h.b16 %v794
    %v2279 = vunpack.c.l.b16 %v795
    %v2280 = vunpack.c.h.b16 %v795
    %v2281 = vunpack.c.l.b16 %v796
    %v2282 = vunpack.c.h.b16 %v796
    %v2283 = vunpack.c.l.b16 %v797
    %v2284 = vunpack.c.h.b16 %v797
    %v2285 = vunpack.c.l.b16 %v798
    %v2286 = vunpack.c.h.b16 %v798
    %v2287 = vunpack.c.l.b16 %v799
    %v2288 = vunpack.c.h.b16 %v799
    %v2289 = vunpack.c.l.b16 %v800
    %v2290 = vunpack.c.h.b16 %v800
    %v2291 = vunpack.c.l.b16 %v801
    %v2292 = vunpack.c.h.b16 %v801
    %v2293 = vunpack.c.l.b16 %v802
    %v2294 = vunpack.c.h.b16 %v802
    %v2295 = vunpack.c.l.b16 %v803
    %v2296 = vunpack.c.h.b16 %v803
    %v2297 = vunpack.c.l.b16 %v804
    %v2298 = vunpack.c.h.b16 %v804
    %v2299 = vunpack.c.l.b16 %v805
    %v2300 = vunpack.c.h.b16 %v805
    %v2301 = vunpack.c.l.b16 %v806
    %v2302 = vunpack.c.h.b16 %v806
    %v2303 = vunpack.c.l.b16 %v807
    %v2304 = vunpack.c.h.b16 %v807
    %v2305 = vunpack.c.l.b16 %v808
    %v2306 = vunpack.c.h.b16 %v808
    %v2307 = vunpack.c.l.b16 %v809
    %v2308 = vunpack.c.h.b16 %v809
    %v2309 = vunpack.c.l.b16 %v810
    %v2310 = vunpack.c.h.b16 %v810
    %v2311 = vunpack.c.l.b16 %v811
    %v2312 = vunpack.c.h.b16 %v811
    %v2313 = vunpack.c.l.b16 %v812
    %v2314 = vunpack.c.h.b16 %v812
    %v2315 = vunpack.c.l.b16 %v813
    %v2316 = vunpack.c.h.b16 %v813
    %v2317 = vunpack.c.l.b16 %v814
    %v2318 = vunpack.c.h.b16 %v814
    %v2319 = vunpack.c.l.b16 %v815
    %v2320 = vunpack.c.h.b16 %v815
    %v2321 = vunpack.c.l.b16 %v816
    %v2322 = vunpack.c.h.b16 %v816
    %v2323 = vunpack.c.l.b16 %v817
    %v2324 = vunpack.c.h.b16 %v817
    %v2325 = vunpack.c.l.b16 %v818
    %v2326 = vunpack.c.h.b16 %v818
    %v2327 = vunpack.c.l.b16 %v819
    %v2328 = vunpack.c.h.b16 %v819
    %v2329 = vunpack.c.l.b16 %v820
    %v2330 = vunpack.c.h.b16 %v820
    %v2331 = vunpack.c.l.b16 %v821
    %v2332 = vunpack.c.h.b16 %v821
    %v2333 = vunpack.c.l.b16 %v822
    %v2334 = vunpack.c.h.b16 %v822
    %v2335 = vunpack.c.l.b16 %v823
    %v2336 = vunpack.c.h.b16 %v823
    %v2337 = vunpack.c.l.b16 %v824
    %v2338 = vunpack.c.h.b16 %v824
    %v2339 = vunpack.c.l.b16 %v825
    %v2340 = vunpack.c.h.b16 %v825
    %v2341 = vunpack.c.l.b16 %v826
    %v2342 = vunpack.c.h.b16 %v826
    %v2343 = vunpack.c.l.b16 %v827
    %v2344 = vunpack.c.h.b16 %v827
    %v2345 = vunpack.c.l.b16 %v828
    %v2346 = vunpack.c.h.b16 %v828
    %v2347 = vunpack.c.l.b16 %v829
    %v2348 = vunpack.c.h.b16 %v829
    %v2349 = vunpack.c.l.b16 %v830
    %v2350 = vunpack.c.h.b16 %v830
    %v2351 = vunpack.c.l.b16 %v831
    %v2352 = vunpack.c.h.b16 %v831
    %v2353 = vunpack.c.l.b16 %v832
    %v2354 = vunpack.c.h.b16 %v832
    %v2355 = vunpack.c.l.b16 %v833
    %v2356 = vunpack.c.h.b16 %v833
    %v2357 = vunpack.c.l.b16 %v834
    %v2358 = vunpack.c.h.b16 %v834
    %v2359 = vunpack.c.l.b16 %v835
    %v2360 = vunpack.c.h.b16 %v835
    %v2361 = vunpack.c.l.b16 %v836
    %v2362 = vunpack.c.h.b16 %v836
    %v2363 = vunpack.c.l.b16 %v837
    %v2364 = vunpack.c.h.b16 %v837
    %v2365 = vunpack.c.l.b16 %v838
    %v2366 = vunpack.c.h.b16 %v838
    %v2367 = vunpack.c.l.b16 %v839
    %v2368 = vunpack.c.h.b16 %v839
    %v2369 = vunpack.c.l.b16 %v840
    %v2370 = vunpack.c.h.b16 %v840
    %v2371 = vunpack.c.l.b16 %v841
    %v2372 = vunpack.c.h.b16 %v841
    %v2373 = vunpack.c.l.b16 %v842
    %v2374 = vunpack.c.h.b16 %v842
    %v2375 = vunpack.c.l.b16 %v843
    %v2376 = vunpack.c.h.b16 %v843
    %v2377 = vunpack.c.l.b16 %v844
    %v2378 = vunpack.c.h.b16 %v844
    %v2379 = vunpack.c.l.b16 %v845
    %v2380 = vunpack.c.h.b16 %v845
    %v2381 = vunpack.c.l.b16 %v846
    %v2382 = vunpack.c.h.b16 %v846
    %v2383 = vunpack.c.l.b16 %v847
    %v2384 = vunpack.c.h.b16 %v847
    %v2385 = vunpack.c.l.b16 %v848
    %v2386 = vunpack.c.h.b16 %v848
    %v2387 = vunpack.c.l.b16 %v849
    %v2388 = vunpack.c.h.b16 %v849
    %v2389 = vunpack.c.l.b16 %v850
    %v2390 = vunpack.c.h.b16 %v850
    %v2391 = vunpack.c.l.b16 %v851
    %v2392 = vunpack.c.h.b16 %v851
    %v2393 = vunpack.c.l.b16 %v852
    %v2394 = vunpack.c.h.b16 %v852
    %v2395 = vunpack.c.l.b16 %v853
    %v2396 = vunpack.c.h.b16 %v853
    %v2397 = vunpack.c.l.b16 %v854
    %v2398 = vunpack.c.h.b16 %v854
    %v2399 = vunpack.c.l.b16 %v855
    %v2400 = vunpack.c.h.b16 %v855
    %v2401 = vunpack.c.l.b16 %v856
    %v2402 = vunpack.c.h.b16 %v856
    %v2403 = vunpack.c.l.b16 %v857
    %v2404 = vunpack.c.h.b16 %v857
    %v2405 = vunpack.c.l.b16 %v858
    %v2406 = vunpack.c.h.b16 %v858
    %v2407 = vunpack.c.l.b16 %v859
    %v2408 = vunpack.c.h.b16 %v859
    %v2409 = vunpack.c.l.b16 %v860
    %v2410 = vunpack.c.h.b16 %v860
    %v2411 = vunpack.c.l.b16 %v861
    %v2412 = vunpack.c.h.b16 %v861
    %v2413 = vunpack.c.l.b16 %v862
    %v2414 = vunpack.c.h.b16 %v862
    %v2415 = vunpack.c.l.b16 %v863
    %v2416 = vunpack.c.h.b16 %v863
    %v2417 = vunpack.c.l.b16 %v864
    %v2418 = vunpack.c.h.b16 %v864
    %v2419 = vunpack.c.l.b16 %v865
    %v2420 = vunpack.c.h.b16 %v865
    %v2421 = vunpack.c.l.b16 %v866
    %v2422 = vunpack.c.h.b16 %v866
    %v2423 = vunpack.c.l.b16 %v867
    %v2424 = vunpack.c.h.b16 %v867
    %v2425 = vunpack.c.l.b16 %v868
    %v2426 = vunpack.c.h.b16 %v868
    %v2427 = vunpack.c.l.b16 %v869
    %v2428 = vunpack.c.h.b16 %v869
    %v2429 = vunpack.c.l.b16 %v870
    %v2430 = vunpack.c.h.b16 %v870
    %v2431 = vunpack.c.l.b16 %v871
    %v2432 = vunpack.c.h.b16 %v871
    %v2433 = vunpack.c.l.b16 %v872
    %v2434 = vunpack.c.h.b16 %v872
    %v2435 = vunpack.c.l.b16 %v873
    %v2436 = vunpack.c.h.b16 %v873
    %v2437 = vunpack.c.l.b16 %v874
    %v2438 = vunpack.c.h.b16 %v874
    %v2439 = vunpack.c.l.b16 %v875
    %v2440 = vunpack.c.h.b16 %v875
    %v2441 = vunpack.c.l.b16 %v876
    %v2442 = vunpack.c.h.b16 %v876
    %v2443 = vunpack.c.l.b16 %v877
    %v2444 = vunpack.c.h.b16 %v877
    %v2445 = vunpack.c.l.b16 %v878
    %v2446 = vunpack.c.h.b16 %v878
    %v2447 = vunpack.c.l.b16 %v879
    %v2448 = vunpack.c.h.b16 %v879
    %v2449 = vunpack.c.l.b16 %v880
    %v2450 = vunpack.c.h.b16 %v880
    %v2451 = vunpack.c.l.b16 %v881
    %v2452 = vunpack.c.h.b16 %v881
    %v2453 = vunpack.c.l.b16 %v882
    %v2454 = vunpack.c.h.b16 %v882
    %v2455 = vunpack.c.l.b16 %v883
    %v2456 = vunpack.c.h.b16 %v883
    %v2457 = vunpack.c.l.b16 %v884
    %v2458 = vunpack.c.h.b16 %v884
    %v2459 = vunpack.c.l.b16 %v885
    %v2460 = vunpack.c.h.b16 %v885
    %v2461 = vunpack.c.l.b16 %v886
    %v2462 = vunpack.c.h.b16 %v886
    %v2463 = vunpack.c.l.b16 %v887
    %v2464 = vunpack.c.h.b16 %v887
    %v2465 = vunpack.c.l.b16 %v888
    %v2466 = vunpack.c.h.b16 %v888
    %v2467 = vpack.c.b16 %v1451, %v1443
    %v2468 = vpack.c.b16 %v1452, %v1444
    %v2469 = vpack.c.b16 %v1453, %v1445
    %v2470 = vpack.c.b16 %v1454, %v1446
    %v2471 = vpack.c.b16 %v1455, %v1447
    %v2472 = vpack.c.b16 %v1456, %v1448
    %v2473 = vpack.c.b16 %v1457, %v1449
    %v2474 = vpack.c.b16 %v1458, %v1450
    %v2475 = vpack.c.b16 %v1467, %v1459
    %v2476 = vpack.c.b16 %v1468, %v1460
    %v2477 = vpack.c.b16 %v1469, %v1461
    %v2478 = vpack.c.b16 %v1470, %v1462
    %v2479 = vpack.c.b16 %v1471, %v1463
    %v2480 = vpack.c.b16 %v1472, %v1464
    %v2481 = vpack.c.b16 %v1473, %v1465
    %v2482 = vpack.c.b16 %v1474, %v1466
    %v2483 = vpack.c.b16 %v1483, %v1475
    %v2484 = vpack.c.b16 %v1484, %v1476
    %v2485 = vpack.c.b16 %v1485, %v1477
    %v2486 = vpack.c.b16 %v1486, %v1478
    %v2487 = vpack.c.b16 %v1487, %v1479
    %v2488 = vpack.c.b16 %v1488, %v1480
    %v2489 = vpack.c.b16 %v1489, %v1481
    %v2490 = vpack.c.b16 %v1490, %v1482
    %v2491 = vpack.c.b16 %v1499, %v1491
    %v2492 = vpack.c.b16 %v1500, %v1492
    %v2493 = vpack.c.b16 %v1501, %v1493
    %v2494 = vpack.c.b16 %v1502, %v1494
    %v2495 = vpack.c.b16 %v1503, %v1495
    %v2496 = vpack.c.b16 %v1504, %v1496
    %v2497 = vpack.c.b16 %v1505, %v1497
    %v2498 = vpack.c.b16 %v1506, %v1498
    %v2499 = vpack.c.b16 %v1515, %v1507
    %v2500 = vpack.c.b16 %v1516, %v1508
    %v2501 = vpack.c.b16 %v1517, %v1509
    %v2502 = vpack.c.b16 %v1518, %v1510
    %v2503 = vpack.c.b16 %v1519, %v1511
    %v2504 = vpack.c.b16 %v1520, %v1512
    %v2505 = vpack.c.b16 %v1521, %v1513
    %v2506 = vpack.c.b16 %v1522, %v1514
    %v2507 = vpack.c.b16 %v1531, %v1523
    %v2508 = vpack.c.b16 %v1532, %v1524
    %v2509 = vpack.c.b16 %v1533, %v1525
    %v2510 = vpack.c.b16 %v1534, %v1526
    %v2511 = vpack.c.b16 %v1535, %v1527
    %v2512 = vpack.c.b16 %v1536, %v1528
    %v2513 = vpack.c.b16 %v1537, %v1529
    %v2514 = vpack.c.b16 %v1538, %v1530
    %v2515 = vpack.c.b16 %v1547, %v1539
    %v2516 = vpack.c.b16 %v1548, %v1540
    %v2517 = vpack.c.b16 %v1549, %v1541
    %v2518 = vpack.c.b16 %v1550, %v1542
    %v2519 = vpack.c.b16 %v1551, %v1543
    %v2520 = vpack.c.b16 %v1552, %v1544
    %v2521 = vpack.c.b16 %v1553, %v1545
    %v2522 = vpack.c.b16 %v1554, %v1546
    %v2523 = vpack.c.b16 %v1563, %v1555
    %v2524 = vpack.c.b16 %v1564, %v1556
    %v2525 = vpack.c.b16 %v1565, %v1557
    %v2526 = vpack.c.b16 %v1566, %v1558
    %v2527 = vpack.c.b16 %v1567, %v1559
    %v2528 = vpack.c.b16 %v1568, %v1560
    %v2529 = vpack.c.b16 %v1569, %v1561
    %v2530 = vpack.c.b16 %v1570, %v1562
    %v2531 = vpack.c.b16 %v1579, %v1571
    %v2532 = vpack.c.b16 %v1580, %v1572
    %v2533 = vpack.c.b16 %v1581, %v1573
    %v2534 = vpack.c.b16 %v1582, %v1574
    %v2535 = vpack.c.b16 %v1583, %v1575
    %v2536 = vpack.c.b16 %v1584, %v1576
    %v2537 = vpack.c.b16 %v1585, %v1577
    %v2538 = vpack.c.b16 %v1586, %v1578
    %v2539 = vpack.c.b16 %v1595, %v1587
    %v2540 = vpack.c.b16 %v1596, %v1588
    %v2541 = vpack.c.b16 %v1597, %v1589
    %v2542 = vpack.c.b16 %v1598, %v1590
    %v2543 = vpack.c.b16 %v1599, %v1591
    %v2544 = vpack.c.b16 %v1600, %v1592
    %v2545 = vpack.c.b16 %v1601, %v1593
    %v2546 = vpack.c.b16 %v1602, %v1594
    %v2547 = vpack.c.b16 %v1611, %v1603
    %v2548 = vpack.c.b16 %v1612, %v1604
    %v2549 = vpack.c.b16 %v1613, %v1605
    %v2550 = vpack.c.b16 %v1614, %v1606
    %v2551 = vpack.c.b16 %v1615, %v1607
    %v2552 = vpack.c.b16 %v1616, %v1608
    %v2553 = vpack.c.b16 %v1617, %v1609
    %v2554 = vpack.c.b16 %v1618, %v1610
    %v2555 = vpack.c.b16 %v1627, %v1619
    %v2556 = vpack.c.b16 %v1628, %v1620
    %v2557 = vpack.c.b16 %v1629, %v1621
    %v2558 = vpack.c.b16 %v1630, %v1622
    %v2559 = vpack.c.b16 %v1631, %v1623
    %v2560 = vpack.c.b16 %v1632, %v1624
    %v2561 = vpack.c.b16 %v1633, %v1625
    %v2562 = vpack.c.b16 %v1634, %v1626
    %v2563 = vpack.c.b16 %v1643, %v1635
    %v2564 = vpack.c.b16 %v1644, %v1636
    %v2565 = vpack.c.b16 %v1645, %v1637
    %v2566 = vpack.c.b16 %v1646, %v1638
    %v2567 = vpack.c.b16 %v1647, %v1639
    %v2568 = vpack.c.b16 %v1648, %v1640
    %v2569 = vpack.c.b16 %v1649, %v1641
    %v2570 = vpack.c.b16 %v1650, %v1642
    %v2571 = vpack.c.b16 %v1659, %v1651
    %v2572 = vpack.c.b16 %v1660, %v1652
    %v2573 = vpack.c.b16 %v1661, %v1653
    %v2574 = vpack.c.b16 %v1662, %v1654
    %v2575 = vpack.c.b16 %v1663, %v1655
    %v2576 = vpack.c.b16 %v1664, %v1656
    %v2577 = vpack.c.b16 %v1665, %v1657
    %v2578 = vpack.c.b16 %v1666, %v1658
    %v2579 = vpack.c.b16 %v1675, %v1667
    %v2580 = vpack.c.b16 %v1676, %v1668
    %v2581 = vpack.c.b16 %v1677, %v1669
    %v2582 = vpack.c.b16 %v1678, %v1670
    %v2583 = vpack.c.b16 %v1679, %v1671
    %v2584 = vpack.c.b16 %v1680, %v1672
    %v2585 = vpack.c.b16 %v1681, %v1673
    %v2586 = vpack.c.b16 %v1682, %v1674
    %v2587 = vpack.c.b16 %v1691, %v1683
    %v2588 = vpack.c.b16 %v1692, %v1684
    %v2589 = vpack.c.b16 %v1693, %v1685
    %v2590 = vpack.c.b16 %v1694, %v1686
    %v2591 = vpack.c.b16 %v1695, %v1687
    %v2592 = vpack.c.b16 %v1696, %v1688
    %v2593 = vpack.c.b16 %v1697, %v1689
    %v2594 = vpack.c.b16 %v1698, %v1690
    %v2595 = vpack.c.b16 %v1707, %v1699
    %v2596 = vpack.c.b16 %v1708, %v1700
    %v2597 = vpack.c.b16 %v1709, %v1701
    %v2598 = vpack.c.b16 %v1710, %v1702
    %v2599 = vpack.c.b16 %v1711, %v1703
    %v2600 = vpack.c.b16 %v1712, %v1704
    %v2601 = vpack.c.b16 %v1713, %v1705
    %v2602 = vpack.c.b16 %v1714, %v1706
    %v2603 = vpack.c.b16 %v1723, %v1715
    %v2604 = vpack.c.b16 %v1724, %v1716
    %v2605 = vpack.c.b16 %v1725, %v1717
    %v2606 = vpack.c.b16 %v1726, %v1718
    %v2607 = vpack.c.b16 %v1727, %v1719
    %v2608 = vpack.c.b16 %v1728, %v1720
    %v2609 = vpack.c.b16 %v1729, %v1721
    %v2610 = vpack.c.b16 %v1730, %v1722
    %v2611 = vpack.c.b16 %v1739, %v1731
    %v2612 = vpack.c.b16 %v1740, %v1732
    %v2613 = vpack.c.b16 %v1741, %v1733
    %v2614 = vpack.c.b16 %v1742, %v1734
    %v2615 = vpack.c.b16 %v1743, %v1735
    %v2616 = vpack.c.b16 %v1744, %v1736
    %v2617 = vpack.c.b16 %v1745, %v1737
    %v2618 = vpack.c.b16 %v1746, %v1738
    %v2619 = vpack.c.b16 %v1755, %v1747
    %v2620 = vpack.c.b16 %v1756, %v1748
    %v2621 = vpack.c.b16 %v1757, %v1749
    %v2622 = vpack.c.b16 %v1758, %v1750
    %v2623 = vpack.c.b16 %v1759, %v1751
    %v2624 = vpack.c.b16 %v1760, %v1752
    %v2625 = vpack.c.b16 %v1761, %v1753
    %v2626 = vpack.c.b16 %v1762, %v1754
    %v2627 = vpack.c.b16 %v1771, %v1763
    %v2628 = vpack.c.b16 %v1772, %v1764
    %v2629 = vpack.c.b16 %v1773, %v1765
    %v2630 = vpack.c.b16 %v1774, %v1766
    %v2631 = vpack.c.b16 %v1775, %v1767
    %v2632 = vpack.c.b16 %v1776, %v1768
    %v2633 = vpack.c.b16 %v1777, %v1769
    %v2634 = vpack.c.b16 %v1778, %v1770
    %v2635 = vpack.c.b16 %v1787, %v1779
    %v2636 = vpack.c.b16 %v1788, %v1780
    %v2637 = vpack.c.b16 %v1789, %v1781
    %v2638 = vpack.c.b16 %v1790, %v1782
    %v2639 = vpack.c.b16 %v1791, %v1783
    %v2640 = vpack.c.b16 %v1792, %v1784
    %v2641 = vpack.c.b16 %v1793, %v1785
    %v2642 = vpack.c.b16 %v1794, %v1786
    %v2643 = vpack.c.b16 %v1803, %v1795
    %v2644 = vpack.c.b16 %v1804, %v1796
    %v2645 = vpack.c.b16 %v1805, %v1797
    %v2646 = vpack.c.b16 %v1806, %v1798
    %v2647 = vpack.c.b16 %v1807, %v1799
    %v2648 = vpack.c.b16 %v1808, %v1800
    %v2649 = vpack.c.b16 %v1809, %v1801
    %v2650 = vpack.c.b16 %v1810, %v1802
    %v2651 = vpack.c.b16 %v1819, %v1811
    %v2652 = vpack.c.b16 %v1820, %v1812
    %v2653 = vpack.c.b16 %v1821, %v1813
    %v2654 = vpack.c.b16 %v1822, %v1814
    %v2655 = vpack.c.b16 %v1823, %v1815
    %v2656 = vpack.c.b16 %v1824, %v1816
    %v2657 = vpack.c.b16 %v1825, %v1817
    %v2658 = vpack.c.b16 %v1826, %v1818
    %v2659 = vpack.c.b16 %v1835, %v1827
    %v2660 = vpack.c.b16 %v1836, %v1828
    %v2661 = vpack.c.b16 %v1837, %v1829
    %v2662 = vpack.c.b16 %v1838, %v1830
    %v2663 = vpack.c.b16 %v1839, %v1831
    %v2664 = vpack.c.b16 %v1840, %v1832
    %v2665 = vpack.c.b16 %v1841, %v1833
    %v2666 = vpack.c.b16 %v1842, %v1834
    %v2667 = vpack.c.b16 %v1851, %v1843
    %v2668 = vpack.c.b16 %v1852, %v1844
    %v2669 = vpack.c.b16 %v1853, %v1845
    %v2670 = vpack.c.b16 %v1854, %v1846
    %v2671 = vpack.c.b16 %v1855, %v1847
    %v2672 = vpack.c.b16 %v1856, %v1848
    %v2673 = vpack.c.b16 %v1857, %v1849
    %v2674 = vpack.c.b16 %v1858, %v1850
    %v2675 = vpack.c.b16 %v1867, %v1859
    %v2676 = vpack.c.b16 %v1868, %v1860
    %v2677 = vpack.c.b16 %v1869, %v1861
    %v2678 = vpack.c.b16 %v1870, %v1862
    %v2679 = vpack.c.b16 %v1871, %v1863
    %v2680 = vpack.c.b16 %v1872, %v1864
    %v2681 = vpack.c.b16 %v1873, %v1865
    %v2682 = vpack.c.b16 %v1874, %v1866
    %v2683 = vpack.c.b16 %v1883, %v1875
    %v2684 = vpack.c.b16 %v1884, %v1876
    %v2685 = vpack.c.b16 %v1885, %v1877
    %v2686 = vpack.c.b16 %v1886, %v1878
    %v2687 = vpack.c.b16 %v1887, %v1879
    %v2688 = vpack.c.b16 %v1888, %v1880
    %v2689 = vpack.c.b16 %v1889, %v1881
    %v2690 = vpack.c.b16 %v1890, %v1882
    %v2691 = vpack.c.b16 %v1899, %v1891
    %v2692 = vpack.c.b16 %v1900, %v1892
    %v2693 = vpack.c.b16 %v1901, %v1893
    %v2694 = vpack.c.b16 %v1902, %v1894
    %v2695 = vpack.c.b16 %v1903, %v1895
    %v2696 = vpack.c.b16 %v1904, %v1896
    %v2697 = vpack.c.b16 %v1905, %v1897
    %v2698 = vpack.c.b16 %v1906, %v1898
    %v2699 = vpack.c.b16 %v1915, %v1907
    %v2700 = vpack.c.b16 %v1916, %v1908
    %v2701 = vpack.c.b16 %v1917, %v1909
    %v2702 = vpack.c.b16 %v1918, %v1910
    %v2703 = vpack.c.b16 %v1919, %v1911
    %v2704 = vpack.c.b16 %v1920, %v1912
    %v2705 = vpack.c.b16 %v1921, %v1913
    %v2706 = vpack.c.b16 %v1922, %v1914
    %v2707 = vpack.c.b16 %v1931, %v1923
    %v2708 = vpack.c.b16 %v1932, %v1924
    %v2709 = vpack.c.b16 %v1933, %v1925
    %v2710 = vpack.c.b16 %v1934, %v1926
    %v2711 = vpack.c.b16 %v1935, %v1927
    %v2712 = vpack.c.b16 %v1936, %v1928
    %v2713 = vpack.c.b16 %v1937, %v1929
    %v2714 = vpack.c.b16 %v1938, %v1930
    %v2715 = vpack.c.b16 %v1947, %v1939
    %v2716 = vpack.c.b16 %v1948, %v1940
    %v2717 = vpack.c.b16 %v1949, %v1941
    %v2718 = vpack.c.b16 %v1950, %v1942
    %v2719 = vpack.c.b16 %v1951, %v1943
    %v2720 = vpack.c.b16 %v1952, %v1944
    %v2721 = vpack.c.b16 %v1953, %v1945
    %v2722 = vpack.c.b16 %v1954, %v1946
    %v2723 = vpack.c.b16 %v1963, %v1955
    %v2724 = vpack.c.b16 %v1964, %v1956
    %v2725 = vpack.c.b16 %v1965, %v1957
    %v2726 = vpack.c.b16 %v1966, %v1958
    %v2727 = vpack.c.b16 %v1967, %v1959
    %v2728 = vpack.c.b16 %v1968, %v1960
    %v2729 = vpack.c.b16 %v1969, %v1961
    %v2730 = vpack.c.b16 %v1970, %v1962
    %v2731 = vpack.c.b16 %v1979, %v1971
    %v2732 = vpack.c.b16 %v1980, %v1972
    %v2733 = vpack.c.b16 %v1981, %v1973
    %v2734 = vpack.c.b16 %v1982, %v1974
    %v2735 = vpack.c.b16 %v1983, %v1975
    %v2736 = vpack.c.b16 %v1984, %v1976
    %v2737 = vpack.c.b16 %v1985, %v1977
    %v2738 = vpack.c.b16 %v1986, %v1978
    %v2739 = vpack.c.b16 %v1995, %v1987
    %v2740 = vpack.c.b16 %v1996, %v1988
    %v2741 = vpack.c.b16 %v1997, %v1989
    %v2742 = vpack.c.b16 %v1998, %v1990
    %v2743 = vpack.c.b16 %v1999, %v1991
    %v2744 = vpack.c.b16 %v2000, %v1992
    %v2745 = vpack.c.b16 %v2001, %v1993
    %v2746 = vpack.c.b16 %v2002, %v1994
    %v2747 = vpack.c.b16 %v2011, %v2003
    %v2748 = vpack.c.b16 %v2012, %v2004
    %v2749 = vpack.c.b16 %v2013, %v2005
    %v2750 = vpack.c.b16 %v2014, %v2006
    %v2751 = vpack.c.b16 %v2015, %v2007
    %v2752 = vpack.c.b16 %v2016, %v2008
    %v2753 = vpack.c.b16 %v2017, %v2009
    %v2754 = vpack.c.b16 %v2018, %v2010
    %v2755 = vpack.c.b16 %v2027, %v2019
    %v2756 = vpack.c.b16 %v2028, %v2020
    %v2757 = vpack.c.b16 %v2029, %v2021
    %v2758 = vpack.c.b16 %v2030, %v2022
    %v2759 = vpack.c.b16 %v2031, %v2023
    %v2760 = vpack.c.b16 %v2032, %v2024
    %v2761 = vpack.c.b16 %v2033, %v2025
    %v2762 = vpack.c.b16 %v2034, %v2026
    %v2763 = vpack.c.b16 %v2043, %v2035
    %v2764 = vpack.c.b16 %v2044, %v2036
    %v2765 = vpack.c.b16 %v2045, %v2037
    %v2766 = vpack.c.b16 %v2046, %v2038
    %v2767 = vpack.c.b16 %v2047, %v2039
    %v2768 = vpack.c.b16 %v2048, %v2040
    %v2769 = vpack.c.b16 %v2049, %v2041
    %v2770 = vpack.c.b16 %v2050, %v2042
    %v2771 = vpack.c.b16 %v2059, %v2051
    %v2772 = vpack.c.b16 %v2060, %v2052
    %v2773 = vpack.c.b16 %v2061, %v2053
    %v2774 = vpack.c.b16 %v2062, %v2054
    %v2775 = vpack.c.b16 %v2063, %v2055
    %v2776 = vpack.c.b16 %v2064, %v2056
    %v2777 = vpack.c.b16 %v2065, %v2057
    %v2778 = vpack.c.b16 %v2066, %v2058
    %v2779 = vpack.c.b16 %v2075, %v2067
    %v2780 = vpack.c.b16 %v2076, %v2068
    %v2781 = vpack.c.b16 %v2077, %v2069
    %v2782 = vpack.c.b16 %v2078, %v2070
    %v2783 = vpack.c.b16 %v2079, %v2071
    %v2784 = vpack.c.b16 %v2080, %v2072
    %v2785 = vpack.c.b16 %v2081, %v2073
    %v2786 = vpack.c.b16 %v2082, %v2074
    %v2787 = vpack.c.b16 %v2091, %v2083
    %v2788 = vpack.c.b16 %v2092, %v2084
    %v2789 = vpack.c.b16 %v2093, %v2085
    %v2790 = vpack.c.b16 %v2094, %v2086
    %v2791 = vpack.c.b16 %v2095, %v2087
    %v2792 = vpack.c.b16 %v2096, %v2088
    %v2793 = vpack.c.b16 %v2097, %v2089
    %v2794 = vpack.c.b16 %v2098, %v2090
    %v2795 = vpack.c.b16 %v2107, %v2099
    %v2796 = vpack.c.b16 %v2108, %v2100
    %v2797 = vpack.c.b16 %v2109, %v2101
    %v2798 = vpack.c.b16 %v2110, %v2102
    %v2799 = vpack.c.b16 %v2111, %v2103
    %v2800 = vpack.c.b16 %v2112, %v2104
    %v2801 = vpack.c.b16 %v2113, %v2105
    %v2802 = vpack.c.b16 %v2114, %v2106
    %v2803 = vpack.c.b16 %v2123, %v2115
    %v2804 = vpack.c.b16 %v2124, %v2116
    %v2805 = vpack.c.b16 %v2125, %v2117
    %v2806 = vpack.c.b16 %v2126, %v2118
    %v2807 = vpack.c.b16 %v2127, %v2119
    %v2808 = vpack.c.b16 %v2128, %v2120
    %v2809 = vpack.c.b16 %v2129, %v2121
    %v2810 = vpack.c.b16 %v2130, %v2122
    %v2811 = vpack.c.b16 %v2139, %v2131
    %v2812 = vpack.c.b16 %v2140, %v2132
    %v2813 = vpack.c.b16 %v2141, %v2133
    %v2814 = vpack.c.b16 %v2142, %v2134
    %v2815 = vpack.c.b16 %v2143, %v2135
    %v2816 = vpack.c.b16 %v2144, %v2136
    %v2817 = vpack.c.b16 %v2145, %v2137
    %v2818 = vpack.c.b16 %v2146, %v2138
    %v2819 = vpack.c.b16 %v2155, %v2147
    %v2820 = vpack.c.b16 %v2156, %v2148
    %v2821 = vpack.c.b16 %v2157, %v2149
    %v2822 = vpack.c.b16 %v2158, %v2150
    %v2823 = vpack.c.b16 %v2159, %v2151
    %v2824 = vpack.c.b16 %v2160, %v2152
    %v2825 = vpack.c.b16 %v2161, %v2153
    %v2826 = vpack.c.b16 %v2162, %v2154
    %v2827 = vpack.c.b16 %v2171, %v2163
    %v2828 = vpack.c.b16 %v2172, %v2164
    %v2829 = vpack.c.b16 %v2173, %v2165
    %v2830 = vpack.c.b16 %v2174, %v2166
    %v2831 = vpack.c.b16 %v2175, %v2167
    %v2832 = vpack.c.b16 %v2176, %v2168
    %v2833 = vpack.c.b16 %v2177, %v2169
    %v2834 = vpack.c.b16 %v2178, %v2170
    %v2835 = vpack.c.b16 %v2187, %v2179
    %v2836 = vpack.c.b16 %v2188, %v2180
    %v2837 = vpack.c.b16 %v2189, %v2181
    %v2838 = vpack.c.b16 %v2190, %v2182
    %v2839 = vpack.c.b16 %v2191, %v2183
    %v2840 = vpack.c.b16 %v2192, %v2184
    %v2841 = vpack.c.b16 %v2193, %v2185
    %v2842 = vpack.c.b16 %v2194, %v2186
    %v2843 = vpack.c.b16 %v2203, %v2195
    %v2844 = vpack.c.b16 %v2204, %v2196
    %v2845 = vpack.c.b16 %v2205, %v2197
    %v2846 = vpack.c.b16 %v2206, %v2198
    %v2847 = vpack.c.b16 %v2207, %v2199
    %v2848 = vpack.c.b16 %v2208, %v2200
    %v2849 = vpack.c.b16 %v2209, %v2201
    %v2850 = vpack.c.b16 %v2210, %v2202
    %v2851 = vpack.c.b16 %v2219, %v2211
    %v2852 = vpack.c.b16 %v2220, %v2212
    %v2853 = vpack.c.b16 %v2221, %v2213
    %v2854 = vpack.c.b16 %v2222, %v2214
    %v2855 = vpack.c.b16 %v2223, %v2215
    %v2856 = vpack.c.b16 %v2224, %v2216
    %v2857 = vpack.c.b16 %v2225, %v2217
    %v2858 = vpack.c.b16 %v2226, %v2218
    %v2859 = vpack.c.b16 %v2235, %v2227
    %v2860 = vpack.c.b16 %v2236, %v2228
    %v2861 = vpack.c.b16 %v2237, %v2229
    %v2862 = vpack.c.b16 %v2238, %v2230
    %v2863 = vpack.c.b16 %v2239, %v2231
    %v2864 = vpack.c.b16 %v2240, %v2232
    %v2865 = vpack.c.b16 %v2241, %v2233
    %v2866 = vpack.c.b16 %v2242, %v2234
    %v2867 = vpack.c.b16 %v2251, %v2243
    %v2868 = vpack.c.b16 %v2252, %v2244
    %v2869 = vpack.c.b16 %v2253, %v2245
    %v2870 = vpack.c.b16 %v2254, %v2246
    %v2871 = vpack.c.b16 %v2255, %v2247
    %v2872 = vpack.c.b16 %v2256, %v2248
    %v2873 = vpack.c.b16 %v2257, %v2249
    %v2874 = vpack.c.b16 %v2258, %v2250
    %v2875 = vpack.c.b16 %v2267, %v2259
    %v2876 = vpack.c.b16 %v2268, %v2260
    %v2877 = vpack.c.b16 %v2269, %v2261
    %v2878 = vpack.c.b16 %v2270, %v2262
    %v2879 = vpack.c.b16 %v2271, %v2263
    %v2880 = vpack.c.b16 %v2272, %v2264
    %v2881 = vpack.c.b16 %v2273, %v2265
    %v2882 = vpack.c.b16 %v2274, %v2266
    %v2883 = vpack.c.b16 %v2283, %v2275
    %v2884 = vpack.c.b16 %v2284, %v2276
    %v2885 = vpack.c.b16 %v2285, %v2277
    %v2886 = vpack.c.b16 %v2286, %v2278
    %v2887 = vpack.c.b16 %v2287, %v2279
    %v2888 = vpack.c.b16 %v2288, %v2280
    %v2889 = vpack.c.b16 %v2289, %v2281
    %v2890 = vpack.c.b16 %v2290, %v2282
    %v2891 = vpack.c.b16 %v2299, %v2291
    %v2892 = vpack.c.b16 %v2300, %v2292
    %v2893 = vpack.c.b16 %v2301, %v2293
    %v2894 = vpack.c.b16 %v2302, %v2294
    %v2895 = vpack.c.b16 %v2303, %v2295
    %v2896 = vpack.c.b16 %v2304, %v2296
    %v2897 = vpack.c.b16 %v2305, %v2297
    %v2898 = vpack.c.b16 %v2306, %v2298
    %v2899 = vpack.c.b16 %v2315, %v2307
    %v2900 = vpack.c.b16 %v2316, %v2308
    %v2901 = vpack.c.b16 %v2317, %v2309
    %v2902 = vpack.c.b16 %v2318, %v2310
    %v2903 = vpack.c.b16 %v2319, %v2311
    %v2904 = vpack.c.b16 %v2320, %v2312
    %v2905 = vpack.c.b16 %v2321, %v2313
    %v2906 = vpack.c.b16 %v2322, %v2314
    %v2907 = vpack.c.b16 %v2331, %v2323
    %v2908 = vpack.c.b16 %v2332, %v2324
    %v2909 = vpack.c.b16 %v2333, %v2325
    %v2910 = vpack.c.b16 %v2334, %v2326
    %v2911 = vpack.c.b16 %v2335, %v2327
    %v2912 = vpack.c.b16 %v2336, %v2328
    %v2913 = vpack.c.b16 %v2337, %v2329
    %v2914 = vpack.c.b16 %v2338, %v2330
    %v2915 = vpack.c.b16 %v2347, %v2339
    %v2916 = vpack.c.b16 %v2348, %v2340
    %v2917 = vpack.c.b16 %v2349, %v2341
    %v2918 = vpack.c.b16 %v2350, %v2342
    %v2919 = vpack.c.b16 %v2351, %v2343
    %v2920 = vpack.c.b16 %v2352, %v2344
    %v2921 = vpack.c.b16 %v2353, %v2345
    %v2922 = vpack.c.b16 %v2354, %v2346
    %v2923 = vpack.c.b16 %v2363, %v2355
    %v2924 = vpack.c.b16 %v2364, %v2356
    %v2925 = vpack.c.b16 %v2365, %v2357
    %v2926 = vpack.c.b16 %v2366, %v2358
    %v2927 = vpack.c.b16 %v2367, %v2359
    %v2928 = vpack.c.b16 %v2368, %v2360
    %v2929 = vpack.c.b16 %v2369, %v2361
    %v2930 = vpack.c.b16 %v2370, %v2362
    %v2931 = vpack.c.b16 %v2379, %v2371
    %v2932 = vpack.c.b16 %v2380, %v2372
    %v2933 = vpack.c.b16 %v2381, %v2373
    %v2934 = vpack.c.b16 %v2382, %v2374
    %v2935 = vpack.c.b16 %v2383, %v2375
    %v2936 = vpack.c.b16 %v2384, %v2376
    %v2937 = vpack.c.b16 %v2385, %v2377
    %v2938 = vpack.c.b16 %v2386, %v2378
    %v2939 = vpack.c.b16 %v2395, %v2387
    %v2940 = vpack.c.b16 %v2396, %v2388
    %v2941 = vpack.c.b16 %v2397, %v2389
    %v2942 = vpack.c.b16 %v2398, %v2390
    %v2943 = vpack.c.b16 %v2399, %v2391
    %v2944 = vpack.c.b16 %v2400, %v2392
    %v2945 = vpack.c.b16 %v2401, %v2393
    %v2946 = vpack.c.b16 %v2402, %v2394
    %v2947 = vpack.c.b16 %v2411, %v2403
    %v2948 = vpack.c.b16 %v2412, %v2404
    %v2949 = vpack.c.b16 %v2413, %v2405
    %v2950 = vpack.c.b16 %v2414, %v2406
    %v2951 = vpack.c.b16 %v2415, %v2407
    %v2952 = vpack.c.b16 %v2416, %v2408
    %v2953 = vpack.c.b16 %v2417, %v2409
    %v2954 = vpack.c.b16 %v2418, %v2410
    %v2955 = vpack.c.b16 %v2427, %v2419
    %v2956 = vpack.c.b16 %v2428, %v2420
    %v2957 = vpack.c.b16 %v2429, %v2421
    %v2958 = vpack.c.b16 %v2430, %v2422
    %v2959 = vpack.c.b16 %v2431, %v2423
    %v2960 = vpack.c.b16 %v2432, %v2424
    %v2961 = vpack.c.b16 %v2433, %v2425
    %v2962 = vpack.c.b16 %v2434, %v2426
    %v2963 = vpack.c.b16 %v2443, %v2435
    %v2964 = vpack.c.b16 %v2444, %v2436
    %v2965 = vpack.c.b16 %v2445, %v2437
    %v2966 = vpack.c.b16 %v2446, %v2438
    %v2967 = vpack.c.b16 %v2447, %v2439
    %v2968 = vpack.c.b16 %v2448, %v2440
    %v2969 = vpack.c.b16 %v2449, %v2441
    %v2970 = vpack.c.b16 %v2450, %v2442
    %v2971 = vpack.c.b16 %v2459, %v2451
    %v2972 = vpack.c.b16 %v2460, %v2452
    %v2973 = vpack.c.b16 %v2461, %v2453
    %v2974 = vpack.c.b16 %v2462, %v2454
    %v2975 = vpack.c.b16 %v2463, %v2455
    %v2976 = vpack.c.b16 %v2464, %v2456
    %v2977 = vpack.c.b16 %v2465, %v2457
    %v2978 = vpack.c.b16 %v2466, %v2458
    %3491 = vmatprep.subr.bf16.mxu0 %v2524
    %3492 = vmatpush1.bf16.msra.mxu0 %v2523
    %3493 = vmatprep.subr.bf16.mxu0 %v2516
    %3494 = vmatpush1.bf16.msra.mxu0 %v2515
    %3495 = vmatprep.subr.bf16.mxu0 %v2508
    %3496 = vmatpush1.bf16.msra.mxu0 %v2507
    %3497 = vmatprep.subr.bf16.mxu0 %v2500
    %3498 = vmatpush1.bf16.msra.mxu0 %v2499
    %3499 = vmatprep.subr.bf16.mxu0 %v2492
    %3500 = vmatpush1.bf16.msra.mxu0 %v2491
    %3501 = vmatprep.subr.bf16.mxu0 %v2484
    %3502 = vmatpush1.bf16.msra.mxu0 %v2483
    %3503 = vmatprep.subr.bf16.mxu0 %v2476
    %3504 = vmatpush1.bf16.msra.mxu0 %v2475
    %3505 = vmatprep.subr.bf16.mxu0 %v2468
    %3506 = vmatpush1.bf16.msra.mxu0 %v2467
    %3507 = vmatprep.subr.bf16.mxu0 %v2588
    %3508 = vmatpush2.bf16.msra.mxu0 %v2587
    %3509 = vmatprep.subr.bf16.mxu0 %v2580
    %3510 = vmatpush2.bf16.msra.mxu0 %v2579
    %3511 = vmatprep.subr.bf16.mxu0 %v2572
    %3512 = vmatpush2.bf16.msra.mxu0 %v2571
    %3513 = vmatprep.subr.bf16.mxu0 %v2564
    %3514 = vmatpush2.bf16.msra.mxu0 %v2563
    %3515 = vmatprep.subr.bf16.mxu0 %v2556
    %3516 = vmatpush2.bf16.msra.mxu0 %v2555
    %3517 = vmatprep.subr.bf16.mxu0 %v2548
    %3518 = vmatpush2.bf16.msra.mxu0 %v2547
    %3519 = vmatprep.subr.bf16.mxu0 %v2540
    %3520 = vmatpush2.bf16.msra.mxu0 %v2539
    %3521 = vmatprep.subr.bf16.mxu0 %v2532
    %3522 = vmatpush2.bf16.msra.mxu0 %v2531
    %3523 = vmatprep.mubr.bf16.mxu0 %v370
    %3524 = vmatmul.mubr.bf16.gmra.mxu0 %v369
    %v3525 = vpop.f32.mrf.mxu0
    %v3526 = vadd.f32 %v894, %v3525
    %v3527 = vpop.f32.mrf.mxu0
    %v3528 = vadd.f32 %v898, %v3527
    %v3529 = vpop.f32.mrf.mxu0
    %v3530 = vpop.f32.mrf.mxu0
    %3531 = vdwg.mxu0
    %3532 = vmatprep.subr.bf16.mxu0 %v2652
    %3533 = vmatpush1.bf16.msra.mxu0 %v2651
    %3534 = vmatprep.subr.bf16.mxu0 %v2644
    %3535 = vmatpush1.bf16.msra.mxu0 %v2643
    %3536 = vmatprep.subr.bf16.mxu0 %v2636
    %3537 = vmatpush1.bf16.msra.mxu0 %v2635
    %3538 = vmatprep.subr.bf16.mxu0 %v2628
    %3539 = vmatpush1.bf16.msra.mxu0 %v2627
    %3540 = vmatprep.subr.bf16.mxu0 %v2620
    %3541 = vmatpush1.bf16.msra.mxu0 %v2619
    %3542 = vmatprep.subr.bf16.mxu0 %v2612
    %3543 = vmatpush1.bf16.msra.mxu0 %v2611
    %3544 = vmatprep.subr.bf16.mxu0 %v2604
    %3545 = vmatpush1.bf16.msra.mxu0 %v2603
    %3546 = vmatprep.subr.bf16.mxu0 %v2596
    %3547 = vmatpush1.bf16.msra.mxu0 %v2595
    %3548 = vmatprep.subr.bf16.mxu0 %v2716
    %3549 = vmatpush2.bf16.msra.mxu0 %v2715
    %3550 = vmatprep.subr.bf16.mxu0 %v2708
    %3551 = vmatpush2.bf16.msra.mxu0 %v2707
    %3552 = vmatprep.subr.bf16.mxu0 %v2700
    %3553 = vmatpush2.bf16.msra.mxu0 %v2699
    %3554 = vmatprep.subr.bf16.mxu0 %v2692
    %3555 = vmatpush2.bf16.msra.mxu0 %v2691
    %3556 = vmatprep.subr.bf16.mxu0 %v2684
    %3557 = vmatpush2.bf16.msra.mxu0 %v2683
    %3558 = vmatprep.subr.bf16.mxu0 %v2676
    %3559 = vmatpush2.bf16.msra.mxu0 %v2675
    %3560 = vmatprep.subr.bf16.mxu0 %v2668
    %3561 = vmatpush2.bf16.msra.mxu0 %v2667
    %3562 = vmatprep.subr.bf16.mxu0 %v2660
    %3563 = vmatpush2.bf16.msra.mxu0 %v2659
    %3564 = vmatprep.mubr.bf16.mxu0 %v372
    %3565 = vmatmul.mubr.bf16.gmra.mxu0 %v371
    %v3566 = vpop.f32.mrf.mxu0
    %v3567 = vadd.f32 %v3526, %v3566
    %v3568 = vpop.f32.mrf.mxu0
    %v3569 = vadd.f32 %v3528, %v3568
    %v3570 = vpop.f32.mrf.mxu0
    %v3571 = vpop.f32.mrf.mxu0
    %3572 = vdwg.mxu0
    %3573 = vmatprep.subr.bf16.mxu0 %v2780
    %3574 = vmatpush1.bf16.msra.mxu0 %v2779
    %3575 = vmatprep.subr.bf16.mxu0 %v2772
    %3576 = vmatpush1.bf16.msra.mxu0 %v2771
    %3577 = vmatprep.subr.bf16.mxu0 %v2764
    %3578 = vmatpush1.bf16.msra.mxu0 %v2763
    %3579 = vmatprep.subr.bf16.mxu0 %v2756
    %3580 = vmatpush1.bf16.msra.mxu0 %v2755
    %3581 = vmatprep.subr.bf16.mxu0 %v2748
    %3582 = vmatpush1.bf16.msra.mxu0 %v2747
    %3583 = vmatprep.subr.bf16.mxu0 %v2740
    %3584 = vmatpush1.bf16.msra.mxu0 %v2739
    %3585 = vmatprep.subr.bf16.mxu0 %v2732
    %3586 = vmatpush1.bf16.msra.mxu0 %v2731
    %3587 = vmatprep.subr.bf16.mxu0 %v2724
    %3588 = vmatpush1.bf16.msra.mxu0 %v2723
    %3589 = vmatprep.subr.bf16.mxu0 %v2844
    %3590 = vmatpush2.bf16.msra.mxu0 %v2843
    %3591 = vmatprep.subr.bf16.mxu0 %v2836
    %3592 = vmatpush2.bf16.msra.mxu0 %v2835
    %3593 = vmatprep.subr.bf16.mxu0 %v2828
    %3594 = vmatpush2.bf16.msra.mxu0 %v2827
    %3595 = vmatprep.subr.bf16.mxu0 %v2820
    %3596 = vmatpush2.bf16.msra.mxu0 %v2819
    %3597 = vmatprep.subr.bf16.mxu0 %v2812
    %3598 = vmatpush2.bf16.msra.mxu0 %v2811
    %3599 = vmatprep.subr.bf16.mxu0 %v2804
    %3600 = vmatpush2.bf16.msra.mxu0 %v2803
    %3601 = vmatprep.subr.bf16.mxu0 %v2796
    %3602 = vmatpush2.bf16.msra.mxu0 %v2795
    %3603 = vmatprep.subr.bf16.mxu0 %v2788
    %3604 = vmatpush2.bf16.msra.mxu0 %v2787
    %3605 = vmatprep.mubr.bf16.mxu0 %v374
    %3606 = vmatmul.mubr.bf16.gmra.mxu0 %v373
    %v3607 = vpop.f32.mrf.mxu0
    %v3608 = vadd.f32 %v3567, %v3607
    %v3609 = vpop.f32.mrf.mxu0
    %v3610 = vadd.f32 %v3569, %v3609
    %v3611 = vpop.f32.mrf.mxu0
    %v3612 = vpop.f32.mrf.mxu0
    %3613 = vdwg.mxu0
    %3614 = vmatprep.subr.bf16.mxu0 %v2908
    %3615 = vmatpush1.bf16.msra.mxu0 %v2907
    %3616 = vmatprep.subr.bf16.mxu0 %v2900
    %3617 = vmatpush1.bf16.msra.mxu0 %v2899
    %3618 = vmatprep.subr.bf16.mxu0 %v2892
    %3619 = vmatpush1.bf16.msra.mxu0 %v2891
    %3620 = vmatprep.subr.bf16.mxu0 %v2884
    %3621 = vmatpush1.bf16.msra.mxu0 %v2883
    %3622 = vmatprep.subr.bf16.mxu0 %v2876
    %3623 = vmatpush1.bf16.msra.mxu0 %v2875
    %3624 = vmatprep.subr.bf16.mxu0 %v2868
    %3625 = vmatpush1.bf16.msra.mxu0 %v2867
    %3626 = vmatprep.subr.bf16.mxu0 %v2860
    %3627 = vmatpush1.bf16.msra.mxu0 %v2859
    %3628 = vmatprep.subr.bf16.mxu0 %v2852
    %3629 = vmatpush1.bf16.msra.mxu0 %v2851
    %3630 = vmatprep.subr.bf16.mxu0 %v2972
    %3631 = vmatpush2.bf16.msra.mxu0 %v2971
    %3632 = vmatprep.subr.bf16.mxu0 %v2964
    %3633 = vmatpush2.bf16.msra.mxu0 %v2963
    %3634 = vmatprep.subr.bf16.mxu0 %v2956
    %3635 = vmatpush2.bf16.msra.mxu0 %v2955
    %3636 = vmatprep.subr.bf16.mxu0 %v2948
    %3637 = vmatpush2.bf16.msra.mxu0 %v2947
    %3638 = vmatprep.subr.bf16.mxu0 %v2940
    %3639 = vmatpush2.bf16.msra.mxu0 %v2939
    %3640 = vmatprep.subr.bf16.mxu0 %v2932
    %3641 = vmatpush2.bf16.msra.mxu0 %v2931
    %3642 = vmatprep.subr.bf16.mxu0 %v2924
    %3643 = vmatpush2.bf16.msra.mxu0 %v2923
    %3644 = vmatprep.subr.bf16.mxu0 %v2916
    %3645 = vmatpush2.bf16.msra.mxu0 %v2915
    %3646 = vmatprep.mubr.bf16.mxu0 %v376
    %3647 = vmatmul.mubr.bf16.gmra.mxu0 %v375
    %v3648 = vpop.f32.mrf.mxu0
    %v3649 = vadd.f32 %v3608, %v3648
    %v3650 = vpop.f32.mrf.mxu0
    %v3651 = vadd.f32 %v3610, %v3650
    %v3652 = vpop.f32.mrf.mxu0
    %v3653 = vpop.f32.mrf.mxu0
    %3654 = vdwg.mxu0
    %3655 = vmatprep.subr.bf16.mxu0 %v2526
    %3656 = vmatpush1.bf16.msra.mxu0 %v2525
    %3657 = vmatprep.subr.bf16.mxu0 %v2518
    %3658 = vmatpush1.bf16.msra.mxu0 %v2517
    %3659 = vmatprep.subr.bf16.mxu0 %v2510
    %3660 = vmatpush1.bf16.msra.mxu0 %v2509
    %3661 = vmatprep.subr.bf16.mxu0 %v2502
    %3662 = vmatpush1.bf16.msra.mxu0 %v2501
    %3663 = vmatprep.subr.bf16.mxu0 %v2494
    %3664 = vmatpush1.bf16.msra.mxu0 %v2493
    %3665 = vmatprep.subr.bf16.mxu0 %v2486
    %3666 = vmatpush1.bf16.msra.mxu0 %v2485
    %3667 = vmatprep.subr.bf16.mxu0 %v2478
    %3668 = vmatpush1.bf16.msra.mxu0 %v2477
    %3669 = vmatprep.subr.bf16.mxu0 %v2470
    %3670 = vmatpush1.bf16.msra.mxu0 %v2469
    %3671 = vmatprep.subr.bf16.mxu0 %v2590
    %3672 = vmatpush2.bf16.msra.mxu0 %v2589
    %3673 = vmatprep.subr.bf16.mxu0 %v2582
    %3674 = vmatpush2.bf16.msra.mxu0 %v2581
    %3675 = vmatprep.subr.bf16.mxu0 %v2574
    %3676 = vmatpush2.bf16.msra.mxu0 %v2573
    %3677 = vmatprep.subr.bf16.mxu0 %v2566
    %3678 = vmatpush2.bf16.msra.mxu0 %v2565
    %3679 = vmatprep.subr.bf16.mxu0 %v2558
    %3680 = vmatpush2.bf16.msra.mxu0 %v2557
    %3681 = vmatprep.subr.bf16.mxu0 %v2550
    %3682 = vmatpush2.bf16.msra.mxu0 %v2549
    %3683 = vmatprep.subr.bf16.mxu0 %v2542
    %3684 = vmatpush2.bf16.msra.mxu0 %v2541
    %3685 = vmatprep.subr.bf16.mxu0 %v2534
    %3686 = vmatpush2.bf16.msra.mxu0 %v2533
    %3687 = vmatprep.mubr.bf16.mxu0 %v370
    %3688 = vmatmul.mubr.bf16.gmra.mxu0 %v369
    %v3689 = vpop.f32.mrf.mxu0
    %v3690 = vadd.f32 %v902, %v3689
    %v3691 = vpop.f32.mrf.mxu0
    %v3692 = vadd.f32 %v906, %v3691
    %v3693 = vpop.f32.mrf.mxu0
    %v3694 = vpop.f32.mrf.mxu0
    %3695 = vdwg.mxu0
    %3696 = vmatprep.subr.bf16.mxu0 %v2654
    %3697 = vmatpush1.bf16.msra.mxu0 %v2653
    %3698 = vmatprep.subr.bf16.mxu0 %v2646
    %3699 = vmatpush1.bf16.msra.mxu0 %v2645
    %3700 = vmatprep.subr.bf16.mxu0 %v2638
    %3701 = vmatpush1.bf16.msra.mxu0 %v2637
    %3702 = vmatprep.subr.bf16.mxu0 %v2630
    %3703 = vmatpush1.bf16.msra.mxu0 %v2629
    %3704 = vmatprep.subr.bf16.mxu0 %v2622
    %3705 = vmatpush1.bf16.msra.mxu0 %v2621
    %3706 = vmatprep.subr.bf16.mxu0 %v2614
    %3707 = vmatpush1.bf16.msra.mxu0 %v2613
    %3708 = vmatprep.subr.bf16.mxu0 %v2606
    %3709 = vmatpush1.bf16.msra.mxu0 %v2605
    %3710 = vmatprep.subr.bf16.mxu0 %v2598
    %3711 = vmatpush1.bf16.msra.mxu0 %v2597
    %3712 = vmatprep.subr.bf16.mxu0 %v2718
    %3713 = vmatpush2.bf16.msra.mxu0 %v2717
    %3714 = vmatprep.subr.bf16.mxu0 %v2710
    %3715 = vmatpush2.bf16.msra.mxu0 %v2709
    %3716 = vmatprep.subr.bf16.mxu0 %v2702
    %3717 = vmatpush2.bf16.msra.mxu0 %v2701
    %3718 = vmatprep.subr.bf16.mxu0 %v2694
    %3719 = vmatpush2.bf16.msra.mxu0 %v2693
    %3720 = vmatprep.subr.bf16.mxu0 %v2686
    %3721 = vmatpush2.bf16.msra.mxu0 %v2685
    %3722 = vmatprep.subr.bf16.mxu0 %v2678
    %3723 = vmatpush2.bf16.msra.mxu0 %v2677
    %3724 = vmatprep.subr.bf16.mxu0 %v2670
    %3725 = vmatpush2.bf16.msra.mxu0 %v2669
    %3726 = vmatprep.subr.bf16.mxu0 %v2662
    %3727 = vmatpush2.bf16.msra.mxu0 %v2661
    %3728 = vmatprep.mubr.bf16.mxu0 %v372
    %3729 = vmatmul.mubr.bf16.gmra.mxu0 %v371
    %v3730 = vpop.f32.mrf.mxu0
    %v3731 = vadd.f32 %v3690, %v3730
    %v3732 = vpop.f32.mrf.mxu0
    %v3733 = vadd.f32 %v3692, %v3732
    %v3734 = vpop.f32.mrf.mxu0
    %v3735 = vpop.f32.mrf.mxu0
    %3736 = vdwg.mxu0
    %3737 = vmatprep.subr.bf16.mxu0 %v2782
    %3738 = vmatpush1.bf16.msra.mxu0 %v2781
    %3739 = vmatprep.subr.bf16.mxu0 %v2774
    %3740 = vmatpush1.bf16.msra.mxu0 %v2773
    %3741 = vmatprep.subr.bf16.mxu0 %v2766
    %3742 = vmatpush1.bf16.msra.mxu0 %v2765
    %3743 = vmatprep.subr.bf16.mxu0 %v2758
    %3744 = vmatpush1.bf16.msra.mxu0 %v2757
    %3745 = vmatprep.subr.bf16.mxu0 %v2750
    %3746 = vmatpush1.bf16.msra.mxu0 %v2749
    %3747 = vmatprep.subr.bf16.mxu0 %v2742
    %3748 = vmatpush1.bf16.msra.mxu0 %v2741
    %3749 = vmatprep.subr.bf16.mxu0 %v2734
    %3750 = vmatpush1.bf16.msra.mxu0 %v2733
    %3751 = vmatprep.subr.bf16.mxu0 %v2726
    %3752 = vmatpush1.bf16.msra.mxu0 %v2725
    %3753 = vmatprep.subr.bf16.mxu0 %v2846
    %3754 = vmatpush2.bf16.msra.mxu0 %v2845
    %3755 = vmatprep.subr.bf16.mxu0 %v2838
    %3756 = vmatpush2.bf16.msra.mxu0 %v2837
    %3757 = vmatprep.subr.bf16.mxu0 %v2830
    %3758 = vmatpush2.bf16.msra.mxu0 %v2829
    %3759 = vmatprep.subr.bf16.mxu0 %v2822
    %3760 = vmatpush2.bf16.msra.mxu0 %v2821
    %3761 = vmatprep.subr.bf16.mxu0 %v2814
    %3762 = vmatpush2.bf16.msra.mxu0 %v2813
    %3763 = vmatprep.subr.bf16.mxu0 %v2806
    %3764 = vmatpush2.bf16.msra.mxu0 %v2805
    %3765 = vmatprep.subr.bf16.mxu0 %v2798
    %3766 = vmatpush2.bf16.msra.mxu0 %v2797
    %3767 = vmatprep.subr.bf16.mxu0 %v2790
    %3768 = vmatpush2.bf16.msra.mxu0 %v2789
    %3769 = vmatprep.mubr.bf16.mxu0 %v374
    %3770 = vmatmul.mubr.bf16.gmra.mxu0 %v373
    %v3771 = vpop.f32.mrf.mxu0
    %v3772 = vadd.f32 %v3731, %v3771
    %v3773 = vpop.f32.mrf.mxu0
    %v3774 = vadd.f32 %v3733, %v3773
    %v3775 = vpop.f32.mrf.mxu0
    %v3776 = vpop.f32.mrf.mxu0
    %3777 = vdwg.mxu0
    %3778 = vmatprep.subr.bf16.mxu0 %v2910
    %3779 = vmatpush1.bf16.msra.mxu0 %v2909
    %3780 = vmatprep.subr.bf16.mxu0 %v2902
    %3781 = vmatpush1.bf16.msra.mxu0 %v2901
    %3782 = vmatprep.subr.bf16.mxu0 %v2894
    %3783 = vmatpush1.bf16.msra.mxu0 %v2893
    %3784 = vmatprep.subr.bf16.mxu0 %v2886
    %3785 = vmatpush1.bf16.msra.mxu0 %v2885
    %3786 = vmatprep.subr.bf16.mxu0 %v2878
    %3787 = vmatpush1.bf16.msra.mxu0 %v2877
    %3788 = vmatprep.subr.bf16.mxu0 %v2870
    %3789 = vmatpush1.bf16.msra.mxu0 %v2869
    %3790 = vmatprep.subr.bf16.mxu0 %v2862
    %3791 = vmatpush1.bf16.msra.mxu0 %v2861
    %3792 = vmatprep.subr.bf16.mxu0 %v2854
    %3793 = vmatpush1.bf16.msra.mxu0 %v2853
    %3794 = vmatprep.subr.bf16.mxu0 %v2974
    %3795 = vmatpush2.bf16.msra.mxu0 %v2973
    %3796 = vmatprep.subr.bf16.mxu0 %v2966
    %3797 = vmatpush2.bf16.msra.mxu0 %v2965
    %3798 = vmatprep.subr.bf16.mxu0 %v2958
    %3799 = vmatpush2.bf16.msra.mxu0 %v2957
    %3800 = vmatprep.subr.bf16.mxu0 %v2950
    %3801 = vmatpush2.bf16.msra.mxu0 %v2949
    %3802 = vmatprep.subr.bf16.mxu0 %v2942
    %3803 = vmatpush2.bf16.msra.mxu0 %v2941
    %3804 = vmatprep.subr.bf16.mxu0 %v2934
    %3805 = vmatpush2.bf16.msra.mxu0 %v2933
    %3806 = vmatprep.subr.bf16.mxu0 %v2926
    %3807 = vmatpush2.bf16.msra.mxu0 %v2925
    %3808 = vmatprep.subr.bf16.mxu0 %v2918
    %3809 = vmatpush2.bf16.msra.mxu0 %v2917
    %3810 = vmatprep.mubr.bf16.mxu0 %v376
    %3811 = vmatmul.mubr.bf16.gmra.mxu0 %v375
    %v3812 = vpop.f32.mrf.mxu0
    %v3813 = vadd.f32 %v3772, %v3812
    %v3814 = vpop.f32.mrf.mxu0
    %v3815 = vadd.f32 %v3774, %v3814
    %v3816 = vpop.f32.mrf.mxu0
    %v3817 = vpop.f32.mrf.mxu0
    %3818 = vdwg.mxu0
    %3819 = vmatprep.subr.bf16.mxu0 %v2528
    %3820 = vmatpush1.bf16.msra.mxu0 %v2527
    %3821 = vmatprep.subr.bf16.mxu0 %v2520
    %3822 = vmatpush1.bf16.msra.mxu0 %v2519
    %3823 = vmatprep.subr.bf16.mxu0 %v2512
    %3824 = vmatpush1.bf16.msra.mxu0 %v2511
    %3825 = vmatprep.subr.bf16.mxu0 %v2504
    %3826 = vmatpush1.bf16.msra.mxu0 %v2503
    %3827 = vmatprep.subr.bf16.mxu0 %v2496
    %3828 = vmatpush1.bf16.msra.mxu0 %v2495
    %3829 = vmatprep.subr.bf16.mxu0 %v2488
    %3830 = vmatpush1.bf16.msra.mxu0 %v2487
    %3831 = vmatprep.subr.bf16.mxu0 %v2480
    %3832 = vmatpush1.bf16.msra.mxu0 %v2479
    %3833 = vmatprep.subr.bf16.mxu0 %v2472
    %3834 = vmatpush1.bf16.msra.mxu0 %v2471
    %3835 = vmatprep.subr.bf16.mxu0 %v2592
    %3836 = vmatpush2.bf16.msra.mxu0 %v2591
    %3837 = vmatprep.subr.bf16.mxu0 %v2584
    %3838 = vmatpush2.bf16.msra.mxu0 %v2583
    %3839 = vmatprep.subr.bf16.mxu0 %v2576
    %3840 = vmatpush2.bf16.msra.mxu0 %v2575
    %3841 = vmatprep.subr.bf16.mxu0 %v2568
    %3842 = vmatpush2.bf16.msra.mxu0 %v2567
    %3843 = vmatprep.subr.bf16.mxu0 %v2560
    %3844 = vmatpush2.bf16.msra.mxu0 %v2559
    %3845 = vmatprep.subr.bf16.mxu0 %v2552
    %3846 = vmatpush2.bf16.msra.mxu0 %v2551
    %3847 = vmatprep.subr.bf16.mxu0 %v2544
    %3848 = vmatpush2.bf16.msra.mxu0 %v2543
    %3849 = vmatprep.subr.bf16.mxu0 %v2536
    %3850 = vmatpush2.bf16.msra.mxu0 %v2535
    %3851 = vmatprep.mubr.bf16.mxu0 %v370
    %3852 = vmatmul.mubr.bf16.gmra.mxu0 %v369
    %v3853 = vpop.f32.mrf.mxu0
    %v3854 = vadd.f32 %v910, %v3853
    %v3855 = vpop.f32.mrf.mxu0
    %v3856 = vadd.f32 %v914, %v3855
    %v3857 = vpop.f32.mrf.mxu0
    %v3858 = vpop.f32.mrf.mxu0
    %3859 = vdwg.mxu0
    %3860 = vmatprep.subr.bf16.mxu0 %v2656
    %3861 = vmatpush1.bf16.msra.mxu0 %v2655
    %3862 = vmatprep.subr.bf16.mxu0 %v2648
    %3863 = vmatpush1.bf16.msra.mxu0 %v2647
    %3864 = vmatprep.subr.bf16.mxu0 %v2640
    %3865 = vmatpush1.bf16.msra.mxu0 %v2639
    %3866 = vmatprep.subr.bf16.mxu0 %v2632
    %3867 = vmatpush1.bf16.msra.mxu0 %v2631
    %3868 = vmatprep.subr.bf16.mxu0 %v2624
    %3869 = vmatpush1.bf16.msra.mxu0 %v2623
    %3870 = vmatprep.subr.bf16.mxu0 %v2616
    %3871 = vmatpush1.bf16.msra.mxu0 %v2615
    %3872 = vmatprep.subr.bf16.mxu0 %v2608
    %3873 = vmatpush1.bf16.msra.mxu0 %v2607
    %3874 = vmatprep.subr.bf16.mxu0 %v2600
    %3875 = vmatpush1.bf16.msra.mxu0 %v2599
    %3876 = vmatprep.subr.bf16.mxu0 %v2720
    %3877 = vmatpush2.bf16.msra.mxu0 %v2719
    %3878 = vmatprep.subr.bf16.mxu0 %v2712
    %3879 = vmatpush2.bf16.msra.mxu0 %v2711
    %3880 = vmatprep.subr.bf16.mxu0 %v2704
    %3881 = vmatpush2.bf16.msra.mxu0 %v2703
    %3882 = vmatprep.subr.bf16.mxu0 %v2696
    %3883 = vmatpush2.bf16.msra.mxu0 %v2695
    %3884 = vmatprep.subr.bf16.mxu0 %v2688
    %3885 = vmatpush2.bf16.msra.mxu0 %v2687
    %3886 = vmatprep.subr.bf16.mxu0 %v2680
    %3887 = vmatpush2.bf16.msra.mxu0 %v2679
    %3888 = vmatprep.subr.bf16.mxu0 %v2672
    %3889 = vmatpush2.bf16.msra.mxu0 %v2671
    %3890 = vmatprep.subr.bf16.mxu0 %v2664
    %3891 = vmatpush2.bf16.msra.mxu0 %v2663
    %3892 = vmatprep.mubr.bf16.mxu0 %v372
    %3893 = vmatmul.mubr.bf16.gmra.mxu0 %v371
    %v3894 = vpop.f32.mrf.mxu0
    %v3895 = vadd.f32 %v3854, %v3894
    %v3896 = vpop.f32.mrf.mxu0
    %v3897 = vadd.f32 %v3856, %v3896
    %v3898 = vpop.f32.mrf.mxu0
    %v3899 = vpop.f32.mrf.mxu0
    %3900 = vdwg.mxu0
    %3901 = vmatprep.subr.bf16.mxu0 %v2784
    %3902 = vmatpush1.bf16.msra.mxu0 %v2783
    %3903 = vmatprep.subr.bf16.mxu0 %v2776
    %3904 = vmatpush1.bf16.msra.mxu0 %v2775
    %3905 = vmatprep.subr.bf16.mxu0 %v2768
    %3906 = vmatpush1.bf16.msra.mxu0 %v2767
    %3907 = vmatprep.subr.bf16.mxu0 %v2760
    %3908 = vmatpush1.bf16.msra.mxu0 %v2759
    %3909 = vmatprep.subr.bf16.mxu0 %v2752
    %3910 = vmatpush1.bf16.msra.mxu0 %v2751
    %3911 = vmatprep.subr.bf16.mxu0 %v2744
    %3912 = vmatpush1.bf16.msra.mxu0 %v2743
    %3913 = vmatprep.subr.bf16.mxu0 %v2736
    %3914 = vmatpush1.bf16.msra.mxu0 %v2735
    %3915 = vmatprep.subr.bf16.mxu0 %v2728
    %3916 = vmatpush1.bf16.msra.mxu0 %v2727
    %3917 = vmatprep.subr.bf16.mxu0 %v2848
    %3918 = vmatpush2.bf16.msra.mxu0 %v2847
    %3919 = vmatprep.subr.bf16.mxu0 %v2840
    %3920 = vmatpush2.bf16.msra.mxu0 %v2839
    %3921 = vmatprep.subr.bf16.mxu0 %v2832
    %3922 = vmatpush2.bf16.msra.mxu0 %v2831
    %3923 = vmatprep.subr.bf16.mxu0 %v2824
    %3924 = vmatpush2.bf16.msra.mxu0 %v2823
    %3925 = vmatprep.subr.bf16.mxu0 %v2816
    %3926 = vmatpush2.bf16.msra.mxu0 %v2815
    %3927 = vmatprep.subr.bf16.mxu0 %v2808
    %3928 = vmatpush2.bf16.msra.mxu0 %v2807
    %3929 = vmatprep.subr.bf16.mxu0 %v2800
    %3930 = vmatpush2.bf16.msra.mxu0 %v2799
    %3931 = vmatprep.subr.bf16.mxu0 %v2792
    %3932 = vmatpush2.bf16.msra.mxu0 %v2791
    %3933 = vmatprep.mubr.bf16.mxu0 %v374
    %3934 = vmatmul.mubr.bf16.gmra.mxu0 %v373
    %v3935 = vpop.f32.mrf.mxu0
    %v3936 = vadd.f32 %v3895, %v3935
    %v3937 = vpop.f32.mrf.mxu0
    %v3938 = vadd.f32 %v3897, %v3937
    %v3939 = vpop.f32.mrf.mxu0
    %v3940 = vpop.f32.mrf.mxu0
    %3941 = vdwg.mxu0
    %3942 = vmatprep.subr.bf16.mxu0 %v2912
    %3943 = vmatpush1.bf16.msra.mxu0 %v2911
    %3944 = vmatprep.subr.bf16.mxu0 %v2904
    %3945 = vmatpush1.bf16.msra.mxu0 %v2903
    %3946 = vmatprep.subr.bf16.mxu0 %v2896
    %3947 = vmatpush1.bf16.msra.mxu0 %v2895
    %3948 = vmatprep.subr.bf16.mxu0 %v2888
    %3949 = vmatpush1.bf16.msra.mxu0 %v2887
    %3950 = vmatprep.subr.bf16.mxu0 %v2880
    %3951 = vmatpush1.bf16.msra.mxu0 %v2879
    %3952 = vmatprep.subr.bf16.mxu0 %v2872
    %3953 = vmatpush1.bf16.msra.mxu0 %v2871
    %3954 = vmatprep.subr.bf16.mxu0 %v2864
    %3955 = vmatpush1.bf16.msra.mxu0 %v2863
    %3956 = vmatprep.subr.bf16.mxu0 %v2856
    %3957 = vmatpush1.bf16.msra.mxu0 %v2855
    %3958 = vmatprep.subr.bf16.mxu0 %v2976
    %3959 = vmatpush2.bf16.msra.mxu0 %v2975
    %3960 = vmatprep.subr.bf16.mxu0 %v2968
    %3961 = vmatpush2.bf16.msra.mxu0 %v2967
    %3962 = vmatprep.subr.bf16.mxu0 %v2960
    %3963 = vmatpush2.bf16.msra.mxu0 %v2959
    %3964 = vmatprep.subr.bf16.mxu0 %v2952
    %3965 = vmatpush2.bf16.msra.mxu0 %v2951
    %3966 = vmatprep.subr.bf16.mxu0 %v2944
    %3967 = vmatpush2.bf16.msra.mxu0 %v2943
    %3968 = vmatprep.subr.bf16.mxu0 %v2936
    %3969 = vmatpush2.bf16.msra.mxu0 %v2935
    %3970 = vmatprep.subr.bf16.mxu0 %v2928
    %3971 = vmatpush2.bf16.msra.mxu0 %v2927
    %3972 = vmatprep.subr.bf16.mxu0 %v2920
    %3973 = vmatpush2.bf16.msra.mxu0 %v2919
    %3974 = vmatprep.mubr.bf16.mxu0 %v376
    %3975 = vmatmul.mubr.bf16.gmra.mxu0 %v375
    %v3976 = vpop.f32.mrf.mxu0
    %v3977 = vadd.f32 %v3936, %v3976
    %v3978 = vpop.f32.mrf.mxu0
    %v3979 = vadd.f32 %v3938, %v3978
    %v3980 = vpop.f32.mrf.mxu0
    %v3981 = vpop.f32.mrf.mxu0
    %3982 = vdwg.mxu0
    %3983 = vmatprep.subr.bf16.mxu0 %v2530
    %3984 = vmatpush1.bf16.msra.mxu0 %v2529
    %3985 = vmatprep.subr.bf16.mxu0 %v2522
    %3986 = vmatpush1.bf16.msra.mxu0 %v2521
    %3987 = vmatprep.subr.bf16.mxu0 %v2514
    %3988 = vmatpush1.bf16.msra.mxu0 %v2513
    %3989 = vmatprep.subr.bf16.mxu0 %v2506
    %3990 = vmatpush1.bf16.msra.mxu0 %v2505
    %3991 = vmatprep.subr.bf16.mxu0 %v2498
    %3992 = vmatpush1.bf16.msra.mxu0 %v2497
    %3993 = vmatprep.subr.bf16.mxu0 %v2490
    %3994 = vmatpush1.bf16.msra.mxu0 %v2489
    %3995 = vmatprep.subr.bf16.mxu0 %v2482
    %3996 = vmatpush1.bf16.msra.mxu0 %v2481
    %3997 = vmatprep.subr.bf16.mxu0 %v2474
    %3998 = vmatpush1.bf16.msra.mxu0 %v2473
    %3999 = vmatprep.subr.bf16.mxu0 %v2594
    %4000 = vmatpush2.bf16.msra.mxu0 %v2593
    %4001 = vmatprep.subr.bf16.mxu0 %v2586
    %4002 = vmatpush2.bf16.msra.mxu0 %v2585
    %4003 = vmatprep.subr.bf16.mxu0 %v2578
    %4004 = vmatpush2.bf16.msra.mxu0 %v2577
    %4005 = vmatprep.subr.bf16.mxu0 %v2570
    %4006 = vmatpush2.bf16.msra.mxu0 %v2569
    %4007 = vmatprep.subr.bf16.mxu0 %v2562
    %4008 = vmatpush2.bf16.msra.mxu0 %v2561
    %4009 = vmatprep.subr.bf16.mxu0 %v2554
    %4010 = vmatpush2.bf16.msra.mxu0 %v2553
    %4011 = vmatprep.subr.bf16.mxu0 %v2546
    %4012 = vmatpush2.bf16.msra.mxu0 %v2545
    %4013 = vmatprep.subr.bf16.mxu0 %v2538
    %4014 = vmatpush2.bf16.msra.mxu0 %v2537
    %4015 = vmatprep.mubr.bf16.mxu0 %v370
    %4016 = vmatmul.mubr.bf16.gmra.mxu0 %v369
    %v4017 = vpop.f32.mrf.mxu0
    %v4018 = vadd.f32 %v918, %v4017
    %v4019 = vpop.f32.mrf.mxu0
    %v4020 = vadd.f32 %v922, %v4019
    %v4021 = vpop.f32.mrf.mxu0
    %v4022 = vpop.f32.mrf.mxu0
    %4023 = vdwg.mxu0
    %4024 = vmatprep.subr.bf16.mxu0 %v2658
    %4025 = vmatpush1.bf16.msra.mxu0 %v2657
    %4026 = vmatprep.subr.bf16.mxu0 %v2650
    %4027 = vmatpush1.bf16.msra.mxu0 %v2649
    %4028 = vmatprep.subr.bf16.mxu0 %v2642
    %4029 = vmatpush1.bf16.msra.mxu0 %v2641
    %4030 = vmatprep.subr.bf16.mxu0 %v2634
    %4031 = vmatpush1.bf16.msra.mxu0 %v2633
    %4032 = vmatprep.subr.bf16.mxu0 %v2626
    %4033 = vmatpush1.bf16.msra.mxu0 %v2625
    %4034 = vmatprep.subr.bf16.mxu0 %v2618
    %4035 = vmatpush1.bf16.msra.mxu0 %v2617
    %4036 = vmatprep.subr.bf16.mxu0 %v2610
    %4037 = vmatpush1.bf16.msra.mxu0 %v2609
    %4038 = vmatprep.subr.bf16.mxu0 %v2602
    %4039 = vmatpush1.bf16.msra.mxu0 %v2601
    %4040 = vmatprep.subr.bf16.mxu0 %v2722
    %4041 = vmatpush2.bf16.msra.mxu0 %v2721
    %4042 = vmatprep.subr.bf16.mxu0 %v2714
    %4043 = vmatpush2.bf16.msra.mxu0 %v2713
    %4044 = vmatprep.subr.bf16.mxu0 %v2706
    %4045 = vmatpush2.bf16.msra.mxu0 %v2705
    %4046 = vmatprep.subr.bf16.mxu0 %v2698
    %4047 = vmatpush2.bf16.msra.mxu0 %v2697
    %4048 = vmatprep.subr.bf16.mxu0 %v2690
    %4049 = vmatpush2.bf16.msra.mxu0 %v2689
    %4050 = vmatprep.subr.bf16.mxu0 %v2682
    %4051 = vmatpush2.bf16.msra.mxu0 %v2681
    %4052 = vmatprep.subr.bf16.mxu0 %v2674
    %4053 = vmatpush2.bf16.msra.mxu0 %v2673
    %4054 = vmatprep.subr.bf16.mxu0 %v2666
    %4055 = vmatpush2.bf16.msra.mxu0 %v2665
    %4056 = vmatprep.mubr.bf16.mxu0 %v372
    %4057 = vmatmul.mubr.bf16.gmra.mxu0 %v371
    %v4058 = vpop.f32.mrf.mxu0
    %v4059 = vadd.f32 %v4018, %v4058
    %v4060 = vpop.f32.mrf.mxu0
    %v4061 = vadd.f32 %v4020, %v4060
    %v4062 = vpop.f32.mrf.mxu0
    %v4063 = vpop.f32.mrf.mxu0
    %4064 = vdwg.mxu0
    %4065 = vmatprep.subr.bf16.mxu0 %v2786
    %4066 = vmatpush1.bf16.msra.mxu0 %v2785
    %4067 = vmatprep.subr.bf16.mxu0 %v2778
    %4068 = vmatpush1.bf16.msra.mxu0 %v2777
    %4069 = vmatprep.subr.bf16.mxu0 %v2770
    %4070 = vmatpush1.bf16.msra.mxu0 %v2769
    %4071 = vmatprep.subr.bf16.mxu0 %v2762
    %4072 = vmatpush1.bf16.msra.mxu0 %v2761
    %4073 = vmatprep.subr.bf16.mxu0 %v2754
    %4074 = vmatpush1.bf16.msra.mxu0 %v2753
    %4075 = vmatprep.subr.bf16.mxu0 %v2746
    %4076 = vmatpush1.bf16.msra.mxu0 %v2745
    %4077 = vmatprep.subr.bf16.mxu0 %v2738
    %4078 = vmatpush1.bf16.msra.mxu0 %v2737
    %4079 = vmatprep.subr.bf16.mxu0 %v2730
    %4080 = vmatpush1.bf16.msra.mxu0 %v2729
    %4081 = vmatprep.subr.bf16.mxu0 %v2850
    %4082 = vmatpush2.bf16.msra.mxu0 %v2849
    %4083 = vmatprep.subr.bf16.mxu0 %v2842
    %4084 = vmatpush2.bf16.msra.mxu0 %v2841
    %4085 = vmatprep.subr.bf16.mxu0 %v2834
    %4086 = vmatpush2.bf16.msra.mxu0 %v2833
    %4087 = vmatprep.subr.bf16.mxu0 %v2826
    %4088 = vmatpush2.bf16.msra.mxu0 %v2825
    %4089 = vmatprep.subr.bf16.mxu0 %v2818
    %4090 = vmatpush2.bf16.msra.mxu0 %v2817
    %4091 = vmatprep.subr.bf16.mxu0 %v2810
    %4092 = vmatpush2.bf16.msra.mxu0 %v2809
    %4093 = vmatprep.subr.bf16.mxu0 %v2802
    %4094 = vmatpush2.bf16.msra.mxu0 %v2801
    %4095 = vmatprep.subr.bf16.mxu0 %v2794
    %4096 = vmatpush2.bf16.msra.mxu0 %v2793
    %4097 = vmatprep.mubr.bf16.mxu0 %v374
    %4098 = vmatmul.mubr.bf16.gmra.mxu0 %v373
    %v4099 = vpop.f32.mrf.mxu0
    %v4100 = vadd.f32 %v4059, %v4099
    %v4101 = vpop.f32.mrf.mxu0
    %v4102 = vadd.f32 %v4061, %v4101
    %v4103 = vpop.f32.mrf.mxu0
    %v4104 = vpop.f32.mrf.mxu0
    %4105 = vdwg.mxu0
    %4106 = vmatprep.subr.bf16.mxu0 %v2914
    %4107 = vmatpush1.bf16.msra.mxu0 %v2913
    %4108 = vmatprep.subr.bf16.mxu0 %v2906
    %4109 = vmatpush1.bf16.msra.mxu0 %v2905
    %4110 = vmatprep.subr.bf16.mxu0 %v2898
    %4111 = vmatpush1.bf16.msra.mxu0 %v2897
    %4112 = vmatprep.subr.bf16.mxu0 %v2890
    %4113 = vmatpush1.bf16.msra.mxu0 %v2889
    %4114 = vmatprep.subr.bf16.mxu0 %v2882
    %4115 = vmatpush1.bf16.msra.mxu0 %v2881
    %4116 = vmatprep.subr.bf16.mxu0 %v2874
    %4117 = vmatpush1.bf16.msra.mxu0 %v2873
    %4118 = vmatprep.subr.bf16.mxu0 %v2866
    %4119 = vmatpush1.bf16.msra.mxu0 %v2865
    %4120 = vmatprep.subr.bf16.mxu0 %v2858
    %4121 = vmatpush1.bf16.msra.mxu0 %v2857
    %4122 = vmatprep.subr.bf16.mxu0 %v2978
    %4123 = vmatpush2.bf16.msra.mxu0 %v2977
    %4124 = vmatprep.subr.bf16.mxu0 %v2970
    %4125 = vmatpush2.bf16.msra.mxu0 %v2969
    %4126 = vmatprep.subr.bf16.mxu0 %v2962
    %4127 = vmatpush2.bf16.msra.mxu0 %v2961
    %4128 = vmatprep.subr.bf16.mxu0 %v2954
    %4129 = vmatpush2.bf16.msra.mxu0 %v2953
    %4130 = vmatprep.subr.bf16.mxu0 %v2946
    %4131 = vmatpush2.bf16.msra.mxu0 %v2945
    %4132 = vmatprep.subr.bf16.mxu0 %v2938
    %4133 = vmatpush2.bf16.msra.mxu0 %v2937
    %4134 = vmatprep.subr.bf16.mxu0 %v2930
    %4135 = vmatpush2.bf16.msra.mxu0 %v2929
    %4136 = vmatprep.subr.bf16.mxu0 %v2922
    %4137 = vmatpush2.bf16.msra.mxu0 %v2921
    %4138 = vmatprep.mubr.bf16.mxu0 %v376
    %4139 = vmatmul.mubr.bf16.gmra.mxu0 %v375
    %v4140 = vpop.f32.mrf.mxu0
    %v4141 = vadd.f32 %v4100, %v4140
    %v4142 = vpop.f32.mrf.mxu0
    %v4143 = vadd.f32 %v4102, %v4142
    %v4144 = vpop.f32.mrf.mxu0
    %v4145 = vpop.f32.mrf.mxu0
    %4146 = vdwg.mxu0
    %v4147 = vmax.f32 %v3649, 0.0
    %v4148 = vmax.f32 %v3651, 0.0
    %v4149 = vmax.f32 %v3813, 0.0
    %v4150 = vmax.f32 %v3815, 0.0
    %v4151 = vmax.f32 %v3977, 0.0
    %v4152 = vmax.f32 %v3979, 0.0
    %v4153 = vmax.f32 %v4141, 0.0
    %v4154 = vmax.f32 %v4143, 0.0
    %v4155 = vpack.c.bf16 %v4147, %v4147
    %v4156 = vpack.c.bf16 %v4148, %v4148
    %v4157 = vpack.c.bf16 %v4149, %v4149
    %v4158 = vpack.c.bf16 %v4150, %v4150
    %v4159 = vpack.c.bf16 %v4151, %v4151
    %v4160 = vpack.c.bf16 %v4152, %v4152
    %v4161 = vpack.c.bf16 %v4153, %v4153
    %v4162 = vpack.c.bf16 %v4154, %v4154
    %v4163 = vld [vmem:[%s5] sm:$0xf]
    %v4164 = vld [vmem:[%s5 + $0x4] sm:$0xf]
    %v4165 = vld [vmem:[%s5 + $0x8] sm:$0xf]
    %v4166 = vld [vmem:[%s5 + $0xc] sm:$0xf]
    %v4167 = vld [vmem:[%s5 + $0x10] sm:$0xf]
    %v4168 = vld [vmem:[%s5 + $0x14] sm:$0xf]
    %v4169 = vld [vmem:[%s5 + $0x18] sm:$0xf]
    %v4170 = vld [vmem:[%s5 + $0x1c] sm:$0xf]
    %v4171 = vld [vmem:[%s5 + $0x20] sm:$0xf]
    %v4172 = vld [vmem:[%s5 + $0x24] sm:$0xf]
    %v4173 = vld [vmem:[%s5 + $0x28] sm:$0xf]
    %v4174 = vld [vmem:[%s5 + $0x2c] sm:$0xf]
    %v4175 = vld [vmem:[%s5 + $0x30] sm:$0xf]
    %v4176 = vld [vmem:[%s5 + $0x34] sm:$0xf]
    %v4177 = vld [vmem:[%s5 + $0x38] sm:$0xf]
    %v4178 = vld [vmem:[%s5 + $0x3c] sm:$0xf]
    %v4179 = vld [vmem:[%s5 + $0x40] sm:$0xf]
    %v4180 = vld [vmem:[%s5 + $0x44] sm:$0xf]
    %v4181 = vld [vmem:[%s5 + $0x48] sm:$0xf]
    %v4182 = vld [vmem:[%s5 + $0x4c] sm:$0xf]
    %v4183 = vld [vmem:[%s5 + $0x50] sm:$0xf]
    %v4184 = vld [vmem:[%s5 + $0x54] sm:$0xf]
    %v4185 = vld [vmem:[%s5 + $0x58] sm:$0xf]
    %v4186 = vld [vmem:[%s5 + $0x5c] sm:$0xf]
    %v4187 = vld [vmem:[%s5 + $0x60] sm:$0xf]
    %v4188 = vld [vmem:[%s5 + $0x64] sm:$0xf]
    %v4189 = vld [vmem:[%s5 + $0x68] sm:$0xf]
    %v4190 = vld [vmem:[%s5 + $0x6c] sm:$0xf]
    %v4191 = vld [vmem:[%s5 + $0x70] sm:$0xf]
    %v4192 = vld [vmem:[%s5 + $0x74] sm:$0xf]
    %v4193 = vld [vmem:[%s5 + $0x78] sm:$0xf]
    %v4194 = vld [vmem:[%s5 + $0x7c] sm:$0xf]
    %v4195 = vld [vmem:[%s5 + $0x80] sm:$0xf]
    %v4196 = vld [vmem:[%s5 + $0x84] sm:$0xf]
    %v4197 = vld [vmem:[%s5 + $0x88] sm:$0xf]
    %v4198 = vld [vmem:[%s5 + $0x8c] sm:$0xf]
    %v4199 = vld [vmem:[%s5 + $0x90] sm:$0xf]
    %v4200 = vld [vmem:[%s5 + $0x94] sm:$0xf]
    %v4201 = vld [vmem:[%s5 + $0x98] sm:$0xf]
    %v4202 = vld [vmem:[%s5 + $0x9c] sm:$0xf]
    %v4203 = vld [vmem:[%s5 + $0xa0] sm:$0xf]
    %v4204 = vld [vmem:[%s5 + $0xa4] sm:$0xf]
    %v4205 = vld [vmem:[%s5 + $0xa8] sm:$0xf]
    %v4206 = vld [vmem:[%s5 + $0xac] sm:$0xf]
    %v4207 = vld [vmem:[%s5 + $0xb0] sm:$0xf]
    %v4208 = vld [vmem:[%s5 + $0xb4] sm:$0xf]
    %v4209 = vld [vmem:[%s5 + $0xb8] sm:$0xf]
    %v4210 = vld [vmem:[%s5 + $0xbc] sm:$0xf]
    %v4211 = vld [vmem:[%s5 + $0xc0] sm:$0xf]
    %v4212 = vld [vmem:[%s5 + $0xc4] sm:$0xf]
    %v4213 = vld [vmem:[%s5 + $0xc8] sm:$0xf]
    %v4214 = vld [vmem:[%s5 + $0xcc] sm:$0xf]
    %v4215 = vld [vmem:[%s5 + $0xd0] sm:$0xf]
    %v4216 = vld [vmem:[%s5 + $0xd4] sm:$0xf]
    %v4217 = vld [vmem:[%s5 + $0xd8] sm:$0xf]
    %v4218 = vld [vmem:[%s5 + $0xdc] sm:$0xf]
    %v4219 = vld [vmem:[%s5 + $0xe0] sm:$0xf]
    %v4220 = vld [vmem:[%s5 + $0xe4] sm:$0xf]
    %v4221 = vld [vmem:[%s5 + $0xe8] sm:$0xf]
    %v4222 = vld [vmem:[%s5 + $0xec] sm:$0xf]
    %v4223 = vld [vmem:[%s5 + $0xf0] sm:$0xf]
    %v4224 = vld [vmem:[%s5 + $0xf4] sm:$0xf]
    %v4225 = vld [vmem:[%s5 + $0xf8] sm:$0xf]
    %v4226 = vld [vmem:[%s5 + $0xfc] sm:$0xf]
    %v4227 = vld [vmem:[%s5 + $0x100] sm:$0xf]
    %v4228 = vld [vmem:[%s5 + $0x104] sm:$0xf]
    %v4229 = vld [vmem:[%s5 + $0x108] sm:$0xf]
    %v4230 = vld [vmem:[%s5 + $0x10c] sm:$0xf]
    %v4231 = vld [vmem:[%s5 + $0x110] sm:$0xf]
    %v4232 = vld [vmem:[%s5 + $0x114] sm:$0xf]
    %v4233 = vld [vmem:[%s5 + $0x118] sm:$0xf]
    %v4234 = vld [vmem:[%s5 + $0x11c] sm:$0xf]
    %v4235 = vld [vmem:[%s5 + $0x120] sm:$0xf]
    %v4236 = vld [vmem:[%s5 + $0x124] sm:$0xf]
    %v4237 = vld [vmem:[%s5 + $0x128] sm:$0xf]
    %v4238 = vld [vmem:[%s5 + $0x12c] sm:$0xf]
    %v4239 = vld [vmem:[%s5 + $0x130] sm:$0xf]
    %v4240 = vld [vmem:[%s5 + $0x134] sm:$0xf]
    %v4241 = vld [vmem:[%s5 + $0x138] sm:$0xf]
    %v4242 = vld [vmem:[%s5 + $0x13c] sm:$0xf]
    %v4243 = vld [vmem:[%s5 + $0x140] sm:$0xf]
    %v4244 = vld [vmem:[%s5 + $0x144] sm:$0xf]
    %v4245 = vld [vmem:[%s5 + $0x148] sm:$0xf]
    %v4246 = vld [vmem:[%s5 + $0x14c] sm:$0xf]
    %v4247 = vld [vmem:[%s5 + $0x150] sm:$0xf]
    %v4248 = vld [vmem:[%s5 + $0x154] sm:$0xf]
    %v4249 = vld [vmem:[%s5 + $0x158] sm:$0xf]
    %v4250 = vld [vmem:[%s5 + $0x15c] sm:$0xf]
    %v4251 = vld [vmem:[%s5 + $0x160] sm:$0xf]
    %v4252 = vld [vmem:[%s5 + $0x164] sm:$0xf]
    %v4253 = vld [vmem:[%s5 + $0x168] sm:$0xf]
    %v4254 = vld [vmem:[%s5 + $0x16c] sm:$0xf]
    %v4255 = vld [vmem:[%s5 + $0x170] sm:$0xf]
    %v4256 = vld [vmem:[%s5 + $0x174] sm:$0xf]
    %v4257 = vld [vmem:[%s5 + $0x178] sm:$0xf]
    %v4258 = vld [vmem:[%s5 + $0x17c] sm:$0xf]
    %v4259 = vld [vmem:[%s5 + $0x180] sm:$0xf]
    %v4260 = vld [vmem:[%s5 + $0x184] sm:$0xf]
    %v4261 = vld [vmem:[%s5 + $0x188] sm:$0xf]
    %v4262 = vld [vmem:[%s5 + $0x18c] sm:$0xf]
    %v4263 = vld [vmem:[%s5 + $0x190] sm:$0xf]
    %v4264 = vld [vmem:[%s5 + $0x194] sm:$0xf]
    %v4265 = vld [vmem:[%s5 + $0x198] sm:$0xf]
    %v4266 = vld [vmem:[%s5 + $0x19c] sm:$0xf]
    %v4267 = vld [vmem:[%s5 + $0x1a0] sm:$0xf]
    %v4268 = vld [vmem:[%s5 + $0x1a4] sm:$0xf]
    %v4269 = vld [vmem:[%s5 + $0x1a8] sm:$0xf]
    %v4270 = vld [vmem:[%s5 + $0x1ac] sm:$0xf]
    %v4271 = vld [vmem:[%s5 + $0x1b0] sm:$0xf]
    %v4272 = vld [vmem:[%s5 + $0x1b4] sm:$0xf]
    %v4273 = vld [vmem:[%s5 + $0x1b8] sm:$0xf]
    %v4274 = vld [vmem:[%s5 + $0x1bc] sm:$0xf]
    %v4275 = vld [vmem:[%s5 + $0x1c0] sm:$0xf]
    %v4276 = vld [vmem:[%s5 + $0x1c4] sm:$0xf]
    %v4277 = vld [vmem:[%s5 + $0x1c8] sm:$0xf]
    %v4278 = vld [vmem:[%s5 + $0x1cc] sm:$0xf]
    %v4279 = vld [vmem:[%s5 + $0x1d0] sm:$0xf]
    %v4280 = vld [vmem:[%s5 + $0x1d4] sm:$0xf]
    %v4281 = vld [vmem:[%s5 + $0x1d8] sm:$0xf]
    %v4282 = vld [vmem:[%s5 + $0x1dc] sm:$0xf]
    %v4283 = vld [vmem:[%s5 + $0x1e0] sm:$0xf]
    %v4284 = vld [vmem:[%s5 + $0x1e4] sm:$0xf]
    %v4285 = vld [vmem:[%s5 + $0x1e8] sm:$0xf]
    %v4286 = vld [vmem:[%s5 + $0x1ec] sm:$0xf]
    %v4287 = vld [vmem:[%s5 + $0x1f0] sm:$0xf]
    %v4288 = vld [vmem:[%s5 + $0x1f4] sm:$0xf]
    %v4289 = vld [vmem:[%s5 + $0x1f8] sm:$0xf]
    %v4290 = vld [vmem:[%s5 + $0x1fc] sm:$0xf]
    %v4291 = vld [vmem:[#allocation10] sm:$0x1]
    %v4293 = vlaneseq
    %v4294 = vshrl.u32 %v4293, 7
    %v4295 = vsub.s32 0, %v4294
    %v4296 = vrot.slane %v4291, %v4295
    %v4426 = vunpack.c.l.b16 %v4163
    %v4427 = vunpack.c.l.b16 %v4164
    %v4428 = vunpack.c.l.b16 %v4165
    %v4429 = vunpack.c.l.b16 %v4166
    %v4430 = vunpack.c.l.b16 %v4167
    %v4431 = vunpack.c.l.b16 %v4168
    %v4432 = vunpack.c.l.b16 %v4169
    %v4433 = vunpack.c.l.b16 %v4170
    %v4434 = vunpack.c.l.b16 %v4171
    %v4435 = vunpack.c.l.b16 %v4172
    %v4436 = vunpack.c.l.b16 %v4173
    %v4437 = vunpack.c.l.b16 %v4174
    %v4438 = vunpack.c.l.b16 %v4175
    %v4439 = vunpack.c.l.b16 %v4176
    %v4440 = vunpack.c.l.b16 %v4177
    %v4441 = vunpack.c.l.b16 %v4178
    %v4442 = vunpack.c.l.b16 %v4179
    %v4443 = vunpack.c.l.b16 %v4180
    %v4444 = vunpack.c.l.b16 %v4181
    %v4445 = vunpack.c.l.b16 %v4182
    %v4446 = vunpack.c.l.b16 %v4183
    %v4447 = vunpack.c.l.b16 %v4184
    %v4448 = vunpack.c.l.b16 %v4185
    %v4449 = vunpack.c.l.b16 %v4186
    %v4450 = vunpack.c.l.b16 %v4187
    %v4451 = vunpack.c.l.b16 %v4188
    %v4452 = vunpack.c.l.b16 %v4189
    %v4453 = vunpack.c.l.b16 %v4190
    %v4454 = vunpack.c.l.b16 %v4191
    %v4455 = vunpack.c.l.b16 %v4192
    %v4456 = vunpack.c.l.b16 %v4193
    %v4457 = vunpack.c.l.b16 %v4194
    %v4458 = vunpack.c.l.b16 %v4195
    %v4459 = vunpack.c.l.b16 %v4196
    %v4460 = vunpack.c.l.b16 %v4197
    %v4461 = vunpack.c.l.b16 %v4198
    %v4462 = vunpack.c.l.b16 %v4199
    %v4463 = vunpack.c.l.b16 %v4200
    %v4464 = vunpack.c.l.b16 %v4201
    %v4465 = vunpack.c.l.b16 %v4202
    %v4466 = vunpack.c.l.b16 %v4203
    %v4467 = vunpack.c.l.b16 %v4204
    %v4468 = vunpack.c.l.b16 %v4205
    %v4469 = vunpack.c.l.b16 %v4206
    %v4470 = vunpack.c.l.b16 %v4207
    %v4471 = vunpack.c.l.b16 %v4208
    %v4472 = vunpack.c.l.b16 %v4209
    %v4473 = vunpack.c.l.b16 %v4210
    %v4474 = vunpack.c.l.b16 %v4211
    %v4475 = vunpack.c.l.b16 %v4212
    %v4476 = vunpack.c.l.b16 %v4213
    %v4477 = vunpack.c.l.b16 %v4214
    %v4478 = vunpack.c.l.b16 %v4215
    %v4479 = vunpack.c.l.b16 %v4216
    %v4480 = vunpack.c.l.b16 %v4217
    %v4481 = vunpack.c.l.b16 %v4218
    %v4482 = vunpack.c.l.b16 %v4219
    %v4483 = vunpack.c.l.b16 %v4220
    %v4484 = vunpack.c.l.b16 %v4221
    %v4485 = vunpack.c.l.b16 %v4222
    %v4486 = vunpack.c.l.b16 %v4223
    %v4487 = vunpack.c.l.b16 %v4224
    %v4488 = vunpack.c.l.b16 %v4225
    %v4489 = vunpack.c.l.b16 %v4226
    %v4490 = vunpack.c.l.b16 %v4227
    %v4491 = vunpack.c.l.b16 %v4228
    %v4492 = vunpack.c.l.b16 %v4229
    %v4493 = vunpack.c.l.b16 %v4230
    %v4494 = vunpack.c.l.b16 %v4231
    %v4495 = vunpack.c.l.b16 %v4232
    %v4496 = vunpack.c.l.b16 %v4233
    %v4497 = vunpack.c.l.b16 %v4234
    %v4498 = vunpack.c.l.b16 %v4235
    %v4499 = vunpack.c.l.b16 %v4236
    %v4500 = vunpack.c.l.b16 %v4237
    %v4501 = vunpack.c.l.b16 %v4238
    %v4502 = vunpack.c.l.b16 %v4239
    %v4503 = vunpack.c.l.b16 %v4240
    %v4504 = vunpack.c.l.b16 %v4241
    %v4505 = vunpack.c.l.b16 %v4242
    %v4506 = vunpack.c.l.b16 %v4243
    %v4507 = vunpack.c.l.b16 %v4244
    %v4508 = vunpack.c.l.b16 %v4245
    %v4509 = vunpack.c.l.b16 %v4246
    %v4510 = vunpack.c.l.b16 %v4247
    %v4511 = vunpack.c.l.b16 %v4248
    %v4512 = vunpack.c.l.b16 %v4249
    %v4513 = vunpack.c.l.b16 %v4250
    %v4514 = vunpack.c.l.b16 %v4251
    %v4515 = vunpack.c.l.b16 %v4252
    %v4516 = vunpack.c.l.b16 %v4253
    %v4517 = vunpack.c.l.b16 %v4254
    %v4518 = vunpack.c.l.b16 %v4255
    %v4519 = vunpack.c.l.b16 %v4256
    %v4520 = vunpack.c.l.b16 %v4257
    %v4521 = vunpack.c.l.b16 %v4258
    %v4522 = vunpack.c.l.b16 %v4259
    %v4523 = vunpack.c.l.b16 %v4260
    %v4524 = vunpack.c.l.b16 %v4261
    %v4525 = vunpack.c.l.b16 %v4262
    %v4526 = vunpack.c.l.b16 %v4263
    %v4527 = vunpack.c.l.b16 %v4264
    %v4528 = vunpack.c.l.b16 %v4265
    %v4529 = vunpack.c.l.b16 %v4266
    %v4530 = vunpack.c.l.b16 %v4267
    %v4531 = vunpack.c.l.b16 %v4268
    %v4532 = vunpack.c.l.b16 %v4269
    %v4533 = vunpack.c.l.b16 %v4270
    %v4534 = vunpack.c.l.b16 %v4271
    %v4535 = vunpack.c.l.b16 %v4272
    %v4536 = vunpack.c.l.b16 %v4273
    %v4537 = vunpack.c.l.b16 %v4274
    %v4538 = vunpack.c.l.b16 %v4275
    %v4539 = vunpack.c.l.b16 %v4276
    %v4540 = vunpack.c.l.b16 %v4277
    %v4541 = vunpack.c.l.b16 %v4278
    %v4542 = vunpack.c.l.b16 %v4279
    %v4543 = vunpack.c.l.b16 %v4280
    %v4544 = vunpack.c.l.b16 %v4281
    %v4545 = vunpack.c.l.b16 %v4282
    %v4546 = vunpack.c.l.b16 %v4283
    %v4547 = vunpack.c.l.b16 %v4284
    %v4548 = vunpack.c.l.b16 %v4285
    %v4549 = vunpack.c.l.b16 %v4286
    %v4550 = vunpack.c.l.b16 %v4287
    %v4551 = vunpack.c.l.b16 %v4288
    %v4552 = vunpack.c.l.b16 %v4289
    %v4553 = vunpack.c.l.b16 %v4290
    %v4554 = vpack.c.b16 %v4427, %v4426
    %v4555 = vpack.c.b16 %v4429, %v4428
    %v4556 = vpack.c.b16 %v4431, %v4430
    %v4557 = vpack.c.b16 %v4433, %v4432
    %v4558 = vpack.c.b16 %v4435, %v4434
    %v4559 = vpack.c.b16 %v4437, %v4436
    %v4560 = vpack.c.b16 %v4439, %v4438
    %v4561 = vpack.c.b16 %v4441, %v4440
    %v4562 = vpack.c.b16 %v4443, %v4442
    %v4563 = vpack.c.b16 %v4445, %v4444
    %v4564 = vpack.c.b16 %v4447, %v4446
    %v4565 = vpack.c.b16 %v4449, %v4448
    %v4566 = vpack.c.b16 %v4451, %v4450
    %v4567 = vpack.c.b16 %v4453, %v4452
    %v4568 = vpack.c.b16 %v4455, %v4454
    %v4569 = vpack.c.b16 %v4457, %v4456
    %v4570 = vpack.c.b16 %v4459, %v4458
    %v4571 = vpack.c.b16 %v4461, %v4460
    %v4572 = vpack.c.b16 %v4463, %v4462
    %v4573 = vpack.c.b16 %v4465, %v4464
    %v4574 = vpack.c.b16 %v4467, %v4466
    %v4575 = vpack.c.b16 %v4469, %v4468
    %v4576 = vpack.c.b16 %v4471, %v4470
    %v4577 = vpack.c.b16 %v4473, %v4472
    %v4578 = vpack.c.b16 %v4475, %v4474
    %v4579 = vpack.c.b16 %v4477, %v4476
    %v4580 = vpack.c.b16 %v4479, %v4478
    %v4581 = vpack.c.b16 %v4481, %v4480
    %v4582 = vpack.c.b16 %v4483, %v4482
    %v4583 = vpack.c.b16 %v4485, %v4484
    %v4584 = vpack.c.b16 %v4487, %v4486
    %v4585 = vpack.c.b16 %v4489, %v4488
    %v4586 = vpack.c.b16 %v4491, %v4490
    %v4587 = vpack.c.b16 %v4493, %v4492
    %v4588 = vpack.c.b16 %v4495, %v4494
    %v4589 = vpack.c.b16 %v4497, %v4496
    %v4590 = vpack.c.b16 %v4499, %v4498
    %v4591 = vpack.c.b16 %v4501, %v4500
    %v4592 = vpack.c.b16 %v4503, %v4502
    %v4593 = vpack.c.b16 %v4505, %v4504
    %v4594 = vpack.c.b16 %v4507, %v4506
    %v4595 = vpack.c.b16 %v4509, %v4508
    %v4596 = vpack.c.b16 %v4511, %v4510
    %v4597 = vpack.c.b16 %v4513, %v4512
    %v4598 = vpack.c.b16 %v4515, %v4514
    %v4599 = vpack.c.b16 %v4517, %v4516
    %v4600 = vpack.c.b16 %v4519, %v4518
    %v4601 = vpack.c.b16 %v4521, %v4520
    %v4602 = vpack.c.b16 %v4523, %v4522
    %v4603 = vpack.c.b16 %v4525, %v4524
    %v4604 = vpack.c.b16 %v4527, %v4526
    %v4605 = vpack.c.b16 %v4529, %v4528
    %v4606 = vpack.c.b16 %v4531, %v4530
    %v4607 = vpack.c.b16 %v4533, %v4532
    %v4608 = vpack.c.b16 %v4535, %v4534
    %v4609 = vpack.c.b16 %v4537, %v4536
    %v4610 = vpack.c.b16 %v4539, %v4538
    %v4611 = vpack.c.b16 %v4541, %v4540
    %v4612 = vpack.c.b16 %v4543, %v4542
    %v4613 = vpack.c.b16 %v4545, %v4544
    %v4614 = vpack.c.b16 %v4547, %v4546
    %v4615 = vpack.c.b16 %v4549, %v4548
    %v4616 = vpack.c.b16 %v4551, %v4550
    %v4617 = vpack.c.b16 %v4553, %v4552
    %4682 = vmatprep.subr.bf16.mxu0 0
    %4683 = vmatpush1.bf16.msra.mxu0 %v4561
    %4684 = vmatprep.subr.bf16.mxu0 0
    %4685 = vmatpush1.bf16.msra.mxu0 %v4560
    %4686 = vmatprep.subr.bf16.mxu0 0
    %4687 = vmatpush1.bf16.msra.mxu0 %v4559
    %4688 = vmatprep.subr.bf16.mxu0 0
    %4689 = vmatpush1.bf16.msra.mxu0 %v4558
    %4690 = vmatprep.subr.bf16.mxu0 0
    %4691 = vmatpush1.bf16.msra.mxu0 %v4557
    %4692 = vmatprep.subr.bf16.mxu0 0
    %4693 = vmatpush1.bf16.msra.mxu0 %v4556
    %4694 = vmatprep.subr.bf16.mxu0 0
    %4695 = vmatpush1.bf16.msra.mxu0 %v4555
    %4696 = vmatprep.subr.bf16.mxu0 0
    %4697 = vmatpush1.bf16.msra.mxu0 %v4554
    %4698 = vmatprep.subr.bf16.mxu0 0
    %4699 = vmatpush2.bf16.msra.mxu0 %v4569
    %4700 = vmatprep.subr.bf16.mxu0 0
    %4701 = vmatpush2.bf16.msra.mxu0 %v4568
    %4702 = vmatprep.subr.bf16.mxu0 0
    %4703 = vmatpush2.bf16.msra.mxu0 %v4567
    %4704 = vmatprep.subr.bf16.mxu0 0
    %4705 = vmatpush2.bf16.msra.mxu0 %v4566
    %4706 = vmatprep.subr.bf16.mxu0 0
    %4707 = vmatpush2.bf16.msra.mxu0 %v4565
    %4708 = vmatprep.subr.bf16.mxu0 0
    %4709 = vmatpush2.bf16.msra.mxu0 %v4564
    %4710 = vmatprep.subr.bf16.mxu0 0
    %4711 = vmatpush2.bf16.msra.mxu0 %v4563
    %4712 = vmatprep.subr.bf16.mxu0 0
    %4713 = vmatpush2.bf16.msra.mxu0 %v4562
    %4714 = vmatprep.mubr.bf16.mxu0 %v4156
    %4715 = vmatmul.mubr.bf16.gmra.mxu0 %v4155
    %v4716 = vpop.f32.mrf.mxu0
    %v4717 = vadd.f32 %v4296, %v4716
    %v4718 = vpop.f32.mrf.mxu0
    %v4719 = vpop.f32.mrf.mxu0
    %v4720 = vpop.f32.mrf.mxu0
    %4721 = vdwg.mxu0
    %4722 = vmatprep.subr.bf16.mxu0 0
    %4723 = vmatpush1.bf16.msra.mxu0 %v4577
    %4724 = vmatprep.subr.bf16.mxu0 0
    %4725 = vmatpush1.bf16.msra.mxu0 %v4576
    %4726 = vmatprep.subr.bf16.mxu0 0
    %4727 = vmatpush1.bf16.msra.mxu0 %v4575
    %4728 = vmatprep.subr.bf16.mxu0 0
    %4729 = vmatpush1.bf16.msra.mxu0 %v4574
    %4730 = vmatprep.subr.bf16.mxu0 0
    %4731 = vmatpush1.bf16.msra.mxu0 %v4573
    %4732 = vmatprep.subr.bf16.mxu0 0
    %4733 = vmatpush1.bf16.msra.mxu0 %v4572
    %4734 = vmatprep.subr.bf16.mxu0 0
    %4735 = vmatpush1.bf16.msra.mxu0 %v4571
    %4736 = vmatprep.subr.bf16.mxu0 0
    %4737 = vmatpush1.bf16.msra.mxu0 %v4570
    %4738 = vmatprep.subr.bf16.mxu0 0
    %4739 = vmatpush2.bf16.msra.mxu0 %v4585
    %4740 = vmatprep.subr.bf16.mxu0 0
    %4741 = vmatpush2.bf16.msra.mxu0 %v4584
    %4742 = vmatprep.subr.bf16.mxu0 0
    %4743 = vmatpush2.bf16.msra.mxu0 %v4583
    %4744 = vmatprep.subr.bf16.mxu0 0
    %4745 = vmatpush2.bf16.msra.mxu0 %v4582
    %4746 = vmatprep.subr.bf16.mxu0 0
    %4747 = vmatpush2.bf16.msra.mxu0 %v4581
    %4748 = vmatprep.subr.bf16.mxu0 0
    %4749 = vmatpush2.bf16.msra.mxu0 %v4580
    %4750 = vmatprep.subr.bf16.mxu0 0
    %4751 = vmatpush2.bf16.msra.mxu0 %v4579
    %4752 = vmatprep.subr.bf16.mxu0 0
    %4753 = vmatpush2.bf16.msra.mxu0 %v4578
    %4754 = vmatprep.mubr.bf16.mxu0 %v4158
    %4755 = vmatmul.mubr.bf16.gmra.mxu0 %v4157
    %v4756 = vpop.f32.mrf.mxu0
    %v4757 = vadd.f32 %v4717, %v4756
    %v4758 = vpop.f32.mrf.mxu0
    %v4759 = vpop.f32.mrf.mxu0
    %v4760 = vpop.f32.mrf.mxu0
    %4761 = vdwg.mxu0
    %4762 = vmatprep.subr.bf16.mxu0 0
    %4763 = vmatpush1.bf16.msra.mxu0 %v4593
    %4764 = vmatprep.subr.bf16.mxu0 0
    %4765 = vmatpush1.bf16.msra.mxu0 %v4592
    %4766 = vmatprep.subr.bf16.mxu0 0
    %4767 = vmatpush1.bf16.msra.mxu0 %v4591
    %4768 = vmatprep.subr.bf16.mxu0 0
    %4769 = vmatpush1.bf16.msra.mxu0 %v4590
    %4770 = vmatprep.subr.bf16.mxu0 0
    %4771 = vmatpush1.bf16.msra.mxu0 %v4589
    %4772 = vmatprep.subr.bf16.mxu0 0
    %4773 = vmatpush1.bf16.msra.mxu0 %v4588
    %4774 = vmatprep.subr.bf16.mxu0 0
    %4775 = vmatpush1.bf16.msra.mxu0 %v4587
    %4776 = vmatprep.subr.bf16.mxu0 0
    %4777 = vmatpush1.bf16.msra.mxu0 %v4586
    %4778 = vmatprep.subr.bf16.mxu0 0
    %4779 = vmatpush2.bf16.msra.mxu0 %v4601
    %4780 = vmatprep.subr.bf16.mxu0 0
    %4781 = vmatpush2.bf16.msra.mxu0 %v4600
    %4782 = vmatprep.subr.bf16.mxu0 0
    %4783 = vmatpush2.bf16.msra.mxu0 %v4599
    %4784 = vmatprep.subr.bf16.mxu0 0
    %4785 = vmatpush2.bf16.msra.mxu0 %v4598
    %4786 = vmatprep.subr.bf16.mxu0 0
    %4787 = vmatpush2.bf16.msra.mxu0 %v4597
    %4788 = vmatprep.subr.bf16.mxu0 0
    %4789 = vmatpush2.bf16.msra.mxu0 %v4596
    %4790 = vmatprep.subr.bf16.mxu0 0
    %4791 = vmatpush2.bf16.msra.mxu0 %v4595
    %4792 = vmatprep.subr.bf16.mxu0 0
    %4793 = vmatpush2.bf16.msra.mxu0 %v4594
    %4794 = vmatprep.mubr.bf16.mxu0 %v4160
    %4795 = vmatmul.mubr.bf16.gmra.mxu0 %v4159
    %v4796 = vpop.f32.mrf.mxu0
    %v4797 = vadd.f32 %v4757, %v4796
    %v4798 = vpop.f32.mrf.mxu0
    %v4799 = vpop.f32.mrf.mxu0
    %v4800 = vpop.f32.mrf.mxu0
    %4801 = vdwg.mxu0
    %4802 = vmatprep.subr.bf16.mxu0 0
    %4803 = vmatpush1.bf16.msra.mxu0 %v4609
    %4804 = vmatprep.subr.bf16.mxu0 0
    %4805 = vmatpush1.bf16.msra.mxu0 %v4608
    %4806 = vmatprep.subr.bf16.mxu0 0
    %4807 = vmatpush1.bf16.msra.mxu0 %v4607
    %4808 = vmatprep.subr.bf16.mxu0 0
    %4809 = vmatpush1.bf16.msra.mxu0 %v4606
    %4810 = vmatprep.subr.bf16.mxu0 0
    %4811 = vmatpush1.bf16.msra.mxu0 %v4605
    %4812 = vmatprep.subr.bf16.mxu0 0
    %4813 = vmatpush1.bf16.msra.mxu0 %v4604
    %4814 = vmatprep.subr.bf16.mxu0 0
    %4815 = vmatpush1.bf16.msra.mxu0 %v4603
    %4816 = vmatprep.subr.bf16.mxu0 0
    %4817 = vmatpush1.bf16.msra.mxu0 %v4602
    %4818 = vmatprep.subr.bf16.mxu0 0
    %4819 = vmatpush2.bf16.msra.mxu0 %v4617
    %4820 = vmatprep.subr.bf16.mxu0 0
    %4821 = vmatpush2.bf16.msra.mxu0 %v4616
    %4822 = vmatprep.subr.bf16.mxu0 0
    %4823 = vmatpush2.bf16.msra.mxu0 %v4615
    %4824 = vmatprep.subr.bf16.mxu0 0
    %4825 = vmatpush2.bf16.msra.mxu0 %v4614
    %4826 = vmatprep.subr.bf16.mxu0 0
    %4827 = vmatpush2.bf16.msra.mxu0 %v4613
    %4828 = vmatprep.subr.bf16.mxu0 0
    %4829 = vmatpush2.bf16.msra.mxu0 %v4612
    %4830 = vmatprep.subr.bf16.mxu0 0
    %4831 = vmatpush2.bf16.msra.mxu0 %v4611
    %4832 = vmatprep.subr.bf16.mxu0 0
    %4833 = vmatpush2.bf16.msra.mxu0 %v4610
    %4834 = vmatprep.mubr.bf16.mxu0 %v4162
    %4835 = vmatmul.mubr.bf16.gmra.mxu0 %v4161
    %v4836 = vpop.f32.mrf.mxu0
    %v4837 = vadd.f32 %v4797, %v4836
    %v4838 = vpop.f32.mrf.mxu0
    %v4839 = vpop.f32.mrf.mxu0
    %v4840 = vpop.f32.mrf.mxu0
    %4841 = vdwg.mxu0
    %4843 = vrot.lane.b32.xlu0 %v4837, 120
    %v4844 = vpop.permute.xlu0 %4843
    %4846 = vrot.lane.b32.xlu0 %v4837, 112
    %v4847 = vpop.permute.xlu0 %4846
    %4849 = vrot.lane.b32.xlu0 %v4837, 104
    %v4850 = vpop.permute.xlu0 %4849
    %v4852 = vcombine.low %v4837, %v4847
    %v4854 = vunpack.c.l.s4 1983009808
    %v4855 = vunpack.c.0.s8 %v4854
    %v4856 = vlaneseq
    %v4857 = vshrl.u32 %v4856, 7
    %v4858 = vsub.s32 %v4855, %v4857
    %v4859 = vrot.slane %v4852, %v4858
    %v4860 = vcombine.low %v4844, %v4850
    %v4862 = vunpack.c.l.s4 1983009808
    %v4863 = vunpack.c.0.s8 %v4862
    %v4864 = vlaneseq
    %v4865 = vshrl.u32 %v4864, 7
    %v4866 = vsub.s32 %v4863, %v4865
    %v4867 = vrot.slane %v4860, %v4866
    %v4868 = vcombine.low %v4859, %v4867
    %v4870 = vunpack.c.l.s4 1934713408
    %v4871 = vunpack.c.0.s8 %v4870
    %v4872 = vlaneseq
    %v4873 = vshrl.u32 %v4872, 7
    %v4874 = vsub.s32 %v4871, %v4873
    %v4875 = vrot.slane %v4868, %v4874
    %v4876 = vcombine.high %v4875, 0.0
    %vm4877 = vcmask 60416
    %v4878 = vsel %vm4877, %v4875, -inf
    %4879 = vmax.xlane.f32.xlu0 %v4878
    %v4880 = vpop.xlane.xlu0 %4879
    %v4881 = vsel %vm4877, %v4876, -inf
    %4882 = vmax.xlane.f32.xlu0 %v4881
    %v4883 = vpop.xlane.xlu0 %4882
    %v4884 = vsub.f32 %v4875, %v4880
    %v4885 = vsub.f32 %v4876, %v4883
    %v4886 = vmul.f32 %v4884, 1.442695
    %v4887 = vpow.pop %v4886
    %v4888 = vmul.f32 %v4885, 1.442695
    %v4889 = vpow.pop %v4888
    %v4890 = vsel %vm4877, %v4887, 0.0
    %4891 = vadd.xlane.f32.xlu0 %v4890
    %v4892 = vpop.xlane.xlu0 %4891
    %v4893 = vsel %vm4877, %v4889, 0.0
    %4894 = vadd.xlane.f32.xlu0 %v4893
    %v4895 = vpop.xlane.xlu0 %4894
    %v4896 = vrcp.pop %v4892
    %v4897 = vrcp.pop %v4895
    %v4898 = vlog2.pop %v4892
    %v4899 = vmul.f32 %v4898, 0.6931472
    %v4900 = vlog2.pop %v4895
    %v4901 = vmul.f32 %v4900, 0.6931472
    %v4902 = vmul.f32 %v4887, %v4896
    %v4904 = vunpack.c.l.s4 1983009808
    %v4905 = vunpack.c.0.s8 %v4904
    %v4906 = vlaneseq
    %v4907 = vshrl.u32 %v4906, 7
    %v4908 = vsub.s32 %v4905, %v4907
    %v4909 = vrot.slane %v4902, %v4908
    %v4910 = vmul.f32 %v4889, %v4897
    %v4912 = vunpack.c.l.s4 1983009808
    %v4913 = vunpack.c.0.s8 %v4912
    %v4914 = vlaneseq
    %v4915 = vshrl.u32 %v4914, 7
    %v4916 = vsub.s32 %v4913, %v4915
    %v4917 = vrot.slane %v4910, %v4916
    %v4918 = vcombine.low %v4909, %v4917
    %v4919 = vcombine.high %v4909, %v4917
    %v4921 = vunpack.c.l.s4 1934713408
    %v4922 = vunpack.c.0.s8 %v4921
    %v4923 = vlaneseq
    %v4924 = vshrl.u32 %v4923, 7
    %v4925 = vsub.s32 %v4922, %v4924
    %v4926 = vrot.slane %v4918, %v4925
    %v4928 = vunpack.c.l.s4 1934713408
    %v4929 = vunpack.c.0.s8 %v4928
    %v4930 = vlaneseq
    %v4931 = vshrl.u32 %v4930, 7
    %v4932 = vsub.s32 %v4929, %v4931
    %v4933 = vrot.slane %v4919, %v4932
    %v4934 = vcombine.high %v4926, 0.0
    %v4935 = vcombine.high %v4933, 0.0
    %4937 = vrot.lane.b32.xlu0 %v4934, 8
    %v4938 = vpop.permute.xlu0 %4937
    %4941 = vrot.lane.b32.xlu0 %v4933, 16
    %v4942 = vpop.permute.xlu0 %4941
    %4945 = vrot.lane.b32.xlu0 %v4935, 24
    %v4946 = vpop.permute.xlu0 %4945
    %vm4948 = vcmask 64512
    %v4949 = vsel %vm4948, %v4926, %v4938
    %v4950 = vsel %vm193, %v4949, %v4942
    %vm4951 = vcmask 195584
    %v4952 = vsel %vm4951, %v4950, %v4946
    %v4953 = vsub.f32 %v4884, %v4899
    %v4955 = vunpack.c.l.s4 1983009808
    %v4956 = vunpack.c.0.s8 %v4955
    %v4957 = vlaneseq
    %v4958 = vshrl.u32 %v4957, 7
    %v4959 = vsub.s32 %v4956, %v4958
    %v4960 = vrot.slane %v4953, %v4959
    %v4961 = vsub.f32 %v4885, %v4901
    %v4963 = vunpack.c.l.s4 1983009808
    %v4964 = vunpack.c.0.s8 %v4963
    %v4965 = vlaneseq
    %v4966 = vshrl.u32 %v4965, 7
    %v4967 = vsub.s32 %v4964, %v4966
    %v4968 = vrot.slane %v4961, %v4967
    %v4969 = vcombine.low %v4960, %v4968
    %v4970 = vcombine.high %v4960, %v4968
    %v4972 = vunpack.c.l.s4 1934713408
    %v4973 = vunpack.c.0.s8 %v4972
    %v4974 = vlaneseq
    %v4975 = vshrl.u32 %v4974, 7
    %v4976 = vsub.s32 %v4973, %v4975
    %v4977 = vrot.slane %v4969, %v4976
    %v4979 = vunpack.c.l.s4 1934713408
    %v4980 = vunpack.c.0.s8 %v4979
    %v4981 = vlaneseq
    %v4982 = vshrl.u32 %v4981, 7
    %v4983 = vsub.s32 %v4980, %v4982
    %v4984 = vrot.slane %v4970, %v4983
    %v4985 = vcombine.high %v4977, 0.0
    %v4986 = vcombine.high %v4984, 0.0
    %4988 = vrot.lane.b32.xlu0 %v4985, 8
    %v4989 = vpop.permute.xlu0 %4988
    %4992 = vrot.lane.b32.xlu0 %v4984, 16
    %v4993 = vpop.permute.xlu0 %4992
    %4996 = vrot.lane.b32.xlu0 %v4986, 24
    %v4997 = vpop.permute.xlu0 %4996
    %v4999 = vsel %vm4948, %v4977, %v4989
    %v5000 = vsel %vm193, %v4999, %v4993
    %v5001 = vsel %vm4951, %v5000, %v4997
    %5003 = vrot.lane.b32.xlu0 %v5001, 32
    %v5004 = vpop.permute.xlu0 %5003
    %vm5006 = vcmask 261120
    %v5007 = vsel %vm5006, %v4952, %v5004
    %vm5008 = vcmask 523264
    %v5009 = vsel %vm5008, %v5007, 0.0
    %5010 = vst [vmem:[%s7] sm:$0x3] %v5009
    // Predicated region
    $region54: #{softmax_actor_forward.1} parent=1 // pred_check
      _
    $region55: #{softmax_actor_forward.1} parent=1 // pred_check_branch
      %5012 = sbr.rel (0) target = $region57
    $region56: #{softmax_actor_forward.1} parent=1 // pred_region
      _
    $region57: #{softmax_actor_forward.1} parent=1 // pred_fallthru
      _
    // Predicated region
    $region58: #{softmax_actor_forward.1} parent=1 // pred_check
      _
    $region59: #{softmax_actor_forward.1} parent=1 // pred_check_branch
      %5014 = sbr.rel (0) target = $region61
    $region60: #{softmax_actor_forward.1} parent=1 // pred_region
      _
    $region61: #{softmax_actor_forward.1} parent=1 // pred_fallthru
      _
    %5015 = vsyncpa [#allocation3], 1
    %5016 = vsyncpa [#allocation5], 1
    %5017 = vsyncpa [#allocation8], 1
    %5018 = vsyncpa [#allocation11], 1

</llo_original>
